<compile_context>
chip_gen: v7x
topology: tpu7x:2x2x1
jax: 0.10.0
libtpu: 0.0.40
codegen_flags: <defaults>
</compile_context>

<pallas_src>
import numpy as np
import jax
import jax.numpy as jnp
from jax.experimental import pallas as pl
from jax.experimental.pallas import tpu as pltpu

N_QUBITS = 4
N_STATES = 16
N_LAYERS = 1   # `N_layers` is an undefined global in the source; fixed to 1 here.


def _build_constants():
    idx = np.arange(N_STATES)
    # bit of wire j for each basis index, wire 0 = MSB (PennyLane ordering)
    bits = (idx[:, None] >> np.array([3, 2, 1, 0])[None, :]) & 1          # (16, 4)
    s1 = (1.0 - 2.0 * bits).astype(np.float32)                            # (16, 4)  (1 - 2 z_j)
    pairs = [(0, 1), (1, 2), (2, 3), (3, 0)]
    sp = np.stack([s1[:, i] * s1[:, j] for (i, j) in pairs],
                  axis=1).astype(np.float32)                              # (16, 4)  s_i * s_j
    return jnp.asarray(s1), jnp.asarray(sp)


def nqe_kernel(x1_ref, x2_ref,
               w1_ref, b1_ref, w2_ref, b2_ref, w3_ref, b3_ref,
               s1_ref, sp_ref, out_ref):
    # Batch on lanes everywhere; features / basis states on sublanes.
    tb = out_ref.shape[1]                                   # lane tile (static)

    # One merged pass for x1 and x2: (4, 2*tb)
    x = jnp.concatenate([x1_ref[...], x2_ref[...]], axis=1)

    # Shared MLP:  h = relu(W1 x + b1); h = relu(W2 h + b2); f = W3 h + b3
    h = jnp.dot(w1_ref[...], x, preferred_element_type=jnp.float32) + b1_ref[...]
    h = jnp.maximum(h, 0.0)
    h = jnp.dot(w2_ref[...], h, preferred_element_type=jnp.float32) + b2_ref[...]
    h = jnp.maximum(h, 0.0)
    f = jnp.dot(w3_ref[...], h, preferred_element_type=jnp.float32) + b3_ref[...]   # (4, 2*tb)

    # Diagonal phase of one ZZ feature-map layer, per basis state k:
    #   RZ(-2 f_j) on wire j              -> phase  f_j * (1 - 2 z_j)
    #   CNOT RZ(-2(pi-f_i)(pi-f_j)) CNOT  -> phase (pi-f_i)(pi-f_j) * s_i s_j
    g = jnp.pi - f                                                          # (4, 2*tb)
    phi = jnp.dot(s1_ref[...], f, preferred_element_type=jnp.float32)       # (16, 2*tb)
    phi = phi + sp_ref[:, 0:1] * (g[0:1, :] * g[1:2, :])
    phi = phi + sp_ref[:, 1:2] * (g[1:2, :] * g[2:3, :])
    phi = phi + sp_ref[:, 2:3] * (g[2:3, :] * g[3:4, :])
    phi = phi + sp_ref[:, 3:4] * (g[3:4, :] * g[0:1, :])

    # |0000> shortcut (N_LAYERS == 1): psi_f[k] = (1/4) e^{i phi_f(k)}
    #   prob(|0000>) = |<psi_b|psi_a>|^2
    #                = ((sum_k cos dphi)^2 + (sum_k sin dphi)^2) / 256
    dphi = phi[:, :tb] - phi[:, tb:]                                        # (16, tb)
    re = jnp.sum(jnp.cos(dphi), axis=0, keepdims=True)                      # (1, tb)
    im = jnp.sum(jnp.sin(dphi), axis=0, keepdims=True)                      # (1, tb)
    out_ref[...] = (re * re + im * im) * (1.0 / 256.0)


def nqe_forward(x1, x2, params, *, tile=512):
    assert N_LAYERS == 1, "kernel's |0000> shortcut requires N_LAYERS == 1"
    B = x1.shape[0]
    Bp = ((B + tile - 1) // tile) * tile
    # Transpose to batch-on-lanes layout, pad batch up to a tile multiple.
    x1t = jnp.pad(x1.astype(jnp.float32), ((0, Bp - B), (0, 0))).T          # (4, Bp)
    x2t = jnp.pad(x2.astype(jnp.float32), ((0, Bp - B), (0, 0))).T          # (4, Bp)

    s1, sp = _build_constants()
    # params stored for x @ W (PyTorch-like); kernel wants W @ x^T.
    w1, b1 = params["w1"].T, params["b1"].T     # (8, 4), (8, 1)
    w2, b2 = params["w2"].T, params["b2"].T     # (8, 8), (8, 1)
    w3, b3 = params["w3"].T, params["b3"].T     # (4, 8), (4, 1)

    def full(shape):
        return pl.BlockSpec(shape, lambda i: (0, 0))

    out = pl.pallas_call(
        nqe_kernel,
        out_shape=jax.ShapeDtypeStruct((1, Bp), jnp.float32),
        grid_spec=pltpu.PrefetchScalarGridSpec(
            num_scalar_prefetch=0,
            grid=(Bp // tile,),
            in_specs=[
                pl.BlockSpec((4, tile), lambda i: (0, i)),   # x1 (4, Bp)
                pl.BlockSpec((4, tile), lambda i: (0, i)),   # x2 (4, Bp)
                full((8, 4)), full((8, 1)),                  # W1, b1
                full((8, 8)), full((8, 1)),                  # W2, b2
                full((4, 8)), full((4, 1)),                  # W3, b3
                full((16, 4)), full((16, 4)),                # s1, sp
            ],
            out_specs=pl.BlockSpec((1, tile), lambda i: (0, i)),
        ),
        compiler_params=pltpu.CompilerParams(
            dimension_semantics=("parallel",)),
    )(x1t, x2t, w1, b1, w2, b2, w3, b3, s1, sp)
    return out[0, :B]


def init_params(key):
    # nn.Linear(in, out): weight (out, in), bias (out,); stored here as W^T
    # (in, out) for x @ W, biases as (1, out). PyTorch-style U(-1/sqrt(fan_in), .).
    k1, k2, k3, k4, k5, k6 = jax.random.split(key, 6)

    def u(k, shape, fan_in):
        lim = 1.0 / np.sqrt(fan_in)
        return jax.random.uniform(k, shape, jnp.float32, -lim, lim)

    return {
        "w1": u(k1, (4, 8), 4), "b1": u(k2, (1, 8), 4),
        "w2": u(k3, (8, 8), 8), "b2": u(k4, (1, 8), 8),
        "w3": u(k5, (8, 4), 8), "b3": u(k6, (1, 4), 8),
    }


def _np_reference(x1, x2, params):
    """Gate-by-gate complex128 simulation of the actual circuit (correctness check)."""
    p = {k: np.asarray(v, np.float64) for k, v in params.items()}

    def mlp(x):
        h = np.maximum(x @ p["w1"] + p["b1"], 0.0)
        h = np.maximum(h @ p["w2"] + p["b2"], 0.0)
        return h @ p["w3"] + p["b3"]

    def apply_1q(state, mat, wire):
        st = state.reshape((2,) * N_QUBITS)
        st = np.moveaxis(st, wire, 0)
        st = np.tensordot(mat, st, axes=([1], [0]))
        st = np.moveaxis(st, 0, wire)
        return st.reshape(N_STATES)

    def apply_cnot(state, ctrl, tgt):
        st = state.reshape((2,) * N_QUBITS)
        st = np.moveaxis(st, (ctrl, tgt), (0, 1))
        st = np.stack([st[0], st[1][::-1]], axis=0)
        st = np.moveaxis(st, (0, 1), (ctrl, tgt))
        return st.reshape(N_STATES)

    H = np.array([[1, 1], [1, -1]], dtype=np.complex128) / np.sqrt(2.0)
    RZ = lambda th: np.diag([np.exp(-1j * th / 2), np.exp(1j * th / 2)])

    def embed(f):
        st = np.zeros(N_STATES, np.complex128)
        st[0] = 1.0
        for _ in range(N_LAYERS):
            for j in range(4):
                st = apply_1q(st, H, j)
                st = apply_1q(st, RZ(-2.0 * f[j]), j)
            for (k, l) in [(0, 1), (1, 2), (2, 3), (3, 0)]:
                st = apply_cnot(st, k, l)
                st = apply_1q(st, RZ(-2.0 * (np.pi - f[k]) * (np.pi - f[l])), l)
                st = apply_cnot(st, k, l)
        return st

    a = mlp(np.asarray(x1, np.float64))
    b = mlp(np.asarray(x2, np.float64))
    out = []
    for i in range(a.shape[0]):
        out.append(np.abs(np.vdot(embed(b[i]), embed(a[i]))) ** 2)
    return np.array(out)


if __name__ == "__main__":
    key = jax.random.PRNGKey(0)
    kp, kx1, kx2 = jax.random.split(key, 3)
    params = init_params(kp)

    B = 8
    x1 = jax.random.normal(kx1, (B, 4), jnp.float32)
    x2 = jax.random.normal(kx2, (B, 4), jnp.float32)

    out = nqe_forward(x1, x2, params)
    out = jax.block_until_ready(out)

    ref = _np_reference(np.asarray(x1), np.asarray(x2), params)
    np.testing.assert_allclose(np.asarray(out), ref, rtol=1e-4, atol=1e-4)
    assert out.shape == (B,)
    print("KERNEL_OK")
</pallas_src>

<mosaic_0001>
module attributes {stable_mosaic.version = 11 : i64} {
  func.func @nqe_kernel(%arg0: i32, %arg1: memref<4x512xf32, #tpu.memory_space<vmem>>, %arg2: memref<4x512xf32, #tpu.memory_space<vmem>>, %arg3: memref<8x4xf32, #tpu.memory_space<vmem>>, %arg4: memref<8x1xf32, #tpu.memory_space<vmem>>, %arg5: memref<8x8xf32, #tpu.memory_space<vmem>>, %arg6: memref<8x1xf32, #tpu.memory_space<vmem>>, %arg7: memref<4x8xf32, #tpu.memory_space<vmem>>, %arg8: memref<4x1xf32, #tpu.memory_space<vmem>>, %arg9: memref<16x4xf32, #tpu.memory_space<vmem>>, %arg10: memref<16x4xf32, #tpu.memory_space<vmem>>, %arg11: memref<1x512xf32, #tpu.memory_space<vmem>>) attributes {dimension_semantics = [#tpu.dimension_semantics<parallel>], iteration_bounds = array<i64: 1>, scalar_prefetch = 0 : i64, scratch_operands = 0 : i64, tpu.core_type = #tpu.core_type<tc>, window_params = [{transform_indices = @transform_0, window_bounds = array<i64: 4, 512>}, {transform_indices = @transform_1, window_bounds = array<i64: 4, 512>}, {pipeline_mode = #tpu.pipeline_mode<synchronous>, transform_indices = @transform_2, window_bounds = array<i64: 8, 4>}, {pipeline_mode = #tpu.pipeline_mode<synchronous>, transform_indices = @transform_3, window_bounds = array<i64: 8, 1>}, {pipeline_mode = #tpu.pipeline_mode<synchronous>, transform_indices = @transform_4, window_bounds = array<i64: 8, 8>}, {pipeline_mode = #tpu.pipeline_mode<synchronous>, transform_indices = @transform_5, window_bounds = array<i64: 8, 1>}, {pipeline_mode = #tpu.pipeline_mode<synchronous>, transform_indices = @transform_6, window_bounds = array<i64: 4, 8>}, {pipeline_mode = #tpu.pipeline_mode<synchronous>, transform_indices = @transform_7, window_bounds = array<i64: 4, 1>}, {pipeline_mode = #tpu.pipeline_mode<synchronous>, transform_indices = @transform_8, window_bounds = array<i64: 16, 4>}, {pipeline_mode = #tpu.pipeline_mode<synchronous>, transform_indices = @transform_9, window_bounds = array<i64: 16, 4>}, {transform_indices = @transform_10, window_bounds = array<i64: 1, 512>}]} {
    %c0 = arith.constant 0 : index
    %c0_0 = arith.constant 0 : index
    %0 = vector.load %arg1[%c0, %c0_0] : memref<4x512xf32, #tpu.memory_space<vmem>>, vector<4x512xf32>
    %c0_1 = arith.constant 0 : index
    %c0_2 = arith.constant 0 : index
    %1 = vector.load %arg2[%c0_1, %c0_2] : memref<4x512xf32, #tpu.memory_space<vmem>>, vector<4x512xf32>
    %2 = tpu.concatenate %0, %1 in 1 : vector<4x512xf32>, vector<4x512xf32> -> vector<4x1024xf32>
    %c0_3 = arith.constant 0 : index
    %c0_4 = arith.constant 0 : index
    %3 = vector.load %arg3[%c0_3, %c0_4] : memref<8x4xf32, #tpu.memory_space<vmem>>, vector<8x4xf32>
    %cst = arith.constant dense<0.000000e+00> : vector<8x1024xf32>
    %4 = tpu.matmul %3, %2, %cst {dimension_numbers = #tpu.dot_dimension_numbers<[1], [0], [0], [1], [0, 0, 1, 1], [], []>} : vector<8x4xf32>, vector<4x1024xf32>, vector<8x1024xf32> -> vector<8x1024xf32>
    %c0_5 = arith.constant 0 : index
    %c0_6 = arith.constant 0 : index
    %5 = vector.load %arg4[%c0_5, %c0_6] : memref<8x1xf32, #tpu.memory_space<vmem>>, vector<8x1xf32>
    %6 = vector.broadcast %5 : vector<8x1xf32> to vector<8x1024xf32>
    %7 = arith.addf %4, %6 : vector<8x1024xf32>
    %cst_7 = arith.constant 0.000000e+00 : f32
    %8 = vector.broadcast %cst_7 : f32 to vector<8x1024xf32>
    %9 = arith.maximumf %7, %8 : vector<8x1024xf32>
    %c0_8 = arith.constant 0 : index
    %c0_9 = arith.constant 0 : index
    %10 = vector.load %arg5[%c0_8, %c0_9] : memref<8x8xf32, #tpu.memory_space<vmem>>, vector<8x8xf32>
    %cst_10 = arith.constant dense<0.000000e+00> : vector<8x1024xf32>
    %11 = tpu.matmul %10, %9, %cst_10 {dimension_numbers = #tpu.dot_dimension_numbers<[1], [0], [0], [1], [0, 0, 1, 1], [], []>} : vector<8x8xf32>, vector<8x1024xf32>, vector<8x1024xf32> -> vector<8x1024xf32>
    %c0_11 = arith.constant 0 : index
    %c0_12 = arith.constant 0 : index
    %12 = vector.load %arg6[%c0_11, %c0_12] : memref<8x1xf32, #tpu.memory_space<vmem>>, vector<8x1xf32>
    %13 = vector.broadcast %12 : vector<8x1xf32> to vector<8x1024xf32>
    %14 = arith.addf %11, %13 : vector<8x1024xf32>
    %cst_13 = arith.constant 0.000000e+00 : f32
    %15 = vector.broadcast %cst_13 : f32 to vector<8x1024xf32>
    %16 = arith.maximumf %14, %15 : vector<8x1024xf32>
    %c0_14 = arith.constant 0 : index
    %c0_15 = arith.constant 0 : index
    %17 = vector.load %arg7[%c0_14, %c0_15] : memref<4x8xf32, #tpu.memory_space<vmem>>, vector<4x8xf32>
    %cst_16 = arith.constant dense<0.000000e+00> : vector<4x1024xf32>
    %18 = tpu.matmul %17, %16, %cst_16 {dimension_numbers = #tpu.dot_dimension_numbers<[1], [0], [0], [1], [0, 0, 1, 1], [], []>} : vector<4x8xf32>, vector<8x1024xf32>, vector<4x1024xf32> -> vector<4x1024xf32>
    %c0_17 = arith.constant 0 : index
    %c0_18 = arith.constant 0 : index
    %19 = vector.load %arg8[%c0_17, %c0_18] : memref<4x1xf32, #tpu.memory_space<vmem>>, vector<4x1xf32>
    %20 = vector.broadcast %19 : vector<4x1xf32> to vector<4x1024xf32>
    %21 = arith.addf %18, %20 : vector<4x1024xf32>
    %cst_19 = arith.constant 3.14159274 : f32
    %22 = vector.broadcast %cst_19 : f32 to vector<4x1024xf32>
    %23 = arith.subf %22, %21 : vector<4x1024xf32>
    %c0_20 = arith.constant 0 : index
    %c0_21 = arith.constant 0 : index
    %24 = vector.load %arg9[%c0_20, %c0_21] : memref<16x4xf32, #tpu.memory_space<vmem>>, vector<16x4xf32>
    %cst_22 = arith.constant dense<0.000000e+00> : vector<16x1024xf32>
    %25 = tpu.matmul %24, %21, %cst_22 {dimension_numbers = #tpu.dot_dimension_numbers<[1], [0], [0], [1], [0, 0, 1, 1], [], []>} : vector<16x4xf32>, vector<4x1024xf32>, vector<16x1024xf32> -> vector<16x1024xf32>
    %c0_23 = arith.constant 0 : index
    %c0_24 = arith.constant 0 : index
    %26 = vector.load %arg10[%c0_23, %c0_24] : memref<16x4xf32, #tpu.memory_space<vmem>>, vector<16x1xf32>
    %27 = vector.extract_strided_slice %23 {offsets = [0, 0], sizes = [1, 1024], strides = [1, 1]} : vector<4x1024xf32> to vector<1x1024xf32>
    %28 = vector.extract_strided_slice %23 {offsets = [1, 0], sizes = [1, 1024], strides = [1, 1]} : vector<4x1024xf32> to vector<1x1024xf32>
    %29 = arith.mulf %27, %28 : vector<1x1024xf32>
    %30 = vector.broadcast %26 : vector<16x1xf32> to vector<16x1024xf32>
    %31 = vector.broadcast %29 : vector<1x1024xf32> to vector<16x1024xf32>
    %32 = arith.mulf %30, %31 : vector<16x1024xf32>
    %33 = arith.addf %25, %32 : vector<16x1024xf32>
    %c0_25 = arith.constant 0 : index
    %c1 = arith.constant 1 : index
    %34 = vector.load %arg10[%c0_25, %c1] : memref<16x4xf32, #tpu.memory_space<vmem>>, vector<16x1xf32>
    %35 = vector.extract_strided_slice %23 {offsets = [1, 0], sizes = [1, 1024], strides = [1, 1]} : vector<4x1024xf32> to vector<1x1024xf32>
    %36 = vector.extract_strided_slice %23 {offsets = [2, 0], sizes = [1, 1024], strides = [1, 1]} : vector<4x1024xf32> to vector<1x1024xf32>
    %37 = arith.mulf %35, %36 : vector<1x1024xf32>
    %38 = vector.broadcast %34 : vector<16x1xf32> to vector<16x1024xf32>
    %39 = vector.broadcast %37 : vector<1x1024xf32> to vector<16x1024xf32>
    %40 = arith.mulf %38, %39 : vector<16x1024xf32>
    %41 = arith.addf %33, %40 : vector<16x1024xf32>
    %c0_26 = arith.constant 0 : index
    %c2 = arith.constant 2 : index
    %42 = vector.load %arg10[%c0_26, %c2] : memref<16x4xf32, #tpu.memory_space<vmem>>, vector<16x1xf32>
    %43 = vector.extract_strided_slice %23 {offsets = [2, 0], sizes = [1, 1024], strides = [1, 1]} : vector<4x1024xf32> to vector<1x1024xf32>
    %44 = vector.extract_strided_slice %23 {offsets = [3, 0], sizes = [1, 1024], strides = [1, 1]} : vector<4x1024xf32> to vector<1x1024xf32>
    %45 = arith.mulf %43, %44 : vector<1x1024xf32>
    %46 = vector.broadcast %42 : vector<16x1xf32> to vector<16x1024xf32>
    %47 = vector.broadcast %45 : vector<1x1024xf32> to vector<16x1024xf32>
    %48 = arith.mulf %46, %47 : vector<16x1024xf32>
    %49 = arith.addf %41, %48 : vector<16x1024xf32>
    %c0_27 = arith.constant 0 : index
    %c3 = arith.constant 3 : index
    %50 = vector.load %arg10[%c0_27, %c3] : memref<16x4xf32, #tpu.memory_space<vmem>>, vector<16x1xf32>
    %51 = vector.extract_strided_slice %23 {offsets = [3, 0], sizes = [1, 1024], strides = [1, 1]} : vector<4x1024xf32> to vector<1x1024xf32>
    %52 = vector.extract_strided_slice %23 {offsets = [0, 0], sizes = [1, 1024], strides = [1, 1]} : vector<4x1024xf32> to vector<1x1024xf32>
    %53 = arith.mulf %51, %52 : vector<1x1024xf32>
    %54 = vector.broadcast %50 : vector<16x1xf32> to vector<16x1024xf32>
    %55 = vector.broadcast %53 : vector<1x1024xf32> to vector<16x1024xf32>
    %56 = arith.mulf %54, %55 : vector<16x1024xf32>
    %57 = arith.addf %49, %56 : vector<16x1024xf32>
    %58 = vector.extract_strided_slice %57 {offsets = [0, 0], sizes = [16, 512], strides = [1, 1]} : vector<16x1024xf32> to vector<16x512xf32>
    %59 = vector.extract_strided_slice %57 {offsets = [0, 512], sizes = [16, 512], strides = [1, 1]} : vector<16x1024xf32> to vector<16x512xf32>
    %60 = arith.subf %58, %59 : vector<16x512xf32>
    %61 = math.cos %60 : vector<16x512xf32>
    %cst_28 = arith.constant dense<0.000000e+00> : vector<512xf32>
    %62 = vector.multi_reduction <add>, %61, %cst_28 [0] : vector<16x512xf32> to vector<512xf32>
    %63 = vector.shape_cast %62 : vector<512xf32> to vector<1x512xf32>
    %64 = math.sin %60 : vector<16x512xf32>
    %cst_29 = arith.constant dense<0.000000e+00> : vector<512xf32>
    %65 = vector.multi_reduction <add>, %64, %cst_29 [0] : vector<16x512xf32> to vector<512xf32>
    %66 = vector.shape_cast %65 : vector<512xf32> to vector<1x512xf32>
    %67 = arith.mulf %63, %63 : vector<1x512xf32>
    %68 = arith.mulf %66, %66 : vector<1x512xf32>
    %69 = arith.addf %67, %68 : vector<1x512xf32>
    %cst_30 = arith.constant 3.906250e-03 : f32
    %70 = vector.broadcast %cst_30 : f32 to vector<1x512xf32>
    %71 = arith.mulf %69, %70 : vector<1x512xf32>
    %c0_31 = arith.constant 0 : index
    %c0_32 = arith.constant 0 : index
    %72 = vector.load %arg11[%c0_31, %c0_32] : memref<1x512xf32, #tpu.memory_space<vmem>>, vector<1x512xf32>
    tpu.vector_store %arg11[%c0_31, %c0_32], %71 {strides = array<i32>} : memref<1x512xf32, #tpu.memory_space<vmem>>, vector<1x512xf32>,
    return
  }
  func.func @transform_0(%arg0: i32) -> (i32, i32) {
    %c0_i32 = arith.constant 0 : i32
    %c0_i32_0 = arith.constant 0 : i32
    return %c0_i32, %arg0 : i32, i32
  }
  func.func @transform_1(%arg0: i32) -> (i32, i32) {
    %c0_i32 = arith.constant 0 : i32
    %c0_i32_0 = arith.constant 0 : i32
    return %c0_i32, %arg0 : i32, i32
  }
  func.func @transform_2(%arg0: i32) -> (i32, i32) {
    %c0_i32 = arith.constant 0 : i32
    %c0_i32_0 = arith.constant 0 : i32
    %c0_i32_1 = arith.constant 0 : i32
    return %c0_i32, %c0_i32_0 : i32, i32
  }
  func.func @transform_3(%arg0: i32) -> (i32, i32) {
    %c0_i32 = arith.constant 0 : i32
    %c0_i32_0 = arith.constant 0 : i32
    %c0_i32_1 = arith.constant 0 : i32
    return %c0_i32, %c0_i32_0 : i32, i32
  }
  func.func @transform_4(%arg0: i32) -> (i32, i32) {
    %c0_i32 = arith.constant 0 : i32
    %c0_i32_0 = arith.constant 0 : i32
    %c0_i32_1 = arith.constant 0 : i32
    return %c0_i32, %c0_i32_0 : i32, i32
  }
  func.func @transform_5(%arg0: i32) -> (i32, i32) {
    %c0_i32 = arith.constant 0 : i32
    %c0_i32_0 = arith.constant 0 : i32
    %c0_i32_1 = arith.constant 0 : i32
    return %c0_i32, %c0_i32_0 : i32, i32
  }
  func.func @transform_6(%arg0: i32) -> (i32, i32) {
    %c0_i32 = arith.constant 0 : i32
    %c0_i32_0 = arith.constant 0 : i32
    %c0_i32_1 = arith.constant 0 : i32
    return %c0_i32, %c0_i32_0 : i32, i32
  }
  func.func @transform_7(%arg0: i32) -> (i32, i32) {
    %c0_i32 = arith.constant 0 : i32
    %c0_i32_0 = arith.constant 0 : i32
    %c0_i32_1 = arith.constant 0 : i32
    return %c0_i32, %c0_i32_0 : i32, i32
  }
  func.func @transform_8(%arg0: i32) -> (i32, i32) {
    %c0_i32 = arith.constant 0 : i32
    %c0_i32_0 = arith.constant 0 : i32
    %c0_i32_1 = arith.constant 0 : i32
    return %c0_i32, %c0_i32_0 : i32, i32
  }
  func.func @transform_9(%arg0: i32) -> (i32, i32) {
    %c0_i32 = arith.constant 0 : i32
    %c0_i32_0 = arith.constant 0 : i32
    %c0_i32_1 = arith.constant 0 : i32
    return %c0_i32, %c0_i32_0 : i32, i32
  }
  func.func @transform_10(%arg0: i32) -> (i32, i32) {
    %c0_i32 = arith.constant 0 : i32
    %c0_i32_0 = arith.constant 0 : i32
    return %c0_i32, %arg0 : i32, i32
  }
}

</mosaic_0001>

<llo_original>
// kernel: tpu_custom_call.1
$region0: #{tpu_custom_call.1}
  #allocation0 [shape = 'u32[]', space=smem, size = 0x4, offset = 0x4, fixed_abs, tag = 'smem constant byte address 0x4 - core index']
  #allocation1 [shape = 'u32[144,128]{1,0:T(1,128)}', space=vmem, size = 0x12000, scoped, tag = 'internal scratch']
  %s0 = inlined_call_operand.vmem [shape: f32[4,512], index: 0, kind: input, shape index: {}]
  %s1 = inlined_call_operand.vmem [shape: f32[4,512], index: 1, kind: input, shape index: {}]
  %s2 = inlined_call_operand.vmem [shape: f32[8,4], index: 2, kind: input, shape index: {}]
  %s3 = inlined_call_operand.vmem [shape: f32[8,1], index: 3, kind: input, shape index: {}]
  %s4 = inlined_call_operand.vmem [shape: f32[8,8], index: 4, kind: input, shape index: {}]
  %s5 = inlined_call_operand.vmem [shape: f32[8,1], index: 5, kind: input, shape index: {}]
  %s6 = inlined_call_operand.vmem [shape: f32[4,8], index: 6, kind: input, shape index: {}]
  %s7 = inlined_call_operand.vmem [shape: f32[4,1], index: 7, kind: input, shape index: {}]
  %s8 = inlined_call_operand.vmem [shape: f32[16,4], index: 8, kind: input, shape index: {}]
  %s9 = inlined_call_operand.vmem [shape: f32[16,4], index: 9, kind: input, shape index: {}]
  %s10 = inlined_call_operand.hbm [shape: f32[1,512], index: 10, kind: output, shape index: {}]
  %s11 = sld [smem:[#allocation0]]
  $region50: #{tpu_custom_call.1} parent=0
    _
  %s13 = ssub.s32 1, %s11
  %s14 = scalar_select 0, %s13, %s11
  $region1: #{tpu_custom_call.1} parent=0
    #allocation2 [shape = 'u8[2048]{0}', space=vmem, size = 0x800, scoped, tag = 'output window, operand 0, single buffered']
    #allocation3 [shape = 's32[1]{0}', space=sflag, size = 0x4, scoped, tag = 'scoped memory for tpu_custom_call.1']
    %15 = vsyncpa [#allocation3], 0
    // Predicated region
    $region2: #{tpu_custom_call.1} parent=1 // pred_check
      _
    $region3: #{tpu_custom_call.1} parent=1 // pred_check_branch
      %17 = sbr.rel (0) target = $region5
    $region4: #{tpu_custom_call.1} parent=1 // pred_region
      _
    $region5: #{tpu_custom_call.1} parent=1 // pred_fallthru
      _
    // Predicated region
    $region6: #{tpu_custom_call.1} parent=1 // pred_check
      _
    $region7: #{tpu_custom_call.1} parent=1 // pred_check_branch
      %19 = sbr.rel (0) target = $region9
    $region8: #{tpu_custom_call.1} parent=1 // pred_region
      _
    $region9: #{tpu_custom_call.1} parent=1 // pred_fallthru
      _
    // Predicated region
    $region10: #{tpu_custom_call.1} parent=1 // pred_check
      _
    $region11: #{tpu_custom_call.1} parent=1 // pred_check_branch
      %21 = sbr.rel (0) target = $region13
    $region12: #{tpu_custom_call.1} parent=1 // pred_region
      _
    $region13: #{tpu_custom_call.1} parent=1 // pred_fallthru
      _
    // Predicated region
    $region14: #{tpu_custom_call.1} parent=1 // pred_check
      _
    $region15: #{tpu_custom_call.1} parent=1 // pred_check_branch
      %23 = sbr.rel (0) target = $region17
    $region16: #{tpu_custom_call.1} parent=1 // pred_region
      _
    $region17: #{tpu_custom_call.1} parent=1 // pred_fallthru
      _
    // Predicated region
    $region18: #{tpu_custom_call.1} parent=1 // pred_check
      _
    $region19: #{tpu_custom_call.1} parent=1 // pred_check_branch
      %25 = sbr.rel (0) target = $region21
    $region20: #{tpu_custom_call.1} parent=1 // pred_region
      _
    $region21: #{tpu_custom_call.1} parent=1 // pred_fallthru
      _
    // Predicated region
    $region22: #{tpu_custom_call.1} parent=1 // pred_check
      _
    $region23: #{tpu_custom_call.1} parent=1 // pred_check_branch
      %27 = sbr.rel (0) target = $region25
    $region24: #{tpu_custom_call.1} parent=1 // pred_region
      _
    $region25: #{tpu_custom_call.1} parent=1 // pred_fallthru
      _
    // Predicated region
    $region26: #{tpu_custom_call.1} parent=1 // pred_check
      _
    $region27: #{tpu_custom_call.1} parent=1 // pred_check_branch
      %29 = sbr.rel (0) target = $region29
    $region28: #{tpu_custom_call.1} parent=1 // pred_region
      _
    $region29: #{tpu_custom_call.1} parent=1 // pred_fallthru
      _
    // Predicated region
    $region30: #{tpu_custom_call.1} parent=1 // pred_check
      _
    $region31: #{tpu_custom_call.1} parent=1 // pred_check_branch
      %31 = sbr.rel (0) target = $region33
    $region32: #{tpu_custom_call.1} parent=1 // pred_region
      _
    $region33: #{tpu_custom_call.1} parent=1 // pred_fallthru
      _
    // Predicated region
    $region34: #{tpu_custom_call.1} parent=1 // pred_check
      _
    $region35: #{tpu_custom_call.1} parent=1 // pred_check_branch
      %33 = sbr.rel (0) target = $region37
    $region36: #{tpu_custom_call.1} parent=1 // pred_region
      _
    $region37: #{tpu_custom_call.1} parent=1 // pred_fallthru
      _
    // Predicated region
    $region38: #{tpu_custom_call.1} parent=1 // pred_check
      _
    $region39: #{tpu_custom_call.1} parent=1 // pred_check_branch
      %35 = sbr.rel (0) target = $region41
    $region40: #{tpu_custom_call.1} parent=1 // pred_region
      _
    $region41: #{tpu_custom_call.1} parent=1 // pred_fallthru
      _
    %v36 = vld [vmem:[%s0] sm:$0xff]
    %v37 = vld [vmem:[%s0 + $0x8] sm:$0xff]
    %v38 = vld [vmem:[%s1] sm:$0xff]
    %v39 = vld [vmem:[%s1 + $0x8] sm:$0xff]
    %v42 = vcombine.high %v36, %v36
    %v43 = vcombine.high %v37, %v37
    %v46 = vcombine.high %v38, %v38
    %v47 = vcombine.high %v39, %v39
    %v48 = vld [vmem:[%s2] sm:$0xff]
    %v49 = vld [vmem:[%s3] sm:$0xff]
    %51 = vset.pattern.permute.xlu0 0
    %52 = vperm.xlu0 %51, %v49
    %v53 = vpop.permute.xlu0 %52
    %vm55 = vcmask 31744
    %v57 = vsel %vm55, %v48, 0
    %vm59 = vcmask 1043456
    %v60 = vsel %vm59, %v36, 0
    %v62 = vsel %vm59, %v42, 0
    %v64 = vsel %vm59, %v37, 0
    %v66 = vsel %vm59, %v43, 0
    %v68 = vsel %vm59, %v38, 0
    %v70 = vsel %vm59, %v46, 0
    %v72 = vsel %vm59, %v39, 0
    %v74 = vsel %vm59, %v47, 0
    %76 = vmatprep.subr.mxu0 %v62
    %77 = vmatpush1.msra.mxu0 %v60
    %78 = vmatprep.subr.mxu0 0.0
    %79 = vmatpush1.msra.mxu0 0.0
    %80 = vmatprep.subr.mxu0 0.0
    %81 = vmatpush1.msra.mxu0 0.0
    %82 = vmatprep.subr.mxu0 0.0
    %83 = vmatpush1.msra.mxu0 0.0
    %84 = vmatprep.subr.mxu0 0.0
    %85 = vmatpush1.msra.mxu0 0.0
    %86 = vmatprep.subr.mxu0 0.0
    %87 = vmatpush1.msra.mxu0 0.0
    %88 = vmatprep.subr.mxu0 0.0
    %89 = vmatpush1.msra.mxu0 0.0
    %90 = vmatprep.subr.mxu0 0.0
    %91 = vmatpush1.msra.mxu0 0.0
    %92 = vmatprep.subr.mxu0 0.0
    %93 = vmatpush1.msra.mxu0 0.0
    %94 = vmatprep.subr.mxu0 0.0
    %95 = vmatpush1.msra.mxu0 0.0
    %96 = vmatprep.subr.mxu0 0.0
    %97 = vmatpush1.msra.mxu0 0.0
    %98 = vmatprep.subr.mxu0 0.0
    %99 = vmatpush1.msra.mxu0 0.0
    %100 = vmatprep.subr.mxu0 0.0
    %101 = vmatpush1.msra.mxu0 0.0
    %102 = vmatprep.subr.mxu0 0.0
    %103 = vmatpush1.msra.mxu0 0.0
    %104 = vmatprep.subr.mxu0 0.0
    %105 = vmatpush1.msra.mxu0 0.0
    %106 = vmatprep.subr.mxu0 0.0
    %107 = vmatpush1.msra.mxu0 0.0
    %108 = vmatprep.subr.mxu0 0.0
    %109 = vmatpush1.msra.mxu0 0.0
    %110 = vmatprep.subr.mxu0 0.0
    %111 = vmatpush1.msra.mxu0 0.0
    %112 = vmatprep.subr.mxu0 0.0
    %113 = vmatpush1.msra.mxu0 0.0
    %114 = vmatprep.subr.mxu0 0.0
    %115 = vmatpush1.msra.mxu0 0.0
    %116 = vmatprep.subr.mxu0 0.0
    %117 = vmatpush1.msra.mxu0 0.0
    %118 = vmatprep.subr.mxu0 0.0
    %119 = vmatpush1.msra.mxu0 0.0
    %120 = vmatprep.subr.mxu0 0.0
    %121 = vmatpush1.msra.mxu0 0.0
    %122 = vmatprep.subr.mxu0 0.0
    %123 = vmatpush1.msra.mxu0 0.0
    %124 = vmatprep.subr.mxu0 0.0
    %125 = vmatpush1.msra.mxu0 0.0
    %126 = vmatprep.subr.mxu0 0.0
    %127 = vmatpush1.msra.mxu0 0.0
    %128 = vmatprep.subr.mxu0 0.0
    %129 = vmatpush1.msra.mxu0 0.0
    %130 = vmatprep.subr.mxu0 0.0
    %131 = vmatpush1.msra.mxu0 0.0
    %132 = vmatprep.subr.mxu0 0.0
    %133 = vmatpush1.msra.mxu0 0.0
    %134 = vmatprep.subr.mxu0 0.0
    %135 = vmatpush1.msra.mxu0 0.0
    %136 = vmatprep.subr.mxu0 0.0
    %137 = vmatpush1.msra.mxu0 0.0
    %138 = vmatprep.subr.mxu0 0.0
    %139 = vmatpush1.msra.mxu0 0.0
    %140 = vmatprep.mubr.f32.mxu0 0.0
    %141 = vmatmul.mubr.f32.gmra.mrb[0].mxu0 %v57
    %v142 = vpop.f32.mrb[0].mxu0
    %v143 = vadd.f32 %v53, %v142
    %v144 = vpop.f32.mrb[0].mxu0
    %v145 = vadd.f32 %v53, %v144
    %146 = vdwg.mxu0
    %147 = vmatprep.subr.mxu0 %v66
    %148 = vmatpush1.msra.mxu0 %v64
    %149 = vmatprep.subr.mxu0 0.0
    %150 = vmatpush1.msra.mxu0 0.0
    %151 = vmatprep.subr.mxu0 0.0
    %152 = vmatpush1.msra.mxu0 0.0
    %153 = vmatprep.subr.mxu0 0.0
    %154 = vmatpush1.msra.mxu0 0.0
    %155 = vmatprep.subr.mxu0 0.0
    %156 = vmatpush1.msra.mxu0 0.0
    %157 = vmatprep.subr.mxu0 0.0
    %158 = vmatpush1.msra.mxu0 0.0
    %159 = vmatprep.subr.mxu0 0.0
    %160 = vmatpush1.msra.mxu0 0.0
    %161 = vmatprep.subr.mxu0 0.0
    %162 = vmatpush1.msra.mxu0 0.0
    %163 = vmatprep.subr.mxu0 0.0
    %164 = vmatpush1.msra.mxu0 0.0
    %165 = vmatprep.subr.mxu0 0.0
    %166 = vmatpush1.msra.mxu0 0.0
    %167 = vmatprep.subr.mxu0 0.0
    %168 = vmatpush1.msra.mxu0 0.0
    %169 = vmatprep.subr.mxu0 0.0
    %170 = vmatpush1.msra.mxu0 0.0
    %171 = vmatprep.subr.mxu0 0.0
    %172 = vmatpush1.msra.mxu0 0.0
    %173 = vmatprep.subr.mxu0 0.0
    %174 = vmatpush1.msra.mxu0 0.0
    %175 = vmatprep.subr.mxu0 0.0
    %176 = vmatpush1.msra.mxu0 0.0
    %177 = vmatprep.subr.mxu0 0.0
    %178 = vmatpush1.msra.mxu0 0.0
    %179 = vmatprep.subr.mxu0 0.0
    %180 = vmatpush1.msra.mxu0 0.0
    %181 = vmatprep.subr.mxu0 0.0
    %182 = vmatpush1.msra.mxu0 0.0
    %183 = vmatprep.subr.mxu0 0.0
    %184 = vmatpush1.msra.mxu0 0.0
    %185 = vmatprep.subr.mxu0 0.0
    %186 = vmatpush1.msra.mxu0 0.0
    %187 = vmatprep.subr.mxu0 0.0
    %188 = vmatpush1.msra.mxu0 0.0
    %189 = vmatprep.subr.mxu0 0.0
    %190 = vmatpush1.msra.mxu0 0.0
    %191 = vmatprep.subr.mxu0 0.0
    %192 = vmatpush1.msra.mxu0 0.0
    %193 = vmatprep.subr.mxu0 0.0
    %194 = vmatpush1.msra.mxu0 0.0
    %195 = vmatprep.subr.mxu0 0.0
    %196 = vmatpush1.msra.mxu0 0.0
    %197 = vmatprep.subr.mxu0 0.0
    %198 = vmatpush1.msra.mxu0 0.0
    %199 = vmatprep.subr.mxu0 0.0
    %200 = vmatpush1.msra.mxu0 0.0
    %201 = vmatprep.subr.mxu0 0.0
    %202 = vmatpush1.msra.mxu0 0.0
    %203 = vmatprep.subr.mxu0 0.0
    %204 = vmatpush1.msra.mxu0 0.0
    %205 = vmatprep.subr.mxu0 0.0
    %206 = vmatpush1.msra.mxu0 0.0
    %207 = vmatprep.subr.mxu0 0.0
    %208 = vmatpush1.msra.mxu0 0.0
    %209 = vmatprep.subr.mxu0 0.0
    %210 = vmatpush1.msra.mxu0 0.0
    %211 = vmatprep.mubr.f32.mxu0 0.0
    %212 = vmatmul.mubr.f32.gmra.mrb[0].mxu0 %v57
    %v213 = vpop.f32.mrb[0].mxu0
    %v214 = vadd.f32 %v53, %v213
    %v215 = vpop.f32.mrb[0].mxu0
    %v216 = vadd.f32 %v53, %v215
    %217 = vdwg.mxu0
    %218 = vmatprep.subr.mxu0 %v70
    %219 = vmatpush1.msra.mxu0 %v68
    %220 = vmatprep.subr.mxu0 0.0
    %221 = vmatpush1.msra.mxu0 0.0
    %222 = vmatprep.subr.mxu0 0.0
    %223 = vmatpush1.msra.mxu0 0.0
    %224 = vmatprep.subr.mxu0 0.0
    %225 = vmatpush1.msra.mxu0 0.0
    %226 = vmatprep.subr.mxu0 0.0
    %227 = vmatpush1.msra.mxu0 0.0
    %228 = vmatprep.subr.mxu0 0.0
    %229 = vmatpush1.msra.mxu0 0.0
    %230 = vmatprep.subr.mxu0 0.0
    %231 = vmatpush1.msra.mxu0 0.0
    %232 = vmatprep.subr.mxu0 0.0
    %233 = vmatpush1.msra.mxu0 0.0
    %234 = vmatprep.subr.mxu0 0.0
    %235 = vmatpush1.msra.mxu0 0.0
    %236 = vmatprep.subr.mxu0 0.0
    %237 = vmatpush1.msra.mxu0 0.0
    %238 = vmatprep.subr.mxu0 0.0
    %239 = vmatpush1.msra.mxu0 0.0
    %240 = vmatprep.subr.mxu0 0.0
    %241 = vmatpush1.msra.mxu0 0.0
    %242 = vmatprep.subr.mxu0 0.0
    %243 = vmatpush1.msra.mxu0 0.0
    %244 = vmatprep.subr.mxu0 0.0
    %245 = vmatpush1.msra.mxu0 0.0
    %246 = vmatprep.subr.mxu0 0.0
    %247 = vmatpush1.msra.mxu0 0.0
    %248 = vmatprep.subr.mxu0 0.0
    %249 = vmatpush1.msra.mxu0 0.0
    %250 = vmatprep.subr.mxu0 0.0
    %251 = vmatpush1.msra.mxu0 0.0
    %252 = vmatprep.subr.mxu0 0.0
    %253 = vmatpush1.msra.mxu0 0.0
    %254 = vmatprep.subr.mxu0 0.0
    %255 = vmatpush1.msra.mxu0 0.0
    %256 = vmatprep.subr.mxu0 0.0
    %257 = vmatpush1.msra.mxu0 0.0
    %258 = vmatprep.subr.mxu0 0.0
    %259 = vmatpush1.msra.mxu0 0.0
    %260 = vmatprep.subr.mxu0 0.0
    %261 = vmatpush1.msra.mxu0 0.0
    %262 = vmatprep.subr.mxu0 0.0
    %263 = vmatpush1.msra.mxu0 0.0
    %264 = vmatprep.subr.mxu0 0.0
    %265 = vmatpush1.msra.mxu0 0.0
    %266 = vmatprep.subr.mxu0 0.0
    %267 = vmatpush1.msra.mxu0 0.0
    %268 = vmatprep.subr.mxu0 0.0
    %269 = vmatpush1.msra.mxu0 0.0
    %270 = vmatprep.subr.mxu0 0.0
    %271 = vmatpush1.msra.mxu0 0.0
    %272 = vmatprep.subr.mxu0 0.0
    %273 = vmatpush1.msra.mxu0 0.0
    %274 = vmatprep.subr.mxu0 0.0
    %275 = vmatpush1.msra.mxu0 0.0
    %276 = vmatprep.subr.mxu0 0.0
    %277 = vmatpush1.msra.mxu0 0.0
    %278 = vmatprep.subr.mxu0 0.0
    %279 = vmatpush1.msra.mxu0 0.0
    %280 = vmatprep.subr.mxu0 0.0
    %281 = vmatpush1.msra.mxu0 0.0
    %282 = vmatprep.mubr.f32.mxu0 0.0
    %283 = vmatmul.mubr.f32.gmra.mrb[0].mxu0 %v57
    %v284 = vpop.f32.mrb[0].mxu0
    %v285 = vadd.f32 %v53, %v284
    %v286 = vpop.f32.mrb[0].mxu0
    %v287 = vadd.f32 %v53, %v286
    %288 = vdwg.mxu0
    %289 = vmatprep.subr.mxu0 %v74
    %290 = vmatpush1.msra.mxu0 %v72
    %291 = vmatprep.subr.mxu0 0.0
    %292 = vmatpush1.msra.mxu0 0.0
    %293 = vmatprep.subr.mxu0 0.0
    %294 = vmatpush1.msra.mxu0 0.0
    %295 = vmatprep.subr.mxu0 0.0
    %296 = vmatpush1.msra.mxu0 0.0
    %297 = vmatprep.subr.mxu0 0.0
    %298 = vmatpush1.msra.mxu0 0.0
    %299 = vmatprep.subr.mxu0 0.0
    %300 = vmatpush1.msra.mxu0 0.0
    %301 = vmatprep.subr.mxu0 0.0
    %302 = vmatpush1.msra.mxu0 0.0
    %303 = vmatprep.subr.mxu0 0.0
    %304 = vmatpush1.msra.mxu0 0.0
    %305 = vmatprep.subr.mxu0 0.0
    %306 = vmatpush1.msra.mxu0 0.0
    %307 = vmatprep.subr.mxu0 0.0
    %308 = vmatpush1.msra.mxu0 0.0
    %309 = vmatprep.subr.mxu0 0.0
    %310 = vmatpush1.msra.mxu0 0.0
    %311 = vmatprep.subr.mxu0 0.0
    %312 = vmatpush1.msra.mxu0 0.0
    %313 = vmatprep.subr.mxu0 0.0
    %314 = vmatpush1.msra.mxu0 0.0
    %315 = vmatprep.subr.mxu0 0.0
    %316 = vmatpush1.msra.mxu0 0.0
    %317 = vmatprep.subr.mxu0 0.0
    %318 = vmatpush1.msra.mxu0 0.0
    %319 = vmatprep.subr.mxu0 0.0
    %320 = vmatpush1.msra.mxu0 0.0
    %321 = vmatprep.subr.mxu0 0.0
    %322 = vmatpush1.msra.mxu0 0.0
    %323 = vmatprep.subr.mxu0 0.0
    %324 = vmatpush1.msra.mxu0 0.0
    %325 = vmatprep.subr.mxu0 0.0
    %326 = vmatpush1.msra.mxu0 0.0
    %327 = vmatprep.subr.mxu0 0.0
    %328 = vmatpush1.msra.mxu0 0.0
    %329 = vmatprep.subr.mxu0 0.0
    %330 = vmatpush1.msra.mxu0 0.0
    %331 = vmatprep.subr.mxu0 0.0
    %332 = vmatpush1.msra.mxu0 0.0
    %333 = vmatprep.subr.mxu0 0.0
    %334 = vmatpush1.msra.mxu0 0.0
    %335 = vmatprep.subr.mxu0 0.0
    %336 = vmatpush1.msra.mxu0 0.0
    %337 = vmatprep.subr.mxu0 0.0
    %338 = vmatpush1.msra.mxu0 0.0
    %339 = vmatprep.subr.mxu0 0.0
    %340 = vmatpush1.msra.mxu0 0.0
    %341 = vmatprep.subr.mxu0 0.0
    %342 = vmatpush1.msra.mxu0 0.0
    %343 = vmatprep.subr.mxu0 0.0
    %344 = vmatpush1.msra.mxu0 0.0
    %345 = vmatprep.subr.mxu0 0.0
    %346 = vmatpush1.msra.mxu0 0.0
    %347 = vmatprep.subr.mxu0 0.0
    %348 = vmatpush1.msra.mxu0 0.0
    %349 = vmatprep.subr.mxu0 0.0
    %350 = vmatpush1.msra.mxu0 0.0
    %351 = vmatprep.subr.mxu0 0.0
    %352 = vmatpush1.msra.mxu0 0.0
    %353 = vmatprep.mubr.f32.mxu0 0.0
    %354 = vmatmul.mubr.f32.gmra.mrb[0].mxu0 %v57
    %v355 = vpop.f32.mrb[0].mxu0
    %v356 = vadd.f32 %v53, %v355
    %v357 = vpop.f32.mrb[0].mxu0
    %v358 = vadd.f32 %v53, %v357
    %359 = vdwg.mxu0
    %v360 = vmax.f32 %v143, 0.0
    %v361 = vmax.f32 %v145, 0.0
    %v362 = vmax.f32 %v214, 0.0
    %v363 = vmax.f32 %v216, 0.0
    %v364 = vmax.f32 %v285, 0.0
    %v365 = vmax.f32 %v287, 0.0
    %v366 = vmax.f32 %v356, 0.0
    %v367 = vmax.f32 %v358, 0.0
    %v368 = vld [vmem:[%s4] sm:$0xff]
    %v369 = vld [vmem:[%s5] sm:$0xff]
    %371 = vset.pattern.permute.xlu0 0
    %372 = vperm.xlu0 %371, %v369
    %v373 = vpop.permute.xlu0 %372
    %vm375 = vcmask 64512
    %v377 = vsel %vm375, %v368, 0
    %379 = vmatprep.subr.mxu0 %v361
    %380 = vmatpush1.msra.mxu0 %v360
    %381 = vmatprep.subr.mxu0 0.0
    %382 = vmatpush1.msra.mxu0 0.0
    %383 = vmatprep.subr.mxu0 0.0
    %384 = vmatpush1.msra.mxu0 0.0
    %385 = vmatprep.subr.mxu0 0.0
    %386 = vmatpush1.msra.mxu0 0.0
    %387 = vmatprep.subr.mxu0 0.0
    %388 = vmatpush1.msra.mxu0 0.0
    %389 = vmatprep.subr.mxu0 0.0
    %390 = vmatpush1.msra.mxu0 0.0
    %391 = vmatprep.subr.mxu0 0.0
    %392 = vmatpush1.msra.mxu0 0.0
    %393 = vmatprep.subr.mxu0 0.0
    %394 = vmatpush1.msra.mxu0 0.0
    %395 = vmatprep.subr.mxu0 0.0
    %396 = vmatpush1.msra.mxu0 0.0
    %397 = vmatprep.subr.mxu0 0.0
    %398 = vmatpush1.msra.mxu0 0.0
    %399 = vmatprep.subr.mxu0 0.0
    %400 = vmatpush1.msra.mxu0 0.0
    %401 = vmatprep.subr.mxu0 0.0
    %402 = vmatpush1.msra.mxu0 0.0
    %403 = vmatprep.subr.mxu0 0.0
    %404 = vmatpush1.msra.mxu0 0.0
    %405 = vmatprep.subr.mxu0 0.0
    %406 = vmatpush1.msra.mxu0 0.0
    %407 = vmatprep.subr.mxu0 0.0
    %408 = vmatpush1.msra.mxu0 0.0
    %409 = vmatprep.subr.mxu0 0.0
    %410 = vmatpush1.msra.mxu0 0.0
    %411 = vmatprep.subr.mxu0 0.0
    %412 = vmatpush1.msra.mxu0 0.0
    %413 = vmatprep.subr.mxu0 0.0
    %414 = vmatpush1.msra.mxu0 0.0
    %415 = vmatprep.subr.mxu0 0.0
    %416 = vmatpush1.msra.mxu0 0.0
    %417 = vmatprep.subr.mxu0 0.0
    %418 = vmatpush1.msra.mxu0 0.0
    %419 = vmatprep.subr.mxu0 0.0
    %420 = vmatpush1.msra.mxu0 0.0
    %421 = vmatprep.subr.mxu0 0.0
    %422 = vmatpush1.msra.mxu0 0.0
    %423 = vmatprep.subr.mxu0 0.0
    %424 = vmatpush1.msra.mxu0 0.0
    %425 = vmatprep.subr.mxu0 0.0
    %426 = vmatpush1.msra.mxu0 0.0
    %427 = vmatprep.subr.mxu0 0.0
    %428 = vmatpush1.msra.mxu0 0.0
    %429 = vmatprep.subr.mxu0 0.0
    %430 = vmatpush1.msra.mxu0 0.0
    %431 = vmatprep.subr.mxu0 0.0
    %432 = vmatpush1.msra.mxu0 0.0
    %433 = vmatprep.subr.mxu0 0.0
    %434 = vmatpush1.msra.mxu0 0.0
    %435 = vmatprep.subr.mxu0 0.0
    %436 = vmatpush1.msra.mxu0 0.0
    %437 = vmatprep.subr.mxu0 0.0
    %438 = vmatpush1.msra.mxu0 0.0
    %439 = vmatprep.subr.mxu0 0.0
    %440 = vmatpush1.msra.mxu0 0.0
    %441 = vmatprep.subr.mxu0 0.0
    %442 = vmatpush1.msra.mxu0 0.0
    %443 = vmatprep.mubr.f32.mxu0 0.0
    %444 = vmatmul.mubr.f32.gmra.mrb[0].mxu0 %v377
    %v445 = vpop.f32.mrb[0].mxu0
    %v446 = vadd.f32 %v373, %v445
    %v447 = vpop.f32.mrb[0].mxu0
    %v448 = vadd.f32 %v373, %v447
    %449 = vdwg.mxu0
    %450 = vmatprep.subr.mxu0 %v363
    %451 = vmatpush1.msra.mxu0 %v362
    %452 = vmatprep.subr.mxu0 0.0
    %453 = vmatpush1.msra.mxu0 0.0
    %454 = vmatprep.subr.mxu0 0.0
    %455 = vmatpush1.msra.mxu0 0.0
    %456 = vmatprep.subr.mxu0 0.0
    %457 = vmatpush1.msra.mxu0 0.0
    %458 = vmatprep.subr.mxu0 0.0
    %459 = vmatpush1.msra.mxu0 0.0
    %460 = vmatprep.subr.mxu0 0.0
    %461 = vmatpush1.msra.mxu0 0.0
    %462 = vmatprep.subr.mxu0 0.0
    %463 = vmatpush1.msra.mxu0 0.0
    %464 = vmatprep.subr.mxu0 0.0
    %465 = vmatpush1.msra.mxu0 0.0
    %466 = vmatprep.subr.mxu0 0.0
    %467 = vmatpush1.msra.mxu0 0.0
    %468 = vmatprep.subr.mxu0 0.0
    %469 = vmatpush1.msra.mxu0 0.0
    %470 = vmatprep.subr.mxu0 0.0
    %471 = vmatpush1.msra.mxu0 0.0
    %472 = vmatprep.subr.mxu0 0.0
    %473 = vmatpush1.msra.mxu0 0.0
    %474 = vmatprep.subr.mxu0 0.0
    %475 = vmatpush1.msra.mxu0 0.0
    %476 = vmatprep.subr.mxu0 0.0
    %477 = vmatpush1.msra.mxu0 0.0
    %478 = vmatprep.subr.mxu0 0.0
    %479 = vmatpush1.msra.mxu0 0.0
    %480 = vmatprep.subr.mxu0 0.0
    %481 = vmatpush1.msra.mxu0 0.0
    %482 = vmatprep.subr.mxu0 0.0
    %483 = vmatpush1.msra.mxu0 0.0
    %484 = vmatprep.subr.mxu0 0.0
    %485 = vmatpush1.msra.mxu0 0.0
    %486 = vmatprep.subr.mxu0 0.0
    %487 = vmatpush1.msra.mxu0 0.0
    %488 = vmatprep.subr.mxu0 0.0
    %489 = vmatpush1.msra.mxu0 0.0
    %490 = vmatprep.subr.mxu0 0.0
    %491 = vmatpush1.msra.mxu0 0.0
    %492 = vmatprep.subr.mxu0 0.0
    %493 = vmatpush1.msra.mxu0 0.0
    %494 = vmatprep.subr.mxu0 0.0
    %495 = vmatpush1.msra.mxu0 0.0
    %496 = vmatprep.subr.mxu0 0.0
    %497 = vmatpush1.msra.mxu0 0.0
    %498 = vmatprep.subr.mxu0 0.0
    %499 = vmatpush1.msra.mxu0 0.0
    %500 = vmatprep.subr.mxu0 0.0
    %501 = vmatpush1.msra.mxu0 0.0
    %502 = vmatprep.subr.mxu0 0.0
    %503 = vmatpush1.msra.mxu0 0.0
    %504 = vmatprep.subr.mxu0 0.0
    %505 = vmatpush1.msra.mxu0 0.0
    %506 = vmatprep.subr.mxu0 0.0
    %507 = vmatpush1.msra.mxu0 0.0
    %508 = vmatprep.subr.mxu0 0.0
    %509 = vmatpush1.msra.mxu0 0.0
    %510 = vmatprep.subr.mxu0 0.0
    %511 = vmatpush1.msra.mxu0 0.0
    %512 = vmatprep.subr.mxu0 0.0
    %513 = vmatpush1.msra.mxu0 0.0
    %514 = vmatprep.mubr.f32.mxu0 0.0
    %515 = vmatmul.mubr.f32.gmra.mrb[0].mxu0 %v377
    %v516 = vpop.f32.mrb[0].mxu0
    %v517 = vadd.f32 %v373, %v516
    %v518 = vpop.f32.mrb[0].mxu0
    %v519 = vadd.f32 %v373, %v518
    %520 = vdwg.mxu0
    %521 = vmatprep.subr.mxu0 %v365
    %522 = vmatpush1.msra.mxu0 %v364
    %523 = vmatprep.subr.mxu0 0.0
    %524 = vmatpush1.msra.mxu0 0.0
    %525 = vmatprep.subr.mxu0 0.0
    %526 = vmatpush1.msra.mxu0 0.0
    %527 = vmatprep.subr.mxu0 0.0
    %528 = vmatpush1.msra.mxu0 0.0
    %529 = vmatprep.subr.mxu0 0.0
    %530 = vmatpush1.msra.mxu0 0.0
    %531 = vmatprep.subr.mxu0 0.0
    %532 = vmatpush1.msra.mxu0 0.0
    %533 = vmatprep.subr.mxu0 0.0
    %534 = vmatpush1.msra.mxu0 0.0
    %535 = vmatprep.subr.mxu0 0.0
    %536 = vmatpush1.msra.mxu0 0.0
    %537 = vmatprep.subr.mxu0 0.0
    %538 = vmatpush1.msra.mxu0 0.0
    %539 = vmatprep.subr.mxu0 0.0
    %540 = vmatpush1.msra.mxu0 0.0
    %541 = vmatprep.subr.mxu0 0.0
    %542 = vmatpush1.msra.mxu0 0.0
    %543 = vmatprep.subr.mxu0 0.0
    %544 = vmatpush1.msra.mxu0 0.0
    %545 = vmatprep.subr.mxu0 0.0
    %546 = vmatpush1.msra.mxu0 0.0
    %547 = vmatprep.subr.mxu0 0.0
    %548 = vmatpush1.msra.mxu0 0.0
    %549 = vmatprep.subr.mxu0 0.0
    %550 = vmatpush1.msra.mxu0 0.0
    %551 = vmatprep.subr.mxu0 0.0
    %552 = vmatpush1.msra.mxu0 0.0
    %553 = vmatprep.subr.mxu0 0.0
    %554 = vmatpush1.msra.mxu0 0.0
    %555 = vmatprep.subr.mxu0 0.0
    %556 = vmatpush1.msra.mxu0 0.0
    %557 = vmatprep.subr.mxu0 0.0
    %558 = vmatpush1.msra.mxu0 0.0
    %559 = vmatprep.subr.mxu0 0.0
    %560 = vmatpush1.msra.mxu0 0.0
    %561 = vmatprep.subr.mxu0 0.0
    %562 = vmatpush1.msra.mxu0 0.0
    %563 = vmatprep.subr.mxu0 0.0
    %564 = vmatpush1.msra.mxu0 0.0
    %565 = vmatprep.subr.mxu0 0.0
    %566 = vmatpush1.msra.mxu0 0.0
    %567 = vmatprep.subr.mxu0 0.0
    %568 = vmatpush1.msra.mxu0 0.0
    %569 = vmatprep.subr.mxu0 0.0
    %570 = vmatpush1.msra.mxu0 0.0
    %571 = vmatprep.subr.mxu0 0.0
    %572 = vmatpush1.msra.mxu0 0.0
    %573 = vmatprep.subr.mxu0 0.0
    %574 = vmatpush1.msra.mxu0 0.0
    %575 = vmatprep.subr.mxu0 0.0
    %576 = vmatpush1.msra.mxu0 0.0
    %577 = vmatprep.subr.mxu0 0.0
    %578 = vmatpush1.msra.mxu0 0.0
    %579 = vmatprep.subr.mxu0 0.0
    %580 = vmatpush1.msra.mxu0 0.0
    %581 = vmatprep.subr.mxu0 0.0
    %582 = vmatpush1.msra.mxu0 0.0
    %583 = vmatprep.subr.mxu0 0.0
    %584 = vmatpush1.msra.mxu0 0.0
    %585 = vmatprep.mubr.f32.mxu0 0.0
    %586 = vmatmul.mubr.f32.gmra.mrb[0].mxu0 %v377
    %v587 = vpop.f32.mrb[0].mxu0
    %v588 = vadd.f32 %v373, %v587
    %v589 = vpop.f32.mrb[0].mxu0
    %v590 = vadd.f32 %v373, %v589
    %591 = vdwg.mxu0
    %592 = vmatprep.subr.mxu0 %v367
    %593 = vmatpush1.msra.mxu0 %v366
    %594 = vmatprep.subr.mxu0 0.0
    %595 = vmatpush1.msra.mxu0 0.0
    %596 = vmatprep.subr.mxu0 0.0
    %597 = vmatpush1.msra.mxu0 0.0
    %598 = vmatprep.subr.mxu0 0.0
    %599 = vmatpush1.msra.mxu0 0.0
    %600 = vmatprep.subr.mxu0 0.0
    %601 = vmatpush1.msra.mxu0 0.0
    %602 = vmatprep.subr.mxu0 0.0
    %603 = vmatpush1.msra.mxu0 0.0
    %604 = vmatprep.subr.mxu0 0.0
    %605 = vmatpush1.msra.mxu0 0.0
    %606 = vmatprep.subr.mxu0 0.0
    %607 = vmatpush1.msra.mxu0 0.0
    %608 = vmatprep.subr.mxu0 0.0
    %609 = vmatpush1.msra.mxu0 0.0
    %610 = vmatprep.subr.mxu0 0.0
    %611 = vmatpush1.msra.mxu0 0.0
    %612 = vmatprep.subr.mxu0 0.0
    %613 = vmatpush1.msra.mxu0 0.0
    %614 = vmatprep.subr.mxu0 0.0
    %615 = vmatpush1.msra.mxu0 0.0
    %616 = vmatprep.subr.mxu0 0.0
    %617 = vmatpush1.msra.mxu0 0.0
    %618 = vmatprep.subr.mxu0 0.0
    %619 = vmatpush1.msra.mxu0 0.0
    %620 = vmatprep.subr.mxu0 0.0
    %621 = vmatpush1.msra.mxu0 0.0
    %622 = vmatprep.subr.mxu0 0.0
    %623 = vmatpush1.msra.mxu0 0.0
    %624 = vmatprep.subr.mxu0 0.0
    %625 = vmatpush1.msra.mxu0 0.0
    %626 = vmatprep.subr.mxu0 0.0
    %627 = vmatpush1.msra.mxu0 0.0
    %628 = vmatprep.subr.mxu0 0.0
    %629 = vmatpush1.msra.mxu0 0.0
    %630 = vmatprep.subr.mxu0 0.0
    %631 = vmatpush1.msra.mxu0 0.0
    %632 = vmatprep.subr.mxu0 0.0
    %633 = vmatpush1.msra.mxu0 0.0
    %634 = vmatprep.subr.mxu0 0.0
    %635 = vmatpush1.msra.mxu0 0.0
    %636 = vmatprep.subr.mxu0 0.0
    %637 = vmatpush1.msra.mxu0 0.0
    %638 = vmatprep.subr.mxu0 0.0
    %639 = vmatpush1.msra.mxu0 0.0
    %640 = vmatprep.subr.mxu0 0.0
    %641 = vmatpush1.msra.mxu0 0.0
    %642 = vmatprep.subr.mxu0 0.0
    %643 = vmatpush1.msra.mxu0 0.0
    %644 = vmatprep.subr.mxu0 0.0
    %645 = vmatpush1.msra.mxu0 0.0
    %646 = vmatprep.subr.mxu0 0.0
    %647 = vmatpush1.msra.mxu0 0.0
    %648 = vmatprep.subr.mxu0 0.0
    %649 = vmatpush1.msra.mxu0 0.0
    %650 = vmatprep.subr.mxu0 0.0
    %651 = vmatpush1.msra.mxu0 0.0
    %652 = vmatprep.subr.mxu0 0.0
    %653 = vmatpush1.msra.mxu0 0.0
    %654 = vmatprep.subr.mxu0 0.0
    %655 = vmatpush1.msra.mxu0 0.0
    %656 = vmatprep.mubr.f32.mxu0 0.0
    %657 = vmatmul.mubr.f32.gmra.mrb[0].mxu0 %v377
    %v658 = vpop.f32.mrb[0].mxu0
    %v659 = vadd.f32 %v373, %v658
    %v660 = vpop.f32.mrb[0].mxu0
    %v661 = vadd.f32 %v373, %v660
    %662 = vdwg.mxu0
    %v663 = vmax.f32 %v446, 0.0
    %v664 = vmax.f32 %v448, 0.0
    %v665 = vmax.f32 %v517, 0.0
    %v666 = vmax.f32 %v519, 0.0
    %v667 = vmax.f32 %v588, 0.0
    %v668 = vmax.f32 %v590, 0.0
    %v669 = vmax.f32 %v659, 0.0
    %v670 = vmax.f32 %v661, 0.0
    %v671 = vld [vmem:[%s6] sm:$0xf]
    %v672 = vld [vmem:[%s7] sm:$0xf]
    %674 = vset.pattern.permute.xlu0 0
    %675 = vperm.xlu0 %674, %v672
    %v676 = vpop.permute.xlu0 %675
    %v679 = vsel %vm375, %v671, 0
    %681 = vmatprep.subr.mxu0 %v664
    %682 = vmatpush1.msra.mxu0 %v663
    %683 = vmatprep.subr.mxu0 0.0
    %684 = vmatpush1.msra.mxu0 0.0
    %685 = vmatprep.subr.mxu0 0.0
    %686 = vmatpush1.msra.mxu0 0.0
    %687 = vmatprep.subr.mxu0 0.0
    %688 = vmatpush1.msra.mxu0 0.0
    %689 = vmatprep.subr.mxu0 0.0
    %690 = vmatpush1.msra.mxu0 0.0
    %691 = vmatprep.subr.mxu0 0.0
    %692 = vmatpush1.msra.mxu0 0.0
    %693 = vmatprep.subr.mxu0 0.0
    %694 = vmatpush1.msra.mxu0 0.0
    %695 = vmatprep.subr.mxu0 0.0
    %696 = vmatpush1.msra.mxu0 0.0
    %697 = vmatprep.subr.mxu0 0.0
    %698 = vmatpush1.msra.mxu0 0.0
    %699 = vmatprep.subr.mxu0 0.0
    %700 = vmatpush1.msra.mxu0 0.0
    %701 = vmatprep.subr.mxu0 0.0
    %702 = vmatpush1.msra.mxu0 0.0
    %703 = vmatprep.subr.mxu0 0.0
    %704 = vmatpush1.msra.mxu0 0.0
    %705 = vmatprep.subr.mxu0 0.0
    %706 = vmatpush1.msra.mxu0 0.0
    %707 = vmatprep.subr.mxu0 0.0
    %708 = vmatpush1.msra.mxu0 0.0
    %709 = vmatprep.subr.mxu0 0.0
    %710 = vmatpush1.msra.mxu0 0.0
    %711 = vmatprep.subr.mxu0 0.0
    %712 = vmatpush1.msra.mxu0 0.0
    %713 = vmatprep.subr.mxu0 0.0
    %714 = vmatpush1.msra.mxu0 0.0
    %715 = vmatprep.subr.mxu0 0.0
    %716 = vmatpush1.msra.mxu0 0.0
    %717 = vmatprep.subr.mxu0 0.0
    %718 = vmatpush1.msra.mxu0 0.0
    %719 = vmatprep.subr.mxu0 0.0
    %720 = vmatpush1.msra.mxu0 0.0
    %721 = vmatprep.subr.mxu0 0.0
    %722 = vmatpush1.msra.mxu0 0.0
    %723 = vmatprep.subr.mxu0 0.0
    %724 = vmatpush1.msra.mxu0 0.0
    %725 = vmatprep.subr.mxu0 0.0
    %726 = vmatpush1.msra.mxu0 0.0
    %727 = vmatprep.subr.mxu0 0.0
    %728 = vmatpush1.msra.mxu0 0.0
    %729 = vmatprep.subr.mxu0 0.0
    %730 = vmatpush1.msra.mxu0 0.0
    %731 = vmatprep.subr.mxu0 0.0
    %732 = vmatpush1.msra.mxu0 0.0
    %733 = vmatprep.subr.mxu0 0.0
    %734 = vmatpush1.msra.mxu0 0.0
    %735 = vmatprep.subr.mxu0 0.0
    %736 = vmatpush1.msra.mxu0 0.0
    %737 = vmatprep.subr.mxu0 0.0
    %738 = vmatpush1.msra.mxu0 0.0
    %739 = vmatprep.subr.mxu0 0.0
    %740 = vmatpush1.msra.mxu0 0.0
    %741 = vmatprep.subr.mxu0 0.0
    %742 = vmatpush1.msra.mxu0 0.0
    %743 = vmatprep.subr.mxu0 0.0
    %744 = vmatpush1.msra.mxu0 0.0
    %745 = vmatprep.mubr.f32.mxu0 0.0
    %746 = vmatmul.mubr.f32.gmra.mrb[0].mxu0 %v679
    %v747 = vpop.f32.mrb[0].mxu0
    %v748 = vadd.f32 %v676, %v747
    %v749 = vpop.f32.mrb[0].mxu0
    %v750 = vadd.f32 %v676, %v749
    %751 = vdwg.mxu0
    %752 = vmatprep.subr.mxu0 %v666
    %753 = vmatpush1.msra.mxu0 %v665
    %754 = vmatprep.subr.mxu0 0.0
    %755 = vmatpush1.msra.mxu0 0.0
    %756 = vmatprep.subr.mxu0 0.0
    %757 = vmatpush1.msra.mxu0 0.0
    %758 = vmatprep.subr.mxu0 0.0
    %759 = vmatpush1.msra.mxu0 0.0
    %760 = vmatprep.subr.mxu0 0.0
    %761 = vmatpush1.msra.mxu0 0.0
    %762 = vmatprep.subr.mxu0 0.0
    %763 = vmatpush1.msra.mxu0 0.0
    %764 = vmatprep.subr.mxu0 0.0
    %765 = vmatpush1.msra.mxu0 0.0
    %766 = vmatprep.subr.mxu0 0.0
    %767 = vmatpush1.msra.mxu0 0.0
    %768 = vmatprep.subr.mxu0 0.0
    %769 = vmatpush1.msra.mxu0 0.0
    %770 = vmatprep.subr.mxu0 0.0
    %771 = vmatpush1.msra.mxu0 0.0
    %772 = vmatprep.subr.mxu0 0.0
    %773 = vmatpush1.msra.mxu0 0.0
    %774 = vmatprep.subr.mxu0 0.0
    %775 = vmatpush1.msra.mxu0 0.0
    %776 = vmatprep.subr.mxu0 0.0
    %777 = vmatpush1.msra.mxu0 0.0
    %778 = vmatprep.subr.mxu0 0.0
    %779 = vmatpush1.msra.mxu0 0.0
    %780 = vmatprep.subr.mxu0 0.0
    %781 = vmatpush1.msra.mxu0 0.0
    %782 = vmatprep.subr.mxu0 0.0
    %783 = vmatpush1.msra.mxu0 0.0
    %784 = vmatprep.subr.mxu0 0.0
    %785 = vmatpush1.msra.mxu0 0.0
    %786 = vmatprep.subr.mxu0 0.0
    %787 = vmatpush1.msra.mxu0 0.0
    %788 = vmatprep.subr.mxu0 0.0
    %789 = vmatpush1.msra.mxu0 0.0
    %790 = vmatprep.subr.mxu0 0.0
    %791 = vmatpush1.msra.mxu0 0.0
    %792 = vmatprep.subr.mxu0 0.0
    %793 = vmatpush1.msra.mxu0 0.0
    %794 = vmatprep.subr.mxu0 0.0
    %795 = vmatpush1.msra.mxu0 0.0
    %796 = vmatprep.subr.mxu0 0.0
    %797 = vmatpush1.msra.mxu0 0.0
    %798 = vmatprep.subr.mxu0 0.0
    %799 = vmatpush1.msra.mxu0 0.0
    %800 = vmatprep.subr.mxu0 0.0
    %801 = vmatpush1.msra.mxu0 0.0
    %802 = vmatprep.subr.mxu0 0.0
    %803 = vmatpush1.msra.mxu0 0.0
    %804 = vmatprep.subr.mxu0 0.0
    %805 = vmatpush1.msra.mxu0 0.0
    %806 = vmatprep.subr.mxu0 0.0
    %807 = vmatpush1.msra.mxu0 0.0
    %808 = vmatprep.subr.mxu0 0.0
    %809 = vmatpush1.msra.mxu0 0.0
    %810 = vmatprep.subr.mxu0 0.0
    %811 = vmatpush1.msra.mxu0 0.0
    %812 = vmatprep.subr.mxu0 0.0
    %813 = vmatpush1.msra.mxu0 0.0
    %814 = vmatprep.subr.mxu0 0.0
    %815 = vmatpush1.msra.mxu0 0.0
    %816 = vmatprep.mubr.f32.mxu0 0.0
    %817 = vmatmul.mubr.f32.gmra.mrb[0].mxu0 %v679
    %v818 = vpop.f32.mrb[0].mxu0
    %v819 = vadd.f32 %v676, %v818
    %v820 = vpop.f32.mrb[0].mxu0
    %v821 = vadd.f32 %v676, %v820
    %822 = vdwg.mxu0
    %823 = vmatprep.subr.mxu0 %v668
    %824 = vmatpush1.msra.mxu0 %v667
    %825 = vmatprep.subr.mxu0 0.0
    %826 = vmatpush1.msra.mxu0 0.0
    %827 = vmatprep.subr.mxu0 0.0
    %828 = vmatpush1.msra.mxu0 0.0
    %829 = vmatprep.subr.mxu0 0.0
    %830 = vmatpush1.msra.mxu0 0.0
    %831 = vmatprep.subr.mxu0 0.0
    %832 = vmatpush1.msra.mxu0 0.0
    %833 = vmatprep.subr.mxu0 0.0
    %834 = vmatpush1.msra.mxu0 0.0
    %835 = vmatprep.subr.mxu0 0.0
    %836 = vmatpush1.msra.mxu0 0.0
    %837 = vmatprep.subr.mxu0 0.0
    %838 = vmatpush1.msra.mxu0 0.0
    %839 = vmatprep.subr.mxu0 0.0
    %840 = vmatpush1.msra.mxu0 0.0
    %841 = vmatprep.subr.mxu0 0.0
    %842 = vmatpush1.msra.mxu0 0.0
    %843 = vmatprep.subr.mxu0 0.0
    %844 = vmatpush1.msra.mxu0 0.0
    %845 = vmatprep.subr.mxu0 0.0
    %846 = vmatpush1.msra.mxu0 0.0
    %847 = vmatprep.subr.mxu0 0.0
    %848 = vmatpush1.msra.mxu0 0.0
    %849 = vmatprep.subr.mxu0 0.0
    %850 = vmatpush1.msra.mxu0 0.0
    %851 = vmatprep.subr.mxu0 0.0
    %852 = vmatpush1.msra.mxu0 0.0
    %853 = vmatprep.subr.mxu0 0.0
    %854 = vmatpush1.msra.mxu0 0.0
    %855 = vmatprep.subr.mxu0 0.0
    %856 = vmatpush1.msra.mxu0 0.0
    %857 = vmatprep.subr.mxu0 0.0
    %858 = vmatpush1.msra.mxu0 0.0
    %859 = vmatprep.subr.mxu0 0.0
    %860 = vmatpush1.msra.mxu0 0.0
    %861 = vmatprep.subr.mxu0 0.0
    %862 = vmatpush1.msra.mxu0 0.0
    %863 = vmatprep.subr.mxu0 0.0
    %864 = vmatpush1.msra.mxu0 0.0
    %865 = vmatprep.subr.mxu0 0.0
    %866 = vmatpush1.msra.mxu0 0.0
    %867 = vmatprep.subr.mxu0 0.0
    %868 = vmatpush1.msra.mxu0 0.0
    %869 = vmatprep.subr.mxu0 0.0
    %870 = vmatpush1.msra.mxu0 0.0
    %871 = vmatprep.subr.mxu0 0.0
    %872 = vmatpush1.msra.mxu0 0.0
    %873 = vmatprep.subr.mxu0 0.0
    %874 = vmatpush1.msra.mxu0 0.0
    %875 = vmatprep.subr.mxu0 0.0
    %876 = vmatpush1.msra.mxu0 0.0
    %877 = vmatprep.subr.mxu0 0.0
    %878 = vmatpush1.msra.mxu0 0.0
    %879 = vmatprep.subr.mxu0 0.0
    %880 = vmatpush1.msra.mxu0 0.0
    %881 = vmatprep.subr.mxu0 0.0
    %882 = vmatpush1.msra.mxu0 0.0
    %883 = vmatprep.subr.mxu0 0.0
    %884 = vmatpush1.msra.mxu0 0.0
    %885 = vmatprep.subr.mxu0 0.0
    %886 = vmatpush1.msra.mxu0 0.0
    %887 = vmatprep.mubr.f32.mxu0 0.0
    %888 = vmatmul.mubr.f32.gmra.mrb[0].mxu0 %v679
    %v889 = vpop.f32.mrb[0].mxu0
    %v890 = vadd.f32 %v676, %v889
    %v891 = vpop.f32.mrb[0].mxu0
    %v892 = vadd.f32 %v676, %v891
    %893 = vdwg.mxu0
    %894 = vmatprep.subr.mxu0 %v670
    %895 = vmatpush1.msra.mxu0 %v669
    %896 = vmatprep.subr.mxu0 0.0
    %897 = vmatpush1.msra.mxu0 0.0
    %898 = vmatprep.subr.mxu0 0.0
    %899 = vmatpush1.msra.mxu0 0.0
    %900 = vmatprep.subr.mxu0 0.0
    %901 = vmatpush1.msra.mxu0 0.0
    %902 = vmatprep.subr.mxu0 0.0
    %903 = vmatpush1.msra.mxu0 0.0
    %904 = vmatprep.subr.mxu0 0.0
    %905 = vmatpush1.msra.mxu0 0.0
    %906 = vmatprep.subr.mxu0 0.0
    %907 = vmatpush1.msra.mxu0 0.0
    %908 = vmatprep.subr.mxu0 0.0
    %909 = vmatpush1.msra.mxu0 0.0
    %910 = vmatprep.subr.mxu0 0.0
    %911 = vmatpush1.msra.mxu0 0.0
    %912 = vmatprep.subr.mxu0 0.0
    %913 = vmatpush1.msra.mxu0 0.0
    %914 = vmatprep.subr.mxu0 0.0
    %915 = vmatpush1.msra.mxu0 0.0
    %916 = vmatprep.subr.mxu0 0.0
    %917 = vmatpush1.msra.mxu0 0.0
    %918 = vmatprep.subr.mxu0 0.0
    %919 = vmatpush1.msra.mxu0 0.0
    %920 = vmatprep.subr.mxu0 0.0
    %921 = vmatpush1.msra.mxu0 0.0
    %922 = vmatprep.subr.mxu0 0.0
    %923 = vmatpush1.msra.mxu0 0.0
    %924 = vmatprep.subr.mxu0 0.0
    %925 = vmatpush1.msra.mxu0 0.0
    %926 = vmatprep.subr.mxu0 0.0
    %927 = vmatpush1.msra.mxu0 0.0
    %928 = vmatprep.subr.mxu0 0.0
    %929 = vmatpush1.msra.mxu0 0.0
    %930 = vmatprep.subr.mxu0 0.0
    %931 = vmatpush1.msra.mxu0 0.0
    %932 = vmatprep.subr.mxu0 0.0
    %933 = vmatpush1.msra.mxu0 0.0
    %934 = vmatprep.subr.mxu0 0.0
    %935 = vmatpush1.msra.mxu0 0.0
    %936 = vmatprep.subr.mxu0 0.0
    %937 = vmatpush1.msra.mxu0 0.0
    %938 = vmatprep.subr.mxu0 0.0
    %939 = vmatpush1.msra.mxu0 0.0
    %940 = vmatprep.subr.mxu0 0.0
    %941 = vmatpush1.msra.mxu0 0.0
    %942 = vmatprep.subr.mxu0 0.0
    %943 = vmatpush1.msra.mxu0 0.0
    %944 = vmatprep.subr.mxu0 0.0
    %945 = vmatpush1.msra.mxu0 0.0
    %946 = vmatprep.subr.mxu0 0.0
    %947 = vmatpush1.msra.mxu0 0.0
    %948 = vmatprep.subr.mxu0 0.0
    %949 = vmatpush1.msra.mxu0 0.0
    %950 = vmatprep.subr.mxu0 0.0
    %951 = vmatpush1.msra.mxu0 0.0
    %952 = vmatprep.subr.mxu0 0.0
    %953 = vmatpush1.msra.mxu0 0.0
    %954 = vmatprep.subr.mxu0 0.0
    %955 = vmatpush1.msra.mxu0 0.0
    %956 = vmatprep.subr.mxu0 0.0
    %957 = vmatpush1.msra.mxu0 0.0
    %958 = vmatprep.mubr.f32.mxu0 0.0
    %959 = vmatmul.mubr.f32.gmra.mrb[0].mxu0 %v679
    %v960 = vpop.f32.mrb[0].mxu0
    %v961 = vadd.f32 %v676, %v960
    %v962 = vpop.f32.mrb[0].mxu0
    %v963 = vadd.f32 %v676, %v962
    %964 = vdwg.mxu0
    %v965 = vsub.f32 3.1415927, %v748
    %v966 = vsub.f32 3.1415927, %v750
    %v967 = vsub.f32 3.1415927, %v819
    %v968 = vsub.f32 3.1415927, %v821
    %v969 = vsub.f32 3.1415927, %v890
    %v970 = vsub.f32 3.1415927, %v892
    %v971 = vsub.f32 3.1415927, %v961
    %v972 = vsub.f32 3.1415927, %v963
    %v973 = vld [vmem:[%s8] sm:$0xff]
    %v974 = vld [vmem:[%s8 + $0x8] sm:$0xff]
    %v975 = vld [vmem:[%s9] sm:$0xff]
    %v976 = vld [vmem:[%s9 + $0x8] sm:$0xff]
    %v985 = vrot.slane %v965, 1
    %v986 = vrot.slane %v966, 1
    %v987 = vrot.slane %v967, 1
    %v988 = vrot.slane %v968, 1
    %v989 = vrot.slane %v969, 1
    %v990 = vrot.slane %v970, 1
    %v991 = vrot.slane %v971, 1
    %v992 = vrot.slane %v972, 1
    %v1001 = vmul.f32 %v965, %v985
    %v1002 = vmul.f32 %v966, %v986
    %v1003 = vmul.f32 %v967, %v987
    %v1004 = vmul.f32 %v968, %v988
    %v1005 = vmul.f32 %v969, %v989
    %v1006 = vmul.f32 %v970, %v990
    %v1007 = vmul.f32 %v971, %v991
    %v1008 = vmul.f32 %v972, %v992
    %1010 = vset.pattern.permute.xlu0 0
    %1011 = vperm.xlu0 %1010, %v975
    %v1012 = vpop.permute.xlu0 %1011
    %1015 = vset.pattern.permute.xlu0 0
    %1016 = vperm.xlu0 %1015, %v976
    %v1017 = vpop.permute.xlu0 %1016
    %v1019 = vlaneseq
    %v1020 = vshrl.u32 %v1019, 7
    %v1021 = vsub.s32 0, %v1020
    %v1022 = vrot.slane %v1001, %v1021
    %v1023 = vlaneseq
    %v1024 = vshrl.u32 %v1023, 7
    %v1025 = vsub.s32 0, %v1024
    %v1026 = vrot.slane %v1002, %v1025
    %v1027 = vlaneseq
    %v1028 = vshrl.u32 %v1027, 7
    %v1029 = vsub.s32 0, %v1028
    %v1030 = vrot.slane %v1003, %v1029
    %v1031 = vlaneseq
    %v1032 = vshrl.u32 %v1031, 7
    %v1033 = vsub.s32 0, %v1032
    %v1034 = vrot.slane %v1004, %v1033
    %v1035 = vlaneseq
    %v1036 = vshrl.u32 %v1035, 7
    %v1037 = vsub.s32 0, %v1036
    %v1038 = vrot.slane %v1005, %v1037
    %v1039 = vlaneseq
    %v1040 = vshrl.u32 %v1039, 7
    %v1041 = vsub.s32 0, %v1040
    %v1042 = vrot.slane %v1006, %v1041
    %v1043 = vlaneseq
    %v1044 = vshrl.u32 %v1043, 7
    %v1045 = vsub.s32 0, %v1044
    %v1046 = vrot.slane %v1007, %v1045
    %v1047 = vlaneseq
    %v1048 = vshrl.u32 %v1047, 7
    %v1049 = vsub.s32 0, %v1048
    %v1050 = vrot.slane %v1008, %v1049
    %v1051 = vmul.f32 %v1012, %v1022
    %v1052 = vmul.f32 %v1012, %v1026
    %v1053 = vmul.f32 %v1012, %v1030
    %v1054 = vmul.f32 %v1012, %v1034
    %v1055 = vmul.f32 %v1012, %v1038
    %v1056 = vmul.f32 %v1012, %v1042
    %v1057 = vmul.f32 %v1012, %v1046
    %v1058 = vmul.f32 %v1012, %v1050
    %v1059 = vmul.f32 %v1017, %v1022
    %v1060 = vmul.f32 %v1017, %v1026
    %v1061 = vmul.f32 %v1017, %v1030
    %v1062 = vmul.f32 %v1017, %v1034
    %v1063 = vmul.f32 %v1017, %v1038
    %v1064 = vmul.f32 %v1017, %v1042
    %v1065 = vmul.f32 %v1017, %v1046
    %v1066 = vmul.f32 %v1017, %v1050
    %v1068 = vsel %vm55, %v973, 0
    %v1071 = vsel %vm55, %v974, 0
    %v1074 = vsel %vm59, %v748, 0
    %v1077 = vsel %vm59, %v750, 0
    %v1080 = vsel %vm59, %v819, 0
    %v1083 = vsel %vm59, %v821, 0
    %v1086 = vsel %vm59, %v890, 0
    %v1089 = vsel %vm59, %v892, 0
    %v1092 = vsel %vm59, %v961, 0
    %v1095 = vsel %vm59, %v963, 0
    %1097 = vmatprep.subr.mxu0 %v1077
    %1098 = vmatpush1.msra.mxu0 %v1074
    %1099 = vmatprep.subr.mxu0 0.0
    %1100 = vmatpush1.msra.mxu0 0.0
    %1101 = vmatprep.subr.mxu0 0.0
    %1102 = vmatpush1.msra.mxu0 0.0
    %1103 = vmatprep.subr.mxu0 0.0
    %1104 = vmatpush1.msra.mxu0 0.0
    %1105 = vmatprep.subr.mxu0 0.0
    %1106 = vmatpush1.msra.mxu0 0.0
    %1107 = vmatprep.subr.mxu0 0.0
    %1108 = vmatpush1.msra.mxu0 0.0
    %1109 = vmatprep.subr.mxu0 0.0
    %1110 = vmatpush1.msra.mxu0 0.0
    %1111 = vmatprep.subr.mxu0 0.0
    %1112 = vmatpush1.msra.mxu0 0.0
    %1113 = vmatprep.subr.mxu0 0.0
    %1114 = vmatpush1.msra.mxu0 0.0
    %1115 = vmatprep.subr.mxu0 0.0
    %1116 = vmatpush1.msra.mxu0 0.0
    %1117 = vmatprep.subr.mxu0 0.0
    %1118 = vmatpush1.msra.mxu0 0.0
    %1119 = vmatprep.subr.mxu0 0.0
    %1120 = vmatpush1.msra.mxu0 0.0
    %1121 = vmatprep.subr.mxu0 0.0
    %1122 = vmatpush1.msra.mxu0 0.0
    %1123 = vmatprep.subr.mxu0 0.0
    %1124 = vmatpush1.msra.mxu0 0.0
    %1125 = vmatprep.subr.mxu0 0.0
    %1126 = vmatpush1.msra.mxu0 0.0
    %1127 = vmatprep.subr.mxu0 0.0
    %1128 = vmatpush1.msra.mxu0 0.0
    %1129 = vmatprep.subr.mxu0 0.0
    %1130 = vmatpush1.msra.mxu0 0.0
    %1131 = vmatprep.subr.mxu0 0.0
    %1132 = vmatpush1.msra.mxu0 0.0
    %1133 = vmatprep.subr.mxu0 0.0
    %1134 = vmatpush1.msra.mxu0 0.0
    %1135 = vmatprep.subr.mxu0 0.0
    %1136 = vmatpush1.msra.mxu0 0.0
    %1137 = vmatprep.subr.mxu0 0.0
    %1138 = vmatpush1.msra.mxu0 0.0
    %1139 = vmatprep.subr.mxu0 0.0
    %1140 = vmatpush1.msra.mxu0 0.0
    %1141 = vmatprep.subr.mxu0 0.0
    %1142 = vmatpush1.msra.mxu0 0.0
    %1143 = vmatprep.subr.mxu0 0.0
    %1144 = vmatpush1.msra.mxu0 0.0
    %1145 = vmatprep.subr.mxu0 0.0
    %1146 = vmatpush1.msra.mxu0 0.0
    %1147 = vmatprep.subr.mxu0 0.0
    %1148 = vmatpush1.msra.mxu0 0.0
    %1149 = vmatprep.subr.mxu0 0.0
    %1150 = vmatpush1.msra.mxu0 0.0
    %1151 = vmatprep.subr.mxu0 0.0
    %1152 = vmatpush1.msra.mxu0 0.0
    %1153 = vmatprep.subr.mxu0 0.0
    %1154 = vmatpush1.msra.mxu0 0.0
    %1155 = vmatprep.subr.mxu0 0.0
    %1156 = vmatpush1.msra.mxu0 0.0
    %1157 = vmatprep.subr.mxu0 0.0
    %1158 = vmatpush1.msra.mxu0 0.0
    %1159 = vmatprep.subr.mxu0 0.0
    %1160 = vmatpush1.msra.mxu0 0.0
    %1161 = vmatprep.mubr.f32.mxu0 0.0
    %1162 = vmatmul.mubr.f32.gmra.mrb[0].mxu0 %v1068
    %v1163 = vpop.f32.mrb[0].mxu0
    %v1164 = vadd.f32 %v1051, %v1163
    %v1165 = vpop.f32.mrb[0].mxu0
    %v1166 = vadd.f32 %v1052, %v1165
    %1167 = vmatprep.mubr.f32.mxu0 0.0
    %1168 = vmatmul.mubr.f32.gmra.mrb[0].mxu0 %v1071
    %v1169 = vpop.f32.mrb[0].mxu0
    %v1170 = vadd.f32 %v1059, %v1169
    %v1171 = vpop.f32.mrb[0].mxu0
    %v1172 = vadd.f32 %v1060, %v1171
    %1173 = vdwg.mxu0
    %1174 = vmatprep.subr.mxu0 %v1083
    %1175 = vmatpush1.msra.mxu0 %v1080
    %1176 = vmatprep.subr.mxu0 0.0
    %1177 = vmatpush1.msra.mxu0 0.0
    %1178 = vmatprep.subr.mxu0 0.0
    %1179 = vmatpush1.msra.mxu0 0.0
    %1180 = vmatprep.subr.mxu0 0.0
    %1181 = vmatpush1.msra.mxu0 0.0
    %1182 = vmatprep.subr.mxu0 0.0
    %1183 = vmatpush1.msra.mxu0 0.0
    %1184 = vmatprep.subr.mxu0 0.0
    %1185 = vmatpush1.msra.mxu0 0.0
    %1186 = vmatprep.subr.mxu0 0.0
    %1187 = vmatpush1.msra.mxu0 0.0
    %1188 = vmatprep.subr.mxu0 0.0
    %1189 = vmatpush1.msra.mxu0 0.0
    %1190 = vmatprep.subr.mxu0 0.0
    %1191 = vmatpush1.msra.mxu0 0.0
    %1192 = vmatprep.subr.mxu0 0.0
    %1193 = vmatpush1.msra.mxu0 0.0
    %1194 = vmatprep.subr.mxu0 0.0
    %1195 = vmatpush1.msra.mxu0 0.0
    %1196 = vmatprep.subr.mxu0 0.0
    %1197 = vmatpush1.msra.mxu0 0.0
    %1198 = vmatprep.subr.mxu0 0.0
    %1199 = vmatpush1.msra.mxu0 0.0
    %1200 = vmatprep.subr.mxu0 0.0
    %1201 = vmatpush1.msra.mxu0 0.0
    %1202 = vmatprep.subr.mxu0 0.0
    %1203 = vmatpush1.msra.mxu0 0.0
    %1204 = vmatprep.subr.mxu0 0.0
    %1205 = vmatpush1.msra.mxu0 0.0
    %1206 = vmatprep.subr.mxu0 0.0
    %1207 = vmatpush1.msra.mxu0 0.0
    %1208 = vmatprep.subr.mxu0 0.0
    %1209 = vmatpush1.msra.mxu0 0.0
    %1210 = vmatprep.subr.mxu0 0.0
    %1211 = vmatpush1.msra.mxu0 0.0
    %1212 = vmatprep.subr.mxu0 0.0
    %1213 = vmatpush1.msra.mxu0 0.0
    %1214 = vmatprep.subr.mxu0 0.0
    %1215 = vmatpush1.msra.mxu0 0.0
    %1216 = vmatprep.subr.mxu0 0.0
    %1217 = vmatpush1.msra.mxu0 0.0
    %1218 = vmatprep.subr.mxu0 0.0
    %1219 = vmatpush1.msra.mxu0 0.0
    %1220 = vmatprep.subr.mxu0 0.0
    %1221 = vmatpush1.msra.mxu0 0.0
    %1222 = vmatprep.subr.mxu0 0.0
    %1223 = vmatpush1.msra.mxu0 0.0
    %1224 = vmatprep.subr.mxu0 0.0
    %1225 = vmatpush1.msra.mxu0 0.0
    %1226 = vmatprep.subr.mxu0 0.0
    %1227 = vmatpush1.msra.mxu0 0.0
    %1228 = vmatprep.subr.mxu0 0.0
    %1229 = vmatpush1.msra.mxu0 0.0
    %1230 = vmatprep.subr.mxu0 0.0
    %1231 = vmatpush1.msra.mxu0 0.0
    %1232 = vmatprep.subr.mxu0 0.0
    %1233 = vmatpush1.msra.mxu0 0.0
    %1234 = vmatprep.subr.mxu0 0.0
    %1235 = vmatpush1.msra.mxu0 0.0
    %1236 = vmatprep.subr.mxu0 0.0
    %1237 = vmatpush1.msra.mxu0 0.0
    %1238 = vmatprep.mubr.f32.mxu0 0.0
    %1239 = vmatmul.mubr.f32.gmra.mrb[0].mxu0 %v1068
    %v1240 = vpop.f32.mrb[0].mxu0
    %v1241 = vadd.f32 %v1053, %v1240
    %v1242 = vpop.f32.mrb[0].mxu0
    %v1243 = vadd.f32 %v1054, %v1242
    %1244 = vmatprep.mubr.f32.mxu0 0.0
    %1245 = vmatmul.mubr.f32.gmra.mrb[0].mxu0 %v1071
    %v1246 = vpop.f32.mrb[0].mxu0
    %v1247 = vadd.f32 %v1061, %v1246
    %v1248 = vpop.f32.mrb[0].mxu0
    %v1249 = vadd.f32 %v1062, %v1248
    %1250 = vdwg.mxu0
    %1251 = vmatprep.subr.mxu0 %v1089
    %1252 = vmatpush1.msra.mxu0 %v1086
    %1253 = vmatprep.subr.mxu0 0.0
    %1254 = vmatpush1.msra.mxu0 0.0
    %1255 = vmatprep.subr.mxu0 0.0
    %1256 = vmatpush1.msra.mxu0 0.0
    %1257 = vmatprep.subr.mxu0 0.0
    %1258 = vmatpush1.msra.mxu0 0.0
    %1259 = vmatprep.subr.mxu0 0.0
    %1260 = vmatpush1.msra.mxu0 0.0
    %1261 = vmatprep.subr.mxu0 0.0
    %1262 = vmatpush1.msra.mxu0 0.0
    %1263 = vmatprep.subr.mxu0 0.0
    %1264 = vmatpush1.msra.mxu0 0.0
    %1265 = vmatprep.subr.mxu0 0.0
    %1266 = vmatpush1.msra.mxu0 0.0
    %1267 = vmatprep.subr.mxu0 0.0
    %1268 = vmatpush1.msra.mxu0 0.0
    %1269 = vmatprep.subr.mxu0 0.0
    %1270 = vmatpush1.msra.mxu0 0.0
    %1271 = vmatprep.subr.mxu0 0.0
    %1272 = vmatpush1.msra.mxu0 0.0
    %1273 = vmatprep.subr.mxu0 0.0
    %1274 = vmatpush1.msra.mxu0 0.0
    %1275 = vmatprep.subr.mxu0 0.0
    %1276 = vmatpush1.msra.mxu0 0.0
    %1277 = vmatprep.subr.mxu0 0.0
    %1278 = vmatpush1.msra.mxu0 0.0
    %1279 = vmatprep.subr.mxu0 0.0
    %1280 = vmatpush1.msra.mxu0 0.0
    %1281 = vmatprep.subr.mxu0 0.0
    %1282 = vmatpush1.msra.mxu0 0.0
    %1283 = vmatprep.subr.mxu0 0.0
    %1284 = vmatpush1.msra.mxu0 0.0
    %1285 = vmatprep.subr.mxu0 0.0
    %1286 = vmatpush1.msra.mxu0 0.0
    %1287 = vmatprep.subr.mxu0 0.0
    %1288 = vmatpush1.msra.mxu0 0.0
    %1289 = vmatprep.subr.mxu0 0.0
    %1290 = vmatpush1.msra.mxu0 0.0
    %1291 = vmatprep.subr.mxu0 0.0
    %1292 = vmatpush1.msra.mxu0 0.0
    %1293 = vmatprep.subr.mxu0 0.0
    %1294 = vmatpush1.msra.mxu0 0.0
    %1295 = vmatprep.subr.mxu0 0.0
    %1296 = vmatpush1.msra.mxu0 0.0
    %1297 = vmatprep.subr.mxu0 0.0
    %1298 = vmatpush1.msra.mxu0 0.0
    %1299 = vmatprep.subr.mxu0 0.0
    %1300 = vmatpush1.msra.mxu0 0.0
    %1301 = vmatprep.subr.mxu0 0.0
    %1302 = vmatpush1.msra.mxu0 0.0
    %1303 = vmatprep.subr.mxu0 0.0
    %1304 = vmatpush1.msra.mxu0 0.0
    %1305 = vmatprep.subr.mxu0 0.0
    %1306 = vmatpush1.msra.mxu0 0.0
    %1307 = vmatprep.subr.mxu0 0.0
    %1308 = vmatpush1.msra.mxu0 0.0
    %1309 = vmatprep.subr.mxu0 0.0
    %1310 = vmatpush1.msra.mxu0 0.0
    %1311 = vmatprep.subr.mxu0 0.0
    %1312 = vmatpush1.msra.mxu0 0.0
    %1313 = vmatprep.subr.mxu0 0.0
    %1314 = vmatpush1.msra.mxu0 0.0
    %1315 = vmatprep.mubr.f32.mxu0 0.0
    %1316 = vmatmul.mubr.f32.gmra.mrb[0].mxu0 %v1068
    %v1317 = vpop.f32.mrb[0].mxu0
    %v1318 = vadd.f32 %v1055, %v1317
    %v1319 = vpop.f32.mrb[0].mxu0
    %v1320 = vadd.f32 %v1056, %v1319
    %1321 = vmatprep.mubr.f32.mxu0 0.0
    %1322 = vmatmul.mubr.f32.gmra.mrb[0].mxu0 %v1071
    %v1323 = vpop.f32.mrb[0].mxu0
    %v1324 = vadd.f32 %v1063, %v1323
    %v1325 = vpop.f32.mrb[0].mxu0
    %v1326 = vadd.f32 %v1064, %v1325
    %1327 = vdwg.mxu0
    %1328 = vmatprep.subr.mxu0 %v1095
    %1329 = vmatpush1.msra.mxu0 %v1092
    %1330 = vmatprep.subr.mxu0 0.0
    %1331 = vmatpush1.msra.mxu0 0.0
    %1332 = vmatprep.subr.mxu0 0.0
    %1333 = vmatpush1.msra.mxu0 0.0
    %1334 = vmatprep.subr.mxu0 0.0
    %1335 = vmatpush1.msra.mxu0 0.0
    %1336 = vmatprep.subr.mxu0 0.0
    %1337 = vmatpush1.msra.mxu0 0.0
    %1338 = vmatprep.subr.mxu0 0.0
    %1339 = vmatpush1.msra.mxu0 0.0
    %1340 = vmatprep.subr.mxu0 0.0
    %1341 = vmatpush1.msra.mxu0 0.0
    %1342 = vmatprep.subr.mxu0 0.0
    %1343 = vmatpush1.msra.mxu0 0.0
    %1344 = vmatprep.subr.mxu0 0.0
    %1345 = vmatpush1.msra.mxu0 0.0
    %1346 = vmatprep.subr.mxu0 0.0
    %1347 = vmatpush1.msra.mxu0 0.0
    %1348 = vmatprep.subr.mxu0 0.0
    %1349 = vmatpush1.msra.mxu0 0.0
    %1350 = vmatprep.subr.mxu0 0.0
    %1351 = vmatpush1.msra.mxu0 0.0
    %1352 = vmatprep.subr.mxu0 0.0
    %1353 = vmatpush1.msra.mxu0 0.0
    %1354 = vmatprep.subr.mxu0 0.0
    %1355 = vmatpush1.msra.mxu0 0.0
    %1356 = vmatprep.subr.mxu0 0.0
    %1357 = vmatpush1.msra.mxu0 0.0
    %1358 = vmatprep.subr.mxu0 0.0
    %1359 = vmatpush1.msra.mxu0 0.0
    %1360 = vmatprep.subr.mxu0 0.0
    %1361 = vmatpush1.msra.mxu0 0.0
    %1362 = vmatprep.subr.mxu0 0.0
    %1363 = vmatpush1.msra.mxu0 0.0
    %1364 = vmatprep.subr.mxu0 0.0
    %1365 = vmatpush1.msra.mxu0 0.0
    %1366 = vmatprep.subr.mxu0 0.0
    %1367 = vmatpush1.msra.mxu0 0.0
    %1368 = vmatprep.subr.mxu0 0.0
    %1369 = vmatpush1.msra.mxu0 0.0
    %1370 = vmatprep.subr.mxu0 0.0
    %1371 = vmatpush1.msra.mxu0 0.0
    %1372 = vmatprep.subr.mxu0 0.0
    %1373 = vmatpush1.msra.mxu0 0.0
    %1374 = vmatprep.subr.mxu0 0.0
    %1375 = vmatpush1.msra.mxu0 0.0
    %1376 = vmatprep.subr.mxu0 0.0
    %1377 = vmatpush1.msra.mxu0 0.0
    %1378 = vmatprep.subr.mxu0 0.0
    %1379 = vmatpush1.msra.mxu0 0.0
    %1380 = vmatprep.subr.mxu0 0.0
    %1381 = vmatpush1.msra.mxu0 0.0
    %1382 = vmatprep.subr.mxu0 0.0
    %1383 = vmatpush1.msra.mxu0 0.0
    %1384 = vmatprep.subr.mxu0 0.0
    %1385 = vmatpush1.msra.mxu0 0.0
    %1386 = vmatprep.subr.mxu0 0.0
    %1387 = vmatpush1.msra.mxu0 0.0
    %1388 = vmatprep.subr.mxu0 0.0
    %1389 = vmatpush1.msra.mxu0 0.0
    %1390 = vmatprep.subr.mxu0 0.0
    %1391 = vmatpush1.msra.mxu0 0.0
    %1392 = vmatprep.mubr.f32.mxu0 0.0
    %1393 = vmatmul.mubr.f32.gmra.mrb[0].mxu0 %v1068
    %v1394 = vpop.f32.mrb[0].mxu0
    %v1395 = vadd.f32 %v1057, %v1394
    %v1396 = vpop.f32.mrb[0].mxu0
    %v1397 = vadd.f32 %v1058, %v1396
    %1398 = vmatprep.mubr.f32.mxu0 0.0
    %1399 = vmatmul.mubr.f32.gmra.mrb[0].mxu0 %v1071
    %v1400 = vpop.f32.mrb[0].mxu0
    %v1401 = vadd.f32 %v1065, %v1400
    %v1402 = vpop.f32.mrb[0].mxu0
    %v1403 = vadd.f32 %v1066, %v1402
    %1404 = vdwg.mxu0
    %1405 = vset.pattern.permute.xlu0 1
    %1406 = vperm.xlu0 %1405, %v975
    %v1407 = vpop.permute.xlu0 %1406
    %1409 = vset.pattern.permute.xlu0 1
    %1410 = vperm.xlu0 %1409, %v976
    %v1411 = vpop.permute.xlu0 %1410
    %v1413 = vlaneseq
    %v1414 = vshrl.u32 %v1413, 7
    %v1415 = vsub.s32 1, %v1414
    %v1416 = vrot.slane %v1001, %v1415
    %v1417 = vlaneseq
    %v1418 = vshrl.u32 %v1417, 7
    %v1419 = vsub.s32 1, %v1418
    %v1420 = vrot.slane %v1002, %v1419
    %v1421 = vlaneseq
    %v1422 = vshrl.u32 %v1421, 7
    %v1423 = vsub.s32 1, %v1422
    %v1424 = vrot.slane %v1003, %v1423
    %v1425 = vlaneseq
    %v1426 = vshrl.u32 %v1425, 7
    %v1427 = vsub.s32 1, %v1426
    %v1428 = vrot.slane %v1004, %v1427
    %v1429 = vlaneseq
    %v1430 = vshrl.u32 %v1429, 7
    %v1431 = vsub.s32 1, %v1430
    %v1432 = vrot.slane %v1005, %v1431
    %v1433 = vlaneseq
    %v1434 = vshrl.u32 %v1433, 7
    %v1435 = vsub.s32 1, %v1434
    %v1436 = vrot.slane %v1006, %v1435
    %v1437 = vlaneseq
    %v1438 = vshrl.u32 %v1437, 7
    %v1439 = vsub.s32 1, %v1438
    %v1440 = vrot.slane %v1007, %v1439
    %v1441 = vlaneseq
    %v1442 = vshrl.u32 %v1441, 7
    %v1443 = vsub.s32 1, %v1442
    %v1444 = vrot.slane %v1008, %v1443
    %v1445 = vmul.f32 %v1407, %v1416
    %v1446 = vmul.f32 %v1407, %v1420
    %v1447 = vmul.f32 %v1407, %v1424
    %v1448 = vmul.f32 %v1407, %v1428
    %v1449 = vmul.f32 %v1407, %v1432
    %v1450 = vmul.f32 %v1407, %v1436
    %v1451 = vmul.f32 %v1407, %v1440
    %v1452 = vmul.f32 %v1407, %v1444
    %v1453 = vmul.f32 %v1411, %v1416
    %v1454 = vmul.f32 %v1411, %v1420
    %v1455 = vmul.f32 %v1411, %v1424
    %v1456 = vmul.f32 %v1411, %v1428
    %v1457 = vmul.f32 %v1411, %v1432
    %v1458 = vmul.f32 %v1411, %v1436
    %v1459 = vmul.f32 %v1411, %v1440
    %v1460 = vmul.f32 %v1411, %v1444
    %v1461 = vadd.f32 %v1164, %v1445
    %v1462 = vadd.f32 %v1166, %v1446
    %v1463 = vadd.f32 %v1241, %v1447
    %v1464 = vadd.f32 %v1243, %v1448
    %v1465 = vadd.f32 %v1318, %v1449
    %v1466 = vadd.f32 %v1320, %v1450
    %v1467 = vadd.f32 %v1395, %v1451
    %v1468 = vadd.f32 %v1397, %v1452
    %v1469 = vadd.f32 %v1170, %v1453
    %v1470 = vadd.f32 %v1172, %v1454
    %v1471 = vadd.f32 %v1247, %v1455
    %v1472 = vadd.f32 %v1249, %v1456
    %v1473 = vadd.f32 %v1324, %v1457
    %v1474 = vadd.f32 %v1326, %v1458
    %v1475 = vadd.f32 %v1401, %v1459
    %v1476 = vadd.f32 %v1403, %v1460
    %1477 = vset.pattern.permute.xlu0 2
    %1478 = vperm.xlu0 %1477, %v975
    %v1479 = vpop.permute.xlu0 %1478
    %1481 = vset.pattern.permute.xlu0 2
    %1482 = vperm.xlu0 %1481, %v976
    %v1483 = vpop.permute.xlu0 %1482
    %v1485 = vlaneseq
    %v1486 = vshrl.u32 %v1485, 7
    %v1487 = vsub.s32 2, %v1486
    %v1488 = vrot.slane %v1001, %v1487
    %v1489 = vlaneseq
    %v1490 = vshrl.u32 %v1489, 7
    %v1491 = vsub.s32 2, %v1490
    %v1492 = vrot.slane %v1002, %v1491
    %v1493 = vlaneseq
    %v1494 = vshrl.u32 %v1493, 7
    %v1495 = vsub.s32 2, %v1494
    %v1496 = vrot.slane %v1003, %v1495
    %v1497 = vlaneseq
    %v1498 = vshrl.u32 %v1497, 7
    %v1499 = vsub.s32 2, %v1498
    %v1500 = vrot.slane %v1004, %v1499
    %v1501 = vlaneseq
    %v1502 = vshrl.u32 %v1501, 7
    %v1503 = vsub.s32 2, %v1502
    %v1504 = vrot.slane %v1005, %v1503
    %v1505 = vlaneseq
    %v1506 = vshrl.u32 %v1505, 7
    %v1507 = vsub.s32 2, %v1506
    %v1508 = vrot.slane %v1006, %v1507
    %v1509 = vlaneseq
    %v1510 = vshrl.u32 %v1509, 7
    %v1511 = vsub.s32 2, %v1510
    %v1512 = vrot.slane %v1007, %v1511
    %v1513 = vlaneseq
    %v1514 = vshrl.u32 %v1513, 7
    %v1515 = vsub.s32 2, %v1514
    %v1516 = vrot.slane %v1008, %v1515
    %v1517 = vmul.f32 %v1479, %v1488
    %v1518 = vmul.f32 %v1479, %v1492
    %v1519 = vmul.f32 %v1479, %v1496
    %v1520 = vmul.f32 %v1479, %v1500
    %v1521 = vmul.f32 %v1479, %v1504
    %v1522 = vmul.f32 %v1479, %v1508
    %v1523 = vmul.f32 %v1479, %v1512
    %v1524 = vmul.f32 %v1479, %v1516
    %v1525 = vmul.f32 %v1483, %v1488
    %v1526 = vmul.f32 %v1483, %v1492
    %v1527 = vmul.f32 %v1483, %v1496
    %v1528 = vmul.f32 %v1483, %v1500
    %v1529 = vmul.f32 %v1483, %v1504
    %v1530 = vmul.f32 %v1483, %v1508
    %v1531 = vmul.f32 %v1483, %v1512
    %v1532 = vmul.f32 %v1483, %v1516
    %v1533 = vadd.f32 %v1461, %v1517
    %v1534 = vadd.f32 %v1462, %v1518
    %v1535 = vadd.f32 %v1463, %v1519
    %v1536 = vadd.f32 %v1464, %v1520
    %v1537 = vadd.f32 %v1465, %v1521
    %v1538 = vadd.f32 %v1466, %v1522
    %v1539 = vadd.f32 %v1467, %v1523
    %v1540 = vadd.f32 %v1468, %v1524
    %v1541 = vadd.f32 %v1469, %v1525
    %v1542 = vadd.f32 %v1470, %v1526
    %v1543 = vadd.f32 %v1471, %v1527
    %v1544 = vadd.f32 %v1472, %v1528
    %v1545 = vadd.f32 %v1473, %v1529
    %v1546 = vadd.f32 %v1474, %v1530
    %v1547 = vadd.f32 %v1475, %v1531
    %v1548 = vadd.f32 %v1476, %v1532
    %v1549 = vrot.slane %v965, 5
    %v1550 = vrot.slane %v966, 5
    %v1551 = vrot.slane %v967, 5
    %v1552 = vrot.slane %v968, 5
    %v1553 = vrot.slane %v969, 5
    %v1554 = vrot.slane %v970, 5
    %v1555 = vrot.slane %v971, 5
    %v1556 = vrot.slane %v972, 5
    %v1565 = vmul.f32 %v965, %v1549
    %v1566 = vmul.f32 %v966, %v1550
    %v1567 = vmul.f32 %v967, %v1551
    %v1568 = vmul.f32 %v968, %v1552
    %v1569 = vmul.f32 %v969, %v1553
    %v1570 = vmul.f32 %v970, %v1554
    %v1571 = vmul.f32 %v971, %v1555
    %v1572 = vmul.f32 %v972, %v1556
    %1573 = vset.pattern.permute.xlu0 3
    %1574 = vperm.xlu0 %1573, %v975
    %v1575 = vpop.permute.xlu0 %1574
    %1577 = vset.pattern.permute.xlu0 3
    %1578 = vperm.xlu0 %1577, %v976
    %v1579 = vpop.permute.xlu0 %1578
    %v1581 = vlaneseq
    %v1582 = vshrl.u32 %v1581, 7
    %v1583 = vsub.s32 3, %v1582
    %v1584 = vrot.slane %v1565, %v1583
    %v1585 = vlaneseq
    %v1586 = vshrl.u32 %v1585, 7
    %v1587 = vsub.s32 3, %v1586
    %v1588 = vrot.slane %v1566, %v1587
    %v1589 = vlaneseq
    %v1590 = vshrl.u32 %v1589, 7
    %v1591 = vsub.s32 3, %v1590
    %v1592 = vrot.slane %v1567, %v1591
    %v1593 = vlaneseq
    %v1594 = vshrl.u32 %v1593, 7
    %v1595 = vsub.s32 3, %v1594
    %v1596 = vrot.slane %v1568, %v1595
    %v1597 = vlaneseq
    %v1598 = vshrl.u32 %v1597, 7
    %v1599 = vsub.s32 3, %v1598
    %v1600 = vrot.slane %v1569, %v1599
    %v1601 = vlaneseq
    %v1602 = vshrl.u32 %v1601, 7
    %v1603 = vsub.s32 3, %v1602
    %v1604 = vrot.slane %v1570, %v1603
    %v1605 = vlaneseq
    %v1606 = vshrl.u32 %v1605, 7
    %v1607 = vsub.s32 3, %v1606
    %v1608 = vrot.slane %v1571, %v1607
    %v1609 = vlaneseq
    %v1610 = vshrl.u32 %v1609, 7
    %v1611 = vsub.s32 3, %v1610
    %v1612 = vrot.slane %v1572, %v1611
    %v1613 = vmul.f32 %v1575, %v1584
    %v1614 = vmul.f32 %v1575, %v1588
    %v1615 = vmul.f32 %v1575, %v1592
    %v1616 = vmul.f32 %v1575, %v1596
    %v1617 = vmul.f32 %v1575, %v1600
    %v1618 = vmul.f32 %v1575, %v1604
    %v1619 = vmul.f32 %v1575, %v1608
    %v1620 = vmul.f32 %v1575, %v1612
    %v1621 = vmul.f32 %v1579, %v1584
    %v1622 = vmul.f32 %v1579, %v1588
    %v1623 = vmul.f32 %v1579, %v1592
    %v1624 = vmul.f32 %v1579, %v1596
    %v1625 = vmul.f32 %v1579, %v1600
    %v1626 = vmul.f32 %v1579, %v1604
    %v1627 = vmul.f32 %v1579, %v1608
    %v1628 = vmul.f32 %v1579, %v1612
    %v1629 = vadd.f32 %v1533, %v1613
    %v1630 = vadd.f32 %v1534, %v1614
    %v1631 = vadd.f32 %v1535, %v1615
    %v1632 = vadd.f32 %v1536, %v1616
    %v1633 = vadd.f32 %v1537, %v1617
    %v1634 = vadd.f32 %v1538, %v1618
    %v1635 = vadd.f32 %v1539, %v1619
    %v1636 = vadd.f32 %v1540, %v1620
    %v1637 = vadd.f32 %v1541, %v1621
    %v1638 = vadd.f32 %v1542, %v1622
    %v1639 = vadd.f32 %v1543, %v1623
    %v1640 = vadd.f32 %v1544, %v1624
    %v1641 = vadd.f32 %v1545, %v1625
    %v1642 = vadd.f32 %v1546, %v1626
    %v1643 = vadd.f32 %v1547, %v1627
    %v1644 = vadd.f32 %v1548, %v1628
    %v1645 = vsub.f32 %v1629, %v1633
    %v1646 = vsub.f32 %v1630, %v1634
    %v1647 = vsub.f32 %v1631, %v1635
    %v1648 = vsub.f32 %v1632, %v1636
    %v1649 = vsub.f32 %v1637, %v1641
    %v1650 = vsub.f32 %v1638, %v1642
    %v1651 = vsub.f32 %v1639, %v1643
    %v1652 = vsub.f32 %v1640, %v1644
    %v1653 = vand.u32 2147483647, %v1645
    %vm1654 = vcmp.le.f32.partialorder %v1653, 0.7853982
    %vm1655 = vcmp.lt.s32.totalorder %v1645, 0
    %v1656 = vand.u32 %v1645, 2139095040
    %v1657 = vshrl.u32 %v1656, 23
    %v1658 = vsub.s32 %v1657, 127
    %v1659 = vand.u32 2147483647, %v1645
    %v1660 = vand.u32 %v1659, 8388607
    %v1661 = vor.u32 %v1660, 8388608
    %v1662 = vsub.s32 0, %v1661
    %v1663 = vadd.s32 %v1658, 1
    %vm1664 = vcmp.gt.s32.totalorder %v1663, 0
    %v1665 = vsel %vm1664, %v1663, 0
    %v1666 = vshrl.u32 %v1665, 5
    %v1667 = vand.u32 %v1665, 31
    %v1668 = vsub.s32 32, %v1667
    %v1669 = vshrl.u32 683565275, %v1668
    %v1670 = vshll.u32 683565275, %v1667
    %v1671 = vshrl.u32 2475754826, %v1668
    %v1672 = vor.u32 %v1670, %v1671
    %v1673 = vshll.u32 2475754826, %v1667
    %v1674 = vshrl.u32 2131351028, %v1668
    %v1675 = vor.u32 %v1673, %v1674
    %v1676 = vshll.u32 2131351028, %v1667
    %v1677 = vshrl.u32 2102212464, %v1668
    %v1678 = vor.u32 %v1676, %v1677
    %v1679 = vshll.u32 2102212464, %v1667
    %v1680 = vshrl.u32 920167782, %v1668
    %v1681 = vor.u32 %v1679, %v1680
    %v1682 = vshll.u32 920167782, %v1667
    %v1683 = vshrl.u32 1326507024, %v1668
    %v1684 = vor.u32 %v1682, %v1683
    %vm1685 = vcmp.lt.s32.totalorder %v1666, 1
    %vm1686 = vcmp.lt.s32.totalorder %v1666, 2
    %vm1687 = vcmp.lt.s32.totalorder %v1666, 3
    %vm1688 = vcmp.lt.s32.totalorder %v1666, 4
    %v1689 = vsel %vm1685, %v1669, %v1672
    %v1690 = vsel %vm1688, %v1678, 2102212464
    %v1691 = vsel %vm1687, %v1675, %v1690
    %v1692 = vsel %vm1686, %v1689, %v1691
    %v1693 = vsel %vm1685, %v1672, %v1675
    %v1694 = vsel %vm1688, %v1681, 920167782
    %v1695 = vsel %vm1687, %v1678, %v1694
    %v1696 = vsel %vm1686, %v1693, %v1695
    %v1697 = vsel %vm1685, %v1675, %v1678
    %v1698 = vsel %vm1688, %v1684, 1326507024
    %v1699 = vsel %vm1687, %v1681, %v1698
    %v1700 = vsel %vm1686, %v1697, %v1699
    %v1701 = vshll.u32 %v1661, 8
    %v1702 = vmul.u32.u64.compose %v1701, %v1700
    %v1703 = vextract.low.u32 %v1702
    %v1704 = vextract.high.u32 %v1702
    %v1705 = vmul.u32.u64.compose %v1701, %v1696
    %v1706 = vextract.low.u32 %v1705
    %v1707 = vextract.high.u32 %v1705
    %v1708 = vmul.u32 %v1701, %v1692
    %v1709 = vadd.s32 %v1704, %v1706
    %vm1710 = vc.u32 %v1704, %v1706
    %v1711 = vadd.s32 %v1707, 1
    %v1712 = vsel %vm1710, %v1711, %v1707
    %v1713 = vadd.s32 %v1708, %v1712
    %v1714 = vadd.s32 %v1713, 536870912
    %v1715 = vshrl.u32 %v1714, 30
    %v1716 = vshll.u32 %v1715, 30
    %v1717 = vsub.s32 %v1713, %v1716
    %vm1718 = vcmp.lt.s32.totalorder %v1717, 0
    %v1719 = vsub.s32 0, %v1717
    %v1720 = vsel %vm1718, %v1719, %v1717
    %v1721 = vclz %v1720
    %v1722 = vsub.s32 %v1721, 2
    %vm1723 = vcmp.gt.s32.totalorder 0, %v1722
    %v1724 = vsel %vm1723, 0, %v1722
    %v1725 = vsub.s32 32, %v1724
    %v1726 = vshll.u32 %v1717, %v1724
    %v1727 = vshrl.u32 %v1709, %v1725
    %v1728 = vor.u32 %v1726, %v1727
    %v1729 = vsub.s32 4294967266, %v1724
    %v1730 = vadd.s32 %v1729, 127
    %v1731 = vshll.u32 %v1730, 23
    %v1732 = vor.u32 4788187, %v1731
    %v1733 = vand.u32 2147483647, %v1732
    %v1735 = vcvt.s32.f32 %v1728
    %v1736 = vmul.f32 %v1735, %v1733
    %v1737 = vxor.u32 %v1736, 2147483648
    %v1738 = vsel %vm1655, %v1737, %v1736
    %v1739 = vsub.s32 4, %v1715
    %v1740 = vsel %vm1655, %v1739, %v1715
    %v1741 = vsel %vm1654, %v1645, %v1738
    %v1742 = vsel %vm1654, 0, %v1740
    %v1743 = vcosq.f32.pop %v1741
    %v1744 = vsinq.f32.pop %v1741
    %vm1745 = vweird.f32 %v1645
    %v1746 = vand.u32 %v1742, 3
    %vm1747 = vcmp.lt.s32.totalorder %v1746, 2
    %vm1748 = vcmp.eq.s32.totalorder %v1746, 0
    %v1749 = vxor.u32 %v1744, 2147483648
    %v1750 = vsel %vm1748, %v1743, %v1749
    %vm1751 = vcmp.eq.s32.totalorder %v1746, 2
    %v1752 = vxor.u32 %v1743, 2147483648
    %v1753 = vsel %vm1751, %v1752, %v1744
    %v1754 = vsel %vm1747, %v1750, %v1753
    %v1755 = vsel %vm1745, nan, %v1754
    %v1756 = vand.u32 2147483647, %v1646
    %vm1757 = vcmp.le.f32.partialorder %v1756, 0.7853982
    %vm1758 = vcmp.lt.s32.totalorder %v1646, 0
    %v1759 = vand.u32 %v1646, 2139095040
    %v1760 = vshrl.u32 %v1759, 23
    %v1761 = vsub.s32 %v1760, 127
    %v1762 = vand.u32 2147483647, %v1646
    %v1763 = vand.u32 %v1762, 8388607
    %v1764 = vor.u32 %v1763, 8388608
    %v1765 = vsub.s32 0, %v1764
    %v1766 = vadd.s32 %v1761, 1
    %vm1767 = vcmp.gt.s32.totalorder %v1766, 0
    %v1768 = vsel %vm1767, %v1766, 0
    %v1769 = vshrl.u32 %v1768, 5
    %v1770 = vand.u32 %v1768, 31
    %v1771 = vsub.s32 32, %v1770
    %v1772 = vshrl.u32 683565275, %v1771
    %v1773 = vshll.u32 683565275, %v1770
    %v1774 = vshrl.u32 2475754826, %v1771
    %v1775 = vor.u32 %v1773, %v1774
    %v1776 = vshll.u32 2475754826, %v1770
    %v1777 = vshrl.u32 2131351028, %v1771
    %v1778 = vor.u32 %v1776, %v1777
    %v1779 = vshll.u32 2131351028, %v1770
    %v1780 = vshrl.u32 2102212464, %v1771
    %v1781 = vor.u32 %v1779, %v1780
    %v1782 = vshll.u32 2102212464, %v1770
    %v1783 = vshrl.u32 920167782, %v1771
    %v1784 = vor.u32 %v1782, %v1783
    %v1785 = vshll.u32 920167782, %v1770
    %v1786 = vshrl.u32 1326507024, %v1771
    %v1787 = vor.u32 %v1785, %v1786
    %vm1788 = vcmp.lt.s32.totalorder %v1769, 1
    %vm1789 = vcmp.lt.s32.totalorder %v1769, 2
    %vm1790 = vcmp.lt.s32.totalorder %v1769, 3
    %vm1791 = vcmp.lt.s32.totalorder %v1769, 4
    %v1792 = vsel %vm1788, %v1772, %v1775
    %v1793 = vsel %vm1791, %v1781, 2102212464
    %v1794 = vsel %vm1790, %v1778, %v1793
    %v1795 = vsel %vm1789, %v1792, %v1794
    %v1796 = vsel %vm1788, %v1775, %v1778
    %v1797 = vsel %vm1791, %v1784, 920167782
    %v1798 = vsel %vm1790, %v1781, %v1797
    %v1799 = vsel %vm1789, %v1796, %v1798
    %v1800 = vsel %vm1788, %v1778, %v1781
    %v1801 = vsel %vm1791, %v1787, 1326507024
    %v1802 = vsel %vm1790, %v1784, %v1801
    %v1803 = vsel %vm1789, %v1800, %v1802
    %v1804 = vshll.u32 %v1764, 8
    %v1805 = vmul.u32.u64.compose %v1804, %v1803
    %v1806 = vextract.low.u32 %v1805
    %v1807 = vextract.high.u32 %v1805
    %v1808 = vmul.u32.u64.compose %v1804, %v1799
    %v1809 = vextract.low.u32 %v1808
    %v1810 = vextract.high.u32 %v1808
    %v1811 = vmul.u32 %v1804, %v1795
    %v1812 = vadd.s32 %v1807, %v1809
    %vm1813 = vc.u32 %v1807, %v1809
    %v1814 = vadd.s32 %v1810, 1
    %v1815 = vsel %vm1813, %v1814, %v1810
    %v1816 = vadd.s32 %v1811, %v1815
    %v1817 = vadd.s32 %v1816, 536870912
    %v1818 = vshrl.u32 %v1817, 30
    %v1819 = vshll.u32 %v1818, 30
    %v1820 = vsub.s32 %v1816, %v1819
    %vm1821 = vcmp.lt.s32.totalorder %v1820, 0
    %v1822 = vsub.s32 0, %v1820
    %v1823 = vsel %vm1821, %v1822, %v1820
    %v1824 = vclz %v1823
    %v1825 = vsub.s32 %v1824, 2
    %vm1826 = vcmp.gt.s32.totalorder 0, %v1825
    %v1827 = vsel %vm1826, 0, %v1825
    %v1828 = vsub.s32 32, %v1827
    %v1829 = vshll.u32 %v1820, %v1827
    %v1830 = vshrl.u32 %v1812, %v1828
    %v1831 = vor.u32 %v1829, %v1830
    %v1832 = vsub.s32 4294967266, %v1827
    %v1833 = vadd.s32 %v1832, 127
    %v1834 = vshll.u32 %v1833, 23
    %v1835 = vor.u32 4788187, %v1834
    %v1836 = vand.u32 2147483647, %v1835
    %v1838 = vcvt.s32.f32 %v1831
    %v1839 = vmul.f32 %v1838, %v1836
    %v1840 = vxor.u32 %v1839, 2147483648
    %v1841 = vsel %vm1758, %v1840, %v1839
    %v1842 = vsub.s32 4, %v1818
    %v1843 = vsel %vm1758, %v1842, %v1818
    %v1844 = vsel %vm1757, %v1646, %v1841
    %v1845 = vsel %vm1757, 0, %v1843
    %v1846 = vcosq.f32.pop %v1844
    %v1847 = vsinq.f32.pop %v1844
    %vm1848 = vweird.f32 %v1646
    %v1849 = vand.u32 %v1845, 3
    %vm1850 = vcmp.lt.s32.totalorder %v1849, 2
    %vm1851 = vcmp.eq.s32.totalorder %v1849, 0
    %v1852 = vxor.u32 %v1847, 2147483648
    %v1853 = vsel %vm1851, %v1846, %v1852
    %vm1854 = vcmp.eq.s32.totalorder %v1849, 2
    %v1855 = vxor.u32 %v1846, 2147483648
    %v1856 = vsel %vm1854, %v1855, %v1847
    %v1857 = vsel %vm1850, %v1853, %v1856
    %v1858 = vsel %vm1848, nan, %v1857
    %v1859 = vand.u32 2147483647, %v1647
    %vm1860 = vcmp.le.f32.partialorder %v1859, 0.7853982
    %vm1861 = vcmp.lt.s32.totalorder %v1647, 0
    %v1862 = vand.u32 %v1647, 2139095040
    %v1863 = vshrl.u32 %v1862, 23
    %v1864 = vsub.s32 %v1863, 127
    %v1865 = vand.u32 2147483647, %v1647
    %v1866 = vand.u32 %v1865, 8388607
    %v1867 = vor.u32 %v1866, 8388608
    %v1868 = vsub.s32 0, %v1867
    %v1869 = vadd.s32 %v1864, 1
    %vm1870 = vcmp.gt.s32.totalorder %v1869, 0
    %v1871 = vsel %vm1870, %v1869, 0
    %v1872 = vshrl.u32 %v1871, 5
    %v1873 = vand.u32 %v1871, 31
    %v1874 = vsub.s32 32, %v1873
    %v1875 = vshrl.u32 683565275, %v1874
    %v1876 = vshll.u32 683565275, %v1873
    %v1877 = vshrl.u32 2475754826, %v1874
    %v1878 = vor.u32 %v1876, %v1877
    %v1879 = vshll.u32 2475754826, %v1873
    %v1880 = vshrl.u32 2131351028, %v1874
    %v1881 = vor.u32 %v1879, %v1880
    %v1882 = vshll.u32 2131351028, %v1873
    %v1883 = vshrl.u32 2102212464, %v1874
    %v1884 = vor.u32 %v1882, %v1883
    %v1885 = vshll.u32 2102212464, %v1873
    %v1886 = vshrl.u32 920167782, %v1874
    %v1887 = vor.u32 %v1885, %v1886
    %v1888 = vshll.u32 920167782, %v1873
    %v1889 = vshrl.u32 1326507024, %v1874
    %v1890 = vor.u32 %v1888, %v1889
    %vm1891 = vcmp.lt.s32.totalorder %v1872, 1
    %vm1892 = vcmp.lt.s32.totalorder %v1872, 2
    %vm1893 = vcmp.lt.s32.totalorder %v1872, 3
    %vm1894 = vcmp.lt.s32.totalorder %v1872, 4
    %v1895 = vsel %vm1891, %v1875, %v1878
    %v1896 = vsel %vm1894, %v1884, 2102212464
    %v1897 = vsel %vm1893, %v1881, %v1896
    %v1898 = vsel %vm1892, %v1895, %v1897
    %v1899 = vsel %vm1891, %v1878, %v1881
    %v1900 = vsel %vm1894, %v1887, 920167782
    %v1901 = vsel %vm1893, %v1884, %v1900
    %v1902 = vsel %vm1892, %v1899, %v1901
    %v1903 = vsel %vm1891, %v1881, %v1884
    %v1904 = vsel %vm1894, %v1890, 1326507024
    %v1905 = vsel %vm1893, %v1887, %v1904
    %v1906 = vsel %vm1892, %v1903, %v1905
    %v1907 = vshll.u32 %v1867, 8
    %v1908 = vmul.u32.u64.compose %v1907, %v1906
    %v1909 = vextract.low.u32 %v1908
    %v1910 = vextract.high.u32 %v1908
    %v1911 = vmul.u32.u64.compose %v1907, %v1902
    %v1912 = vextract.low.u32 %v1911
    %v1913 = vextract.high.u32 %v1911
    %v1914 = vmul.u32 %v1907, %v1898
    %v1915 = vadd.s32 %v1910, %v1912
    %vm1916 = vc.u32 %v1910, %v1912
    %v1917 = vadd.s32 %v1913, 1
    %v1918 = vsel %vm1916, %v1917, %v1913
    %v1919 = vadd.s32 %v1914, %v1918
    %v1920 = vadd.s32 %v1919, 536870912
    %v1921 = vshrl.u32 %v1920, 30
    %v1922 = vshll.u32 %v1921, 30
    %v1923 = vsub.s32 %v1919, %v1922
    %vm1924 = vcmp.lt.s32.totalorder %v1923, 0
    %v1925 = vsub.s32 0, %v1923
    %v1926 = vsel %vm1924, %v1925, %v1923
    %v1927 = vclz %v1926
    %v1928 = vsub.s32 %v1927, 2
    %vm1929 = vcmp.gt.s32.totalorder 0, %v1928
    %v1930 = vsel %vm1929, 0, %v1928
    %v1931 = vsub.s32 32, %v1930
    %v1932 = vshll.u32 %v1923, %v1930
    %v1933 = vshrl.u32 %v1915, %v1931
    %v1934 = vor.u32 %v1932, %v1933
    %v1935 = vsub.s32 4294967266, %v1930
    %v1936 = vadd.s32 %v1935, 127
    %v1937 = vshll.u32 %v1936, 23
    %v1938 = vor.u32 4788187, %v1937
    %v1939 = vand.u32 2147483647, %v1938
    %v1941 = vcvt.s32.f32 %v1934
    %v1942 = vmul.f32 %v1941, %v1939
    %v1943 = vxor.u32 %v1942, 2147483648
    %v1944 = vsel %vm1861, %v1943, %v1942
    %v1945 = vsub.s32 4, %v1921
    %v1946 = vsel %vm1861, %v1945, %v1921
    %v1947 = vsel %vm1860, %v1647, %v1944
    %v1948 = vsel %vm1860, 0, %v1946
    %v1949 = vcosq.f32.pop %v1947
    %v1950 = vsinq.f32.pop %v1947
    %vm1951 = vweird.f32 %v1647
    %v1952 = vand.u32 %v1948, 3
    %vm1953 = vcmp.lt.s32.totalorder %v1952, 2
    %vm1954 = vcmp.eq.s32.totalorder %v1952, 0
    %v1955 = vxor.u32 %v1950, 2147483648
    %v1956 = vsel %vm1954, %v1949, %v1955
    %vm1957 = vcmp.eq.s32.totalorder %v1952, 2
    %v1958 = vxor.u32 %v1949, 2147483648
    %v1959 = vsel %vm1957, %v1958, %v1950
    %v1960 = vsel %vm1953, %v1956, %v1959
    %v1961 = vsel %vm1951, nan, %v1960
    %v1962 = vand.u32 2147483647, %v1648
    %vm1963 = vcmp.le.f32.partialorder %v1962, 0.7853982
    %vm1964 = vcmp.lt.s32.totalorder %v1648, 0
    %v1965 = vand.u32 %v1648, 2139095040
    %v1966 = vshrl.u32 %v1965, 23
    %v1967 = vsub.s32 %v1966, 127
    %v1968 = vand.u32 2147483647, %v1648
    %v1969 = vand.u32 %v1968, 8388607
    %v1970 = vor.u32 %v1969, 8388608
    %v1971 = vsub.s32 0, %v1970
    %v1972 = vadd.s32 %v1967, 1
    %vm1973 = vcmp.gt.s32.totalorder %v1972, 0
    %v1974 = vsel %vm1973, %v1972, 0
    %v1975 = vshrl.u32 %v1974, 5
    %v1976 = vand.u32 %v1974, 31
    %v1977 = vsub.s32 32, %v1976
    %v1978 = vshrl.u32 683565275, %v1977
    %v1979 = vshll.u32 683565275, %v1976
    %v1980 = vshrl.u32 2475754826, %v1977
    %v1981 = vor.u32 %v1979, %v1980
    %v1982 = vshll.u32 2475754826, %v1976
    %v1983 = vshrl.u32 2131351028, %v1977
    %v1984 = vor.u32 %v1982, %v1983
    %v1985 = vshll.u32 2131351028, %v1976
    %v1986 = vshrl.u32 2102212464, %v1977
    %v1987 = vor.u32 %v1985, %v1986
    %v1988 = vshll.u32 2102212464, %v1976
    %v1989 = vshrl.u32 920167782, %v1977
    %v1990 = vor.u32 %v1988, %v1989
    %v1991 = vshll.u32 920167782, %v1976
    %v1992 = vshrl.u32 1326507024, %v1977
    %v1993 = vor.u32 %v1991, %v1992
    %vm1994 = vcmp.lt.s32.totalorder %v1975, 1
    %vm1995 = vcmp.lt.s32.totalorder %v1975, 2
    %vm1996 = vcmp.lt.s32.totalorder %v1975, 3
    %vm1997 = vcmp.lt.s32.totalorder %v1975, 4
    %v1998 = vsel %vm1994, %v1978, %v1981
    %v1999 = vsel %vm1997, %v1987, 2102212464
    %v2000 = vsel %vm1996, %v1984, %v1999
    %v2001 = vsel %vm1995, %v1998, %v2000
    %v2002 = vsel %vm1994, %v1981, %v1984
    %v2003 = vsel %vm1997, %v1990, 920167782
    %v2004 = vsel %vm1996, %v1987, %v2003
    %v2005 = vsel %vm1995, %v2002, %v2004
    %v2006 = vsel %vm1994, %v1984, %v1987
    %v2007 = vsel %vm1997, %v1993, 1326507024
    %v2008 = vsel %vm1996, %v1990, %v2007
    %v2009 = vsel %vm1995, %v2006, %v2008
    %v2010 = vshll.u32 %v1970, 8
    %v2011 = vmul.u32.u64.compose %v2010, %v2009
    %v2012 = vextract.low.u32 %v2011
    %v2013 = vextract.high.u32 %v2011
    %v2014 = vmul.u32.u64.compose %v2010, %v2005
    %v2015 = vextract.low.u32 %v2014
    %v2016 = vextract.high.u32 %v2014
    %v2017 = vmul.u32 %v2010, %v2001
    %v2018 = vadd.s32 %v2013, %v2015
    %vm2019 = vc.u32 %v2013, %v2015
    %v2020 = vadd.s32 %v2016, 1
    %v2021 = vsel %vm2019, %v2020, %v2016
    %v2022 = vadd.s32 %v2017, %v2021
    %v2023 = vadd.s32 %v2022, 536870912
    %v2024 = vshrl.u32 %v2023, 30
    %v2025 = vshll.u32 %v2024, 30
    %v2026 = vsub.s32 %v2022, %v2025
    %vm2027 = vcmp.lt.s32.totalorder %v2026, 0
    %v2028 = vsub.s32 0, %v2026
    %v2029 = vsel %vm2027, %v2028, %v2026
    %v2030 = vclz %v2029
    %v2031 = vsub.s32 %v2030, 2
    %vm2032 = vcmp.gt.s32.totalorder 0, %v2031
    %v2033 = vsel %vm2032, 0, %v2031
    %v2034 = vsub.s32 32, %v2033
    %v2035 = vshll.u32 %v2026, %v2033
    %v2036 = vshrl.u32 %v2018, %v2034
    %v2037 = vor.u32 %v2035, %v2036
    %v2038 = vsub.s32 4294967266, %v2033
    %v2039 = vadd.s32 %v2038, 127
    %v2040 = vshll.u32 %v2039, 23
    %v2041 = vor.u32 4788187, %v2040
    %v2042 = vand.u32 2147483647, %v2041
    %v2044 = vcvt.s32.f32 %v2037
    %v2045 = vmul.f32 %v2044, %v2042
    %v2046 = vxor.u32 %v2045, 2147483648
    %v2047 = vsel %vm1964, %v2046, %v2045
    %v2048 = vsub.s32 4, %v2024
    %v2049 = vsel %vm1964, %v2048, %v2024
    %v2050 = vsel %vm1963, %v1648, %v2047
    %v2051 = vsel %vm1963, 0, %v2049
    %v2052 = vcosq.f32.pop %v2050
    %v2053 = vsinq.f32.pop %v2050
    %vm2054 = vweird.f32 %v1648
    %v2055 = vand.u32 %v2051, 3
    %vm2056 = vcmp.lt.s32.totalorder %v2055, 2
    %vm2057 = vcmp.eq.s32.totalorder %v2055, 0
    %v2058 = vxor.u32 %v2053, 2147483648
    %v2059 = vsel %vm2057, %v2052, %v2058
    %vm2060 = vcmp.eq.s32.totalorder %v2055, 2
    %v2061 = vxor.u32 %v2052, 2147483648
    %v2062 = vsel %vm2060, %v2061, %v2053
    %v2063 = vsel %vm2056, %v2059, %v2062
    %v2064 = vsel %vm2054, nan, %v2063
    %v2065 = vand.u32 2147483647, %v1649
    %vm2066 = vcmp.le.f32.partialorder %v2065, 0.7853982
    %vm2067 = vcmp.lt.s32.totalorder %v1649, 0
    %v2068 = vand.u32 %v1649, 2139095040
    %v2069 = vshrl.u32 %v2068, 23
    %v2070 = vsub.s32 %v2069, 127
    %v2071 = vand.u32 2147483647, %v1649
    %v2072 = vand.u32 %v2071, 8388607
    %v2073 = vor.u32 %v2072, 8388608
    %v2074 = vsub.s32 0, %v2073
    %v2075 = vadd.s32 %v2070, 1
    %vm2076 = vcmp.gt.s32.totalorder %v2075, 0
    %v2077 = vsel %vm2076, %v2075, 0
    %v2078 = vshrl.u32 %v2077, 5
    %v2079 = vand.u32 %v2077, 31
    %v2080 = vsub.s32 32, %v2079
    %v2081 = vshrl.u32 683565275, %v2080
    %v2082 = vshll.u32 683565275, %v2079
    %v2083 = vshrl.u32 2475754826, %v2080
    %v2084 = vor.u32 %v2082, %v2083
    %v2085 = vshll.u32 2475754826, %v2079
    %v2086 = vshrl.u32 2131351028, %v2080
    %v2087 = vor.u32 %v2085, %v2086
    %v2088 = vshll.u32 2131351028, %v2079
    %v2089 = vshrl.u32 2102212464, %v2080
    %v2090 = vor.u32 %v2088, %v2089
    %v2091 = vshll.u32 2102212464, %v2079
    %v2092 = vshrl.u32 920167782, %v2080
    %v2093 = vor.u32 %v2091, %v2092
    %v2094 = vshll.u32 920167782, %v2079
    %v2095 = vshrl.u32 1326507024, %v2080
    %v2096 = vor.u32 %v2094, %v2095
    %vm2097 = vcmp.lt.s32.totalorder %v2078, 1
    %vm2098 = vcmp.lt.s32.totalorder %v2078, 2
    %vm2099 = vcmp.lt.s32.totalorder %v2078, 3
    %vm2100 = vcmp.lt.s32.totalorder %v2078, 4
    %v2101 = vsel %vm2097, %v2081, %v2084
    %v2102 = vsel %vm2100, %v2090, 2102212464
    %v2103 = vsel %vm2099, %v2087, %v2102
    %v2104 = vsel %vm2098, %v2101, %v2103
    %v2105 = vsel %vm2097, %v2084, %v2087
    %v2106 = vsel %vm2100, %v2093, 920167782
    %v2107 = vsel %vm2099, %v2090, %v2106
    %v2108 = vsel %vm2098, %v2105, %v2107
    %v2109 = vsel %vm2097, %v2087, %v2090
    %v2110 = vsel %vm2100, %v2096, 1326507024
    %v2111 = vsel %vm2099, %v2093, %v2110
    %v2112 = vsel %vm2098, %v2109, %v2111
    %v2113 = vshll.u32 %v2073, 8
    %v2114 = vmul.u32.u64.compose %v2113, %v2112
    %v2115 = vextract.low.u32 %v2114
    %v2116 = vextract.high.u32 %v2114
    %v2117 = vmul.u32.u64.compose %v2113, %v2108
    %v2118 = vextract.low.u32 %v2117
    %v2119 = vextract.high.u32 %v2117
    %v2120 = vmul.u32 %v2113, %v2104
    %v2121 = vadd.s32 %v2116, %v2118
    %vm2122 = vc.u32 %v2116, %v2118
    %v2123 = vadd.s32 %v2119, 1
    %v2124 = vsel %vm2122, %v2123, %v2119
    %v2125 = vadd.s32 %v2120, %v2124
    %v2126 = vadd.s32 %v2125, 536870912
    %v2127 = vshrl.u32 %v2126, 30
    %v2128 = vshll.u32 %v2127, 30
    %v2129 = vsub.s32 %v2125, %v2128
    %vm2130 = vcmp.lt.s32.totalorder %v2129, 0
    %v2131 = vsub.s32 0, %v2129
    %v2132 = vsel %vm2130, %v2131, %v2129
    %v2133 = vclz %v2132
    %v2134 = vsub.s32 %v2133, 2
    %vm2135 = vcmp.gt.s32.totalorder 0, %v2134
    %v2136 = vsel %vm2135, 0, %v2134
    %v2137 = vsub.s32 32, %v2136
    %v2138 = vshll.u32 %v2129, %v2136
    %v2139 = vshrl.u32 %v2121, %v2137
    %v2140 = vor.u32 %v2138, %v2139
    %v2141 = vsub.s32 4294967266, %v2136
    %v2142 = vadd.s32 %v2141, 127
    %v2143 = vshll.u32 %v2142, 23
    %v2144 = vor.u32 4788187, %v2143
    %v2145 = vand.u32 2147483647, %v2144
    %v2147 = vcvt.s32.f32 %v2140
    %v2148 = vmul.f32 %v2147, %v2145
    %v2149 = vxor.u32 %v2148, 2147483648
    %v2150 = vsel %vm2067, %v2149, %v2148
    %v2151 = vsub.s32 4, %v2127
    %v2152 = vsel %vm2067, %v2151, %v2127
    %v2153 = vsel %vm2066, %v1649, %v2150
    %v2154 = vsel %vm2066, 0, %v2152
    %v2155 = vcosq.f32.pop %v2153
    %v2156 = vsinq.f32.pop %v2153
    %vm2157 = vweird.f32 %v1649
    %v2158 = vand.u32 %v2154, 3
    %vm2159 = vcmp.lt.s32.totalorder %v2158, 2
    %vm2160 = vcmp.eq.s32.totalorder %v2158, 0
    %v2161 = vxor.u32 %v2156, 2147483648
    %v2162 = vsel %vm2160, %v2155, %v2161
    %vm2163 = vcmp.eq.s32.totalorder %v2158, 2
    %v2164 = vxor.u32 %v2155, 2147483648
    %v2165 = vsel %vm2163, %v2164, %v2156
    %v2166 = vsel %vm2159, %v2162, %v2165
    %v2167 = vsel %vm2157, nan, %v2166
    %v2168 = vand.u32 2147483647, %v1650
    %vm2169 = vcmp.le.f32.partialorder %v2168, 0.7853982
    %vm2170 = vcmp.lt.s32.totalorder %v1650, 0
    %v2171 = vand.u32 %v1650, 2139095040
    %v2172 = vshrl.u32 %v2171, 23
    %v2173 = vsub.s32 %v2172, 127
    %v2174 = vand.u32 2147483647, %v1650
    %v2175 = vand.u32 %v2174, 8388607
    %v2176 = vor.u32 %v2175, 8388608
    %v2177 = vsub.s32 0, %v2176
    %v2178 = vadd.s32 %v2173, 1
    %vm2179 = vcmp.gt.s32.totalorder %v2178, 0
    %v2180 = vsel %vm2179, %v2178, 0
    %v2181 = vshrl.u32 %v2180, 5
    %v2182 = vand.u32 %v2180, 31
    %v2183 = vsub.s32 32, %v2182
    %v2184 = vshrl.u32 683565275, %v2183
    %v2185 = vshll.u32 683565275, %v2182
    %v2186 = vshrl.u32 2475754826, %v2183
    %v2187 = vor.u32 %v2185, %v2186
    %v2188 = vshll.u32 2475754826, %v2182
    %v2189 = vshrl.u32 2131351028, %v2183
    %v2190 = vor.u32 %v2188, %v2189
    %v2191 = vshll.u32 2131351028, %v2182
    %v2192 = vshrl.u32 2102212464, %v2183
    %v2193 = vor.u32 %v2191, %v2192
    %v2194 = vshll.u32 2102212464, %v2182
    %v2195 = vshrl.u32 920167782, %v2183
    %v2196 = vor.u32 %v2194, %v2195
    %v2197 = vshll.u32 920167782, %v2182
    %v2198 = vshrl.u32 1326507024, %v2183
    %v2199 = vor.u32 %v2197, %v2198
    %vm2200 = vcmp.lt.s32.totalorder %v2181, 1
    %vm2201 = vcmp.lt.s32.totalorder %v2181, 2
    %vm2202 = vcmp.lt.s32.totalorder %v2181, 3
    %vm2203 = vcmp.lt.s32.totalorder %v2181, 4
    %v2204 = vsel %vm2200, %v2184, %v2187
    %v2205 = vsel %vm2203, %v2193, 2102212464
    %v2206 = vsel %vm2202, %v2190, %v2205
    %v2207 = vsel %vm2201, %v2204, %v2206
    %v2208 = vsel %vm2200, %v2187, %v2190
    %v2209 = vsel %vm2203, %v2196, 920167782
    %v2210 = vsel %vm2202, %v2193, %v2209
    %v2211 = vsel %vm2201, %v2208, %v2210
    %v2212 = vsel %vm2200, %v2190, %v2193
    %v2213 = vsel %vm2203, %v2199, 1326507024
    %v2214 = vsel %vm2202, %v2196, %v2213
    %v2215 = vsel %vm2201, %v2212, %v2214
    %v2216 = vshll.u32 %v2176, 8
    %v2217 = vmul.u32.u64.compose %v2216, %v2215
    %v2218 = vextract.low.u32 %v2217
    %v2219 = vextract.high.u32 %v2217
    %v2220 = vmul.u32.u64.compose %v2216, %v2211
    %v2221 = vextract.low.u32 %v2220
    %v2222 = vextract.high.u32 %v2220
    %v2223 = vmul.u32 %v2216, %v2207
    %v2224 = vadd.s32 %v2219, %v2221
    %vm2225 = vc.u32 %v2219, %v2221
    %v2226 = vadd.s32 %v2222, 1
    %v2227 = vsel %vm2225, %v2226, %v2222
    %v2228 = vadd.s32 %v2223, %v2227
    %v2229 = vadd.s32 %v2228, 536870912
    %v2230 = vshrl.u32 %v2229, 30
    %v2231 = vshll.u32 %v2230, 30
    %v2232 = vsub.s32 %v2228, %v2231
    %vm2233 = vcmp.lt.s32.totalorder %v2232, 0
    %v2234 = vsub.s32 0, %v2232
    %v2235 = vsel %vm2233, %v2234, %v2232
    %v2236 = vclz %v2235
    %v2237 = vsub.s32 %v2236, 2
    %vm2238 = vcmp.gt.s32.totalorder 0, %v2237
    %v2239 = vsel %vm2238, 0, %v2237
    %v2240 = vsub.s32 32, %v2239
    %v2241 = vshll.u32 %v2232, %v2239
    %v2242 = vshrl.u32 %v2224, %v2240
    %v2243 = vor.u32 %v2241, %v2242
    %v2244 = vsub.s32 4294967266, %v2239
    %v2245 = vadd.s32 %v2244, 127
    %v2246 = vshll.u32 %v2245, 23
    %v2247 = vor.u32 4788187, %v2246
    %v2248 = vand.u32 2147483647, %v2247
    %v2250 = vcvt.s32.f32 %v2243
    %v2251 = vmul.f32 %v2250, %v2248
    %v2252 = vxor.u32 %v2251, 2147483648
    %v2253 = vsel %vm2170, %v2252, %v2251
    %v2254 = vsub.s32 4, %v2230
    %v2255 = vsel %vm2170, %v2254, %v2230
    %v2256 = vsel %vm2169, %v1650, %v2253
    %v2257 = vsel %vm2169, 0, %v2255
    %v2258 = vcosq.f32.pop %v2256
    %v2259 = vsinq.f32.pop %v2256
    %vm2260 = vweird.f32 %v1650
    %v2261 = vand.u32 %v2257, 3
    %vm2262 = vcmp.lt.s32.totalorder %v2261, 2
    %vm2263 = vcmp.eq.s32.totalorder %v2261, 0
    %v2264 = vxor.u32 %v2259, 2147483648
    %v2265 = vsel %vm2263, %v2258, %v2264
    %vm2266 = vcmp.eq.s32.totalorder %v2261, 2
    %v2267 = vxor.u32 %v2258, 2147483648
    %v2268 = vsel %vm2266, %v2267, %v2259
    %v2269 = vsel %vm2262, %v2265, %v2268
    %v2270 = vsel %vm2260, nan, %v2269
    %v2271 = vand.u32 2147483647, %v1651
    %vm2272 = vcmp.le.f32.partialorder %v2271, 0.7853982
    %vm2273 = vcmp.lt.s32.totalorder %v1651, 0
    %v2274 = vand.u32 %v1651, 2139095040
    %v2275 = vshrl.u32 %v2274, 23
    %v2276 = vsub.s32 %v2275, 127
    %v2277 = vand.u32 2147483647, %v1651
    %v2278 = vand.u32 %v2277, 8388607
    %v2279 = vor.u32 %v2278, 8388608
    %v2280 = vsub.s32 0, %v2279
    %v2281 = vadd.s32 %v2276, 1
    %vm2282 = vcmp.gt.s32.totalorder %v2281, 0
    %v2283 = vsel %vm2282, %v2281, 0
    %v2284 = vshrl.u32 %v2283, 5
    %v2285 = vand.u32 %v2283, 31
    %v2286 = vsub.s32 32, %v2285
    %v2287 = vshrl.u32 683565275, %v2286
    %v2288 = vshll.u32 683565275, %v2285
    %v2289 = vshrl.u32 2475754826, %v2286
    %v2290 = vor.u32 %v2288, %v2289
    %v2291 = vshll.u32 2475754826, %v2285
    %v2292 = vshrl.u32 2131351028, %v2286
    %v2293 = vor.u32 %v2291, %v2292
    %v2294 = vshll.u32 2131351028, %v2285
    %v2295 = vshrl.u32 2102212464, %v2286
    %v2296 = vor.u32 %v2294, %v2295
    %v2297 = vshll.u32 2102212464, %v2285
    %v2298 = vshrl.u32 920167782, %v2286
    %v2299 = vor.u32 %v2297, %v2298
    %v2300 = vshll.u32 920167782, %v2285
    %v2301 = vshrl.u32 1326507024, %v2286
    %v2302 = vor.u32 %v2300, %v2301
    %vm2303 = vcmp.lt.s32.totalorder %v2284, 1
    %vm2304 = vcmp.lt.s32.totalorder %v2284, 2
    %vm2305 = vcmp.lt.s32.totalorder %v2284, 3
    %vm2306 = vcmp.lt.s32.totalorder %v2284, 4
    %v2307 = vsel %vm2303, %v2287, %v2290
    %v2308 = vsel %vm2306, %v2296, 2102212464
    %v2309 = vsel %vm2305, %v2293, %v2308
    %v2310 = vsel %vm2304, %v2307, %v2309
    %v2311 = vsel %vm2303, %v2290, %v2293
    %v2312 = vsel %vm2306, %v2299, 920167782
    %v2313 = vsel %vm2305, %v2296, %v2312
    %v2314 = vsel %vm2304, %v2311, %v2313
    %v2315 = vsel %vm2303, %v2293, %v2296
    %v2316 = vsel %vm2306, %v2302, 1326507024
    %v2317 = vsel %vm2305, %v2299, %v2316
    %v2318 = vsel %vm2304, %v2315, %v2317
    %v2319 = vshll.u32 %v2279, 8
    %v2320 = vmul.u32.u64.compose %v2319, %v2318
    %v2321 = vextract.low.u32 %v2320
    %v2322 = vextract.high.u32 %v2320
    %v2323 = vmul.u32.u64.compose %v2319, %v2314
    %v2324 = vextract.low.u32 %v2323
    %v2325 = vextract.high.u32 %v2323
    %v2326 = vmul.u32 %v2319, %v2310
    %v2327 = vadd.s32 %v2322, %v2324
    %vm2328 = vc.u32 %v2322, %v2324
    %v2329 = vadd.s32 %v2325, 1
    %v2330 = vsel %vm2328, %v2329, %v2325
    %v2331 = vadd.s32 %v2326, %v2330
    %v2332 = vadd.s32 %v2331, 536870912
    %v2333 = vshrl.u32 %v2332, 30
    %v2334 = vshll.u32 %v2333, 30
    %v2335 = vsub.s32 %v2331, %v2334
    %vm2336 = vcmp.lt.s32.totalorder %v2335, 0
    %v2337 = vsub.s32 0, %v2335
    %v2338 = vsel %vm2336, %v2337, %v2335
    %v2339 = vclz %v2338
    %v2340 = vsub.s32 %v2339, 2
    %vm2341 = vcmp.gt.s32.totalorder 0, %v2340
    %v2342 = vsel %vm2341, 0, %v2340
    %v2343 = vsub.s32 32, %v2342
    %v2344 = vshll.u32 %v2335, %v2342
    %v2345 = vshrl.u32 %v2327, %v2343
    %v2346 = vor.u32 %v2344, %v2345
    %v2347 = vsub.s32 4294967266, %v2342
    %v2348 = vadd.s32 %v2347, 127
    %v2349 = vshll.u32 %v2348, 23
    %v2350 = vor.u32 4788187, %v2349
    %v2351 = vand.u32 2147483647, %v2350
    %v2353 = vcvt.s32.f32 %v2346
    %v2354 = vmul.f32 %v2353, %v2351
    %v2355 = vxor.u32 %v2354, 2147483648
    %v2356 = vsel %vm2273, %v2355, %v2354
    %v2357 = vsub.s32 4, %v2333
    %v2358 = vsel %vm2273, %v2357, %v2333
    %v2359 = vsel %vm2272, %v1651, %v2356
    %v2360 = vsel %vm2272, 0, %v2358
    %v2361 = vcosq.f32.pop %v2359
    %v2362 = vsinq.f32.pop %v2359
    %vm2363 = vweird.f32 %v1651
    %v2364 = vand.u32 %v2360, 3
    %vm2365 = vcmp.lt.s32.totalorder %v2364, 2
    %vm2366 = vcmp.eq.s32.totalorder %v2364, 0
    %v2367 = vxor.u32 %v2362, 2147483648
    %v2368 = vsel %vm2366, %v2361, %v2367
    %vm2369 = vcmp.eq.s32.totalorder %v2364, 2
    %v2370 = vxor.u32 %v2361, 2147483648
    %v2371 = vsel %vm2369, %v2370, %v2362
    %v2372 = vsel %vm2365, %v2368, %v2371
    %v2373 = vsel %vm2363, nan, %v2372
    %v2374 = vand.u32 2147483647, %v1652
    %vm2375 = vcmp.le.f32.partialorder %v2374, 0.7853982
    %vm2376 = vcmp.lt.s32.totalorder %v1652, 0
    %v2377 = vand.u32 %v1652, 2139095040
    %v2378 = vshrl.u32 %v2377, 23
    %v2379 = vsub.s32 %v2378, 127
    %v2380 = vand.u32 2147483647, %v1652
    %v2381 = vand.u32 %v2380, 8388607
    %v2382 = vor.u32 %v2381, 8388608
    %v2383 = vsub.s32 0, %v2382
    %v2384 = vadd.s32 %v2379, 1
    %vm2385 = vcmp.gt.s32.totalorder %v2384, 0
    %v2386 = vsel %vm2385, %v2384, 0
    %v2387 = vshrl.u32 %v2386, 5
    %v2388 = vand.u32 %v2386, 31
    %v2389 = vsub.s32 32, %v2388
    %v2390 = vshrl.u32 683565275, %v2389
    %v2391 = vshll.u32 683565275, %v2388
    %v2392 = vshrl.u32 2475754826, %v2389
    %v2393 = vor.u32 %v2391, %v2392
    %v2394 = vshll.u32 2475754826, %v2388
    %v2395 = vshrl.u32 2131351028, %v2389
    %v2396 = vor.u32 %v2394, %v2395
    %v2397 = vshll.u32 2131351028, %v2388
    %v2398 = vshrl.u32 2102212464, %v2389
    %v2399 = vor.u32 %v2397, %v2398
    %v2400 = vshll.u32 2102212464, %v2388
    %v2401 = vshrl.u32 920167782, %v2389
    %v2402 = vor.u32 %v2400, %v2401
    %v2403 = vshll.u32 920167782, %v2388
    %v2404 = vshrl.u32 1326507024, %v2389
    %v2405 = vor.u32 %v2403, %v2404
    %vm2406 = vcmp.lt.s32.totalorder %v2387, 1
    %vm2407 = vcmp.lt.s32.totalorder %v2387, 2
    %vm2408 = vcmp.lt.s32.totalorder %v2387, 3
    %vm2409 = vcmp.lt.s32.totalorder %v2387, 4
    %v2410 = vsel %vm2406, %v2390, %v2393
    %v2411 = vsel %vm2409, %v2399, 2102212464
    %v2412 = vsel %vm2408, %v2396, %v2411
    %v2413 = vsel %vm2407, %v2410, %v2412
    %v2414 = vsel %vm2406, %v2393, %v2396
    %v2415 = vsel %vm2409, %v2402, 920167782
    %v2416 = vsel %vm2408, %v2399, %v2415
    %v2417 = vsel %vm2407, %v2414, %v2416
    %v2418 = vsel %vm2406, %v2396, %v2399
    %v2419 = vsel %vm2409, %v2405, 1326507024
    %v2420 = vsel %vm2408, %v2402, %v2419
    %v2421 = vsel %vm2407, %v2418, %v2420
    %v2422 = vshll.u32 %v2382, 8
    %v2423 = vmul.u32.u64.compose %v2422, %v2421
    %v2424 = vextract.low.u32 %v2423
    %v2425 = vextract.high.u32 %v2423
    %v2426 = vmul.u32.u64.compose %v2422, %v2417
    %v2427 = vextract.low.u32 %v2426
    %v2428 = vextract.high.u32 %v2426
    %v2429 = vmul.u32 %v2422, %v2413
    %v2430 = vadd.s32 %v2425, %v2427
    %vm2431 = vc.u32 %v2425, %v2427
    %v2432 = vadd.s32 %v2428, 1
    %v2433 = vsel %vm2431, %v2432, %v2428
    %v2434 = vadd.s32 %v2429, %v2433
    %v2435 = vadd.s32 %v2434, 536870912
    %v2436 = vshrl.u32 %v2435, 30
    %v2437 = vshll.u32 %v2436, 30
    %v2438 = vsub.s32 %v2434, %v2437
    %vm2439 = vcmp.lt.s32.totalorder %v2438, 0
    %v2440 = vsub.s32 0, %v2438
    %v2441 = vsel %vm2439, %v2440, %v2438
    %v2442 = vclz %v2441
    %v2443 = vsub.s32 %v2442, 2
    %vm2444 = vcmp.gt.s32.totalorder 0, %v2443
    %v2445 = vsel %vm2444, 0, %v2443
    %v2446 = vsub.s32 32, %v2445
    %v2447 = vshll.u32 %v2438, %v2445
    %v2448 = vshrl.u32 %v2430, %v2446
    %v2449 = vor.u32 %v2447, %v2448
    %v2450 = vsub.s32 4294967266, %v2445
    %v2451 = vadd.s32 %v2450, 127
    %v2452 = vshll.u32 %v2451, 23
    %v2453 = vor.u32 4788187, %v2452
    %v2454 = vand.u32 2147483647, %v2453
    %v2456 = vcvt.s32.f32 %v2449
    %v2457 = vmul.f32 %v2456, %v2454
    %v2458 = vxor.u32 %v2457, 2147483648
    %v2459 = vsel %vm2376, %v2458, %v2457
    %v2460 = vsub.s32 4, %v2436
    %v2461 = vsel %vm2376, %v2460, %v2436
    %v2462 = vsel %vm2375, %v1652, %v2459
    %v2463 = vsel %vm2375, 0, %v2461
    %v2464 = vcosq.f32.pop %v2462
    %v2465 = vsinq.f32.pop %v2462
    %vm2466 = vweird.f32 %v1652
    %v2467 = vand.u32 %v2463, 3
    %vm2468 = vcmp.lt.s32.totalorder %v2467, 2
    %vm2469 = vcmp.eq.s32.totalorder %v2467, 0
    %v2470 = vxor.u32 %v2465, 2147483648
    %v2471 = vsel %vm2469, %v2464, %v2470
    %vm2472 = vcmp.eq.s32.totalorder %v2467, 2
    %v2473 = vxor.u32 %v2464, 2147483648
    %v2474 = vsel %vm2472, %v2473, %v2465
    %v2475 = vsel %vm2468, %v2471, %v2474
    %v2476 = vsel %vm2466, nan, %v2475
    %v2477 = vadd.f32 %v1755, %v2167
    %v2478 = vrot.slane %v2477, 4
    %v2479 = vadd.f32 %v2477, %v2478
    %v2480 = vrot.slane %v2479, 2
    %v2481 = vadd.f32 %v2479, %v2480
    %v2482 = vrot.slane %v2481, 1
    %v2483 = vadd.f32 %v2481, %v2482
    %v2484 = vadd.f32 %v1858, %v2270
    %v2485 = vrot.slane %v2484, 4
    %v2486 = vadd.f32 %v2484, %v2485
    %v2487 = vrot.slane %v2486, 2
    %v2488 = vadd.f32 %v2486, %v2487
    %v2489 = vrot.slane %v2488, 1
    %v2490 = vadd.f32 %v2488, %v2489
    %v2491 = vadd.f32 %v1961, %v2373
    %v2492 = vrot.slane %v2491, 4
    %v2493 = vadd.f32 %v2491, %v2492
    %v2494 = vrot.slane %v2493, 2
    %v2495 = vadd.f32 %v2493, %v2494
    %v2496 = vrot.slane %v2495, 1
    %v2497 = vadd.f32 %v2495, %v2496
    %v2498 = vadd.f32 %v2064, %v2476
    %v2499 = vrot.slane %v2498, 4
    %v2500 = vadd.f32 %v2498, %v2499
    %v2501 = vrot.slane %v2500, 2
    %v2502 = vadd.f32 %v2500, %v2501
    %v2503 = vrot.slane %v2502, 1
    %v2504 = vadd.f32 %v2502, %v2503
    %v2505 = vand.u32 2147483647, %v1645
    %vm2506 = vcmp.le.f32.partialorder %v2505, 0.7853982
    %vm2507 = vcmp.lt.s32.totalorder %v1645, 0
    %v2508 = vand.u32 %v1645, 2139095040
    %v2509 = vshrl.u32 %v2508, 23
    %v2510 = vsub.s32 %v2509, 127
    %v2511 = vand.u32 2147483647, %v1645
    %v2512 = vand.u32 %v2511, 8388607
    %v2513 = vor.u32 %v2512, 8388608
    %v2514 = vsub.s32 0, %v2513
    %v2515 = vadd.s32 %v2510, 1
    %vm2516 = vcmp.gt.s32.totalorder %v2515, 0
    %v2517 = vsel %vm2516, %v2515, 0
    %v2518 = vshrl.u32 %v2517, 5
    %v2519 = vand.u32 %v2517, 31
    %v2520 = vsub.s32 32, %v2519
    %v2521 = vshrl.u32 683565275, %v2520
    %v2522 = vshll.u32 683565275, %v2519
    %v2523 = vshrl.u32 2475754826, %v2520
    %v2524 = vor.u32 %v2522, %v2523
    %v2525 = vshll.u32 2475754826, %v2519
    %v2526 = vshrl.u32 2131351028, %v2520
    %v2527 = vor.u32 %v2525, %v2526
    %v2528 = vshll.u32 2131351028, %v2519
    %v2529 = vshrl.u32 2102212464, %v2520
    %v2530 = vor.u32 %v2528, %v2529
    %v2531 = vshll.u32 2102212464, %v2519
    %v2532 = vshrl.u32 920167782, %v2520
    %v2533 = vor.u32 %v2531, %v2532
    %v2534 = vshll.u32 920167782, %v2519
    %v2535 = vshrl.u32 1326507024, %v2520
    %v2536 = vor.u32 %v2534, %v2535
    %vm2537 = vcmp.lt.s32.totalorder %v2518, 1
    %vm2538 = vcmp.lt.s32.totalorder %v2518, 2
    %vm2539 = vcmp.lt.s32.totalorder %v2518, 3
    %vm2540 = vcmp.lt.s32.totalorder %v2518, 4
    %v2541 = vsel %vm2537, %v2521, %v2524
    %v2542 = vsel %vm2540, %v2530, 2102212464
    %v2543 = vsel %vm2539, %v2527, %v2542
    %v2544 = vsel %vm2538, %v2541, %v2543
    %v2545 = vsel %vm2537, %v2524, %v2527
    %v2546 = vsel %vm2540, %v2533, 920167782
    %v2547 = vsel %vm2539, %v2530, %v2546
    %v2548 = vsel %vm2538, %v2545, %v2547
    %v2549 = vsel %vm2537, %v2527, %v2530
    %v2550 = vsel %vm2540, %v2536, 1326507024
    %v2551 = vsel %vm2539, %v2533, %v2550
    %v2552 = vsel %vm2538, %v2549, %v2551
    %v2553 = vshll.u32 %v2513, 8
    %v2554 = vmul.u32.u64.compose %v2553, %v2552
    %v2555 = vextract.low.u32 %v2554
    %v2556 = vextract.high.u32 %v2554
    %v2557 = vmul.u32.u64.compose %v2553, %v2548
    %v2558 = vextract.low.u32 %v2557
    %v2559 = vextract.high.u32 %v2557
    %v2560 = vmul.u32 %v2553, %v2544
    %v2561 = vadd.s32 %v2556, %v2558
    %vm2562 = vc.u32 %v2556, %v2558
    %v2563 = vadd.s32 %v2559, 1
    %v2564 = vsel %vm2562, %v2563, %v2559
    %v2565 = vadd.s32 %v2560, %v2564
    %v2566 = vadd.s32 %v2565, 536870912
    %v2567 = vshrl.u32 %v2566, 30
    %v2568 = vshll.u32 %v2567, 30
    %v2569 = vsub.s32 %v2565, %v2568
    %vm2570 = vcmp.lt.s32.totalorder %v2569, 0
    %v2571 = vsub.s32 0, %v2569
    %v2572 = vsel %vm2570, %v2571, %v2569
    %v2573 = vclz %v2572
    %v2574 = vsub.s32 %v2573, 2
    %vm2575 = vcmp.gt.s32.totalorder 0, %v2574
    %v2576 = vsel %vm2575, 0, %v2574
    %v2577 = vsub.s32 32, %v2576
    %v2578 = vshll.u32 %v2569, %v2576
    %v2579 = vshrl.u32 %v2561, %v2577
    %v2580 = vor.u32 %v2578, %v2579
    %v2581 = vsub.s32 4294967266, %v2576
    %v2582 = vadd.s32 %v2581, 127
    %v2583 = vshll.u32 %v2582, 23
    %v2584 = vor.u32 4788187, %v2583
    %v2585 = vand.u32 2147483647, %v2584
    %v2587 = vcvt.s32.f32 %v2580
    %v2588 = vmul.f32 %v2587, %v2585
    %v2589 = vxor.u32 %v2588, 2147483648
    %v2590 = vsel %vm2507, %v2589, %v2588
    %v2591 = vsub.s32 4, %v2567
    %v2592 = vsel %vm2507, %v2591, %v2567
    %v2593 = vsel %vm2506, %v1645, %v2590
    %v2594 = vsel %vm2506, 0, %v2592
    %v2595 = vcosq.f32.pop %v2593
    %v2596 = vsinq.f32.pop %v2593
    %vm2597 = vweird.f32 %v1645
    %v2598 = vadd.s32 %v2594, 3
    %v2599 = vand.u32 %v2598, 3
    %vm2600 = vcmp.lt.s32.totalorder %v2599, 2
    %vm2601 = vcmp.eq.s32.totalorder %v2599, 0
    %v2602 = vxor.u32 %v2596, 2147483648
    %v2603 = vsel %vm2601, %v2595, %v2602
    %vm2604 = vcmp.eq.s32.totalorder %v2599, 2
    %v2605 = vxor.u32 %v2595, 2147483648
    %v2606 = vsel %vm2604, %v2605, %v2596
    %v2607 = vsel %vm2600, %v2603, %v2606
    %v2608 = vsel %vm2597, nan, %v2607
    %v2609 = vand.u32 2147483647, %v1646
    %vm2610 = vcmp.le.f32.partialorder %v2609, 0.7853982
    %vm2611 = vcmp.lt.s32.totalorder %v1646, 0
    %v2612 = vand.u32 %v1646, 2139095040
    %v2613 = vshrl.u32 %v2612, 23
    %v2614 = vsub.s32 %v2613, 127
    %v2615 = vand.u32 2147483647, %v1646
    %v2616 = vand.u32 %v2615, 8388607
    %v2617 = vor.u32 %v2616, 8388608
    %v2618 = vsub.s32 0, %v2617
    %v2619 = vadd.s32 %v2614, 1
    %vm2620 = vcmp.gt.s32.totalorder %v2619, 0
    %v2621 = vsel %vm2620, %v2619, 0
    %v2622 = vshrl.u32 %v2621, 5
    %v2623 = vand.u32 %v2621, 31
    %v2624 = vsub.s32 32, %v2623
    %v2625 = vshrl.u32 683565275, %v2624
    %v2626 = vshll.u32 683565275, %v2623
    %v2627 = vshrl.u32 2475754826, %v2624
    %v2628 = vor.u32 %v2626, %v2627
    %v2629 = vshll.u32 2475754826, %v2623
    %v2630 = vshrl.u32 2131351028, %v2624
    %v2631 = vor.u32 %v2629, %v2630
    %v2632 = vshll.u32 2131351028, %v2623
    %v2633 = vshrl.u32 2102212464, %v2624
    %v2634 = vor.u32 %v2632, %v2633
    %v2635 = vshll.u32 2102212464, %v2623
    %v2636 = vshrl.u32 920167782, %v2624
    %v2637 = vor.u32 %v2635, %v2636
    %v2638 = vshll.u32 920167782, %v2623
    %v2639 = vshrl.u32 1326507024, %v2624
    %v2640 = vor.u32 %v2638, %v2639
    %vm2641 = vcmp.lt.s32.totalorder %v2622, 1
    %vm2642 = vcmp.lt.s32.totalorder %v2622, 2
    %vm2643 = vcmp.lt.s32.totalorder %v2622, 3
    %vm2644 = vcmp.lt.s32.totalorder %v2622, 4
    %v2645 = vsel %vm2641, %v2625, %v2628
    %v2646 = vsel %vm2644, %v2634, 2102212464
    %v2647 = vsel %vm2643, %v2631, %v2646
    %v2648 = vsel %vm2642, %v2645, %v2647
    %v2649 = vsel %vm2641, %v2628, %v2631
    %v2650 = vsel %vm2644, %v2637, 920167782
    %v2651 = vsel %vm2643, %v2634, %v2650
    %v2652 = vsel %vm2642, %v2649, %v2651
    %v2653 = vsel %vm2641, %v2631, %v2634
    %v2654 = vsel %vm2644, %v2640, 1326507024
    %v2655 = vsel %vm2643, %v2637, %v2654
    %v2656 = vsel %vm2642, %v2653, %v2655
    %v2657 = vshll.u32 %v2617, 8
    %v2658 = vmul.u32.u64.compose %v2657, %v2656
    %v2659 = vextract.low.u32 %v2658
    %v2660 = vextract.high.u32 %v2658
    %v2661 = vmul.u32.u64.compose %v2657, %v2652
    %v2662 = vextract.low.u32 %v2661
    %v2663 = vextract.high.u32 %v2661
    %v2664 = vmul.u32 %v2657, %v2648
    %v2665 = vadd.s32 %v2660, %v2662
    %vm2666 = vc.u32 %v2660, %v2662
    %v2667 = vadd.s32 %v2663, 1
    %v2668 = vsel %vm2666, %v2667, %v2663
    %v2669 = vadd.s32 %v2664, %v2668
    %v2670 = vadd.s32 %v2669, 536870912
    %v2671 = vshrl.u32 %v2670, 30
    %v2672 = vshll.u32 %v2671, 30
    %v2673 = vsub.s32 %v2669, %v2672
    %vm2674 = vcmp.lt.s32.totalorder %v2673, 0
    %v2675 = vsub.s32 0, %v2673
    %v2676 = vsel %vm2674, %v2675, %v2673
    %v2677 = vclz %v2676
    %v2678 = vsub.s32 %v2677, 2
    %vm2679 = vcmp.gt.s32.totalorder 0, %v2678
    %v2680 = vsel %vm2679, 0, %v2678
    %v2681 = vsub.s32 32, %v2680
    %v2682 = vshll.u32 %v2673, %v2680
    %v2683 = vshrl.u32 %v2665, %v2681
    %v2684 = vor.u32 %v2682, %v2683
    %v2685 = vsub.s32 4294967266, %v2680
    %v2686 = vadd.s32 %v2685, 127
    %v2687 = vshll.u32 %v2686, 23
    %v2688 = vor.u32 4788187, %v2687
    %v2689 = vand.u32 2147483647, %v2688
    %v2691 = vcvt.s32.f32 %v2684
    %v2692 = vmul.f32 %v2691, %v2689
    %v2693 = vxor.u32 %v2692, 2147483648
    %v2694 = vsel %vm2611, %v2693, %v2692
    %v2695 = vsub.s32 4, %v2671
    %v2696 = vsel %vm2611, %v2695, %v2671
    %v2697 = vsel %vm2610, %v1646, %v2694
    %v2698 = vsel %vm2610, 0, %v2696
    %v2699 = vcosq.f32.pop %v2697
    %v2700 = vsinq.f32.pop %v2697
    %vm2701 = vweird.f32 %v1646
    %v2702 = vadd.s32 %v2698, 3
    %v2703 = vand.u32 %v2702, 3
    %vm2704 = vcmp.lt.s32.totalorder %v2703, 2
    %vm2705 = vcmp.eq.s32.totalorder %v2703, 0
    %v2706 = vxor.u32 %v2700, 2147483648
    %v2707 = vsel %vm2705, %v2699, %v2706
    %vm2708 = vcmp.eq.s32.totalorder %v2703, 2
    %v2709 = vxor.u32 %v2699, 2147483648
    %v2710 = vsel %vm2708, %v2709, %v2700
    %v2711 = vsel %vm2704, %v2707, %v2710
    %v2712 = vsel %vm2701, nan, %v2711
    %v2713 = vand.u32 2147483647, %v1647
    %vm2714 = vcmp.le.f32.partialorder %v2713, 0.7853982
    %vm2715 = vcmp.lt.s32.totalorder %v1647, 0
    %v2716 = vand.u32 %v1647, 2139095040
    %v2717 = vshrl.u32 %v2716, 23
    %v2718 = vsub.s32 %v2717, 127
    %v2719 = vand.u32 2147483647, %v1647
    %v2720 = vand.u32 %v2719, 8388607
    %v2721 = vor.u32 %v2720, 8388608
    %v2722 = vsub.s32 0, %v2721
    %v2723 = vadd.s32 %v2718, 1
    %vm2724 = vcmp.gt.s32.totalorder %v2723, 0
    %v2725 = vsel %vm2724, %v2723, 0
    %v2726 = vshrl.u32 %v2725, 5
    %v2727 = vand.u32 %v2725, 31
    %v2728 = vsub.s32 32, %v2727
    %v2729 = vshrl.u32 683565275, %v2728
    %v2730 = vshll.u32 683565275, %v2727
    %v2731 = vshrl.u32 2475754826, %v2728
    %v2732 = vor.u32 %v2730, %v2731
    %v2733 = vshll.u32 2475754826, %v2727
    %v2734 = vshrl.u32 2131351028, %v2728
    %v2735 = vor.u32 %v2733, %v2734
    %v2736 = vshll.u32 2131351028, %v2727
    %v2737 = vshrl.u32 2102212464, %v2728
    %v2738 = vor.u32 %v2736, %v2737
    %v2739 = vshll.u32 2102212464, %v2727
    %v2740 = vshrl.u32 920167782, %v2728
    %v2741 = vor.u32 %v2739, %v2740
    %v2742 = vshll.u32 920167782, %v2727
    %v2743 = vshrl.u32 1326507024, %v2728
    %v2744 = vor.u32 %v2742, %v2743
    %vm2745 = vcmp.lt.s32.totalorder %v2726, 1
    %vm2746 = vcmp.lt.s32.totalorder %v2726, 2
    %vm2747 = vcmp.lt.s32.totalorder %v2726, 3
    %vm2748 = vcmp.lt.s32.totalorder %v2726, 4
    %v2749 = vsel %vm2745, %v2729, %v2732
    %v2750 = vsel %vm2748, %v2738, 2102212464
    %v2751 = vsel %vm2747, %v2735, %v2750
    %v2752 = vsel %vm2746, %v2749, %v2751
    %v2753 = vsel %vm2745, %v2732, %v2735
    %v2754 = vsel %vm2748, %v2741, 920167782
    %v2755 = vsel %vm2747, %v2738, %v2754
    %v2756 = vsel %vm2746, %v2753, %v2755
    %v2757 = vsel %vm2745, %v2735, %v2738
    %v2758 = vsel %vm2748, %v2744, 1326507024
    %v2759 = vsel %vm2747, %v2741, %v2758
    %v2760 = vsel %vm2746, %v2757, %v2759
    %v2761 = vshll.u32 %v2721, 8
    %v2762 = vmul.u32.u64.compose %v2761, %v2760
    %v2763 = vextract.low.u32 %v2762
    %v2764 = vextract.high.u32 %v2762
    %v2765 = vmul.u32.u64.compose %v2761, %v2756
    %v2766 = vextract.low.u32 %v2765
    %v2767 = vextract.high.u32 %v2765
    %v2768 = vmul.u32 %v2761, %v2752
    %v2769 = vadd.s32 %v2764, %v2766
    %vm2770 = vc.u32 %v2764, %v2766
    %v2771 = vadd.s32 %v2767, 1
    %v2772 = vsel %vm2770, %v2771, %v2767
    %v2773 = vadd.s32 %v2768, %v2772
    %v2774 = vadd.s32 %v2773, 536870912
    %v2775 = vshrl.u32 %v2774, 30
    %v2776 = vshll.u32 %v2775, 30
    %v2777 = vsub.s32 %v2773, %v2776
    %vm2778 = vcmp.lt.s32.totalorder %v2777, 0
    %v2779 = vsub.s32 0, %v2777
    %v2780 = vsel %vm2778, %v2779, %v2777
    %v2781 = vclz %v2780
    %v2782 = vsub.s32 %v2781, 2
    %vm2783 = vcmp.gt.s32.totalorder 0, %v2782
    %v2784 = vsel %vm2783, 0, %v2782
    %v2785 = vsub.s32 32, %v2784
    %v2786 = vshll.u32 %v2777, %v2784
    %v2787 = vshrl.u32 %v2769, %v2785
    %v2788 = vor.u32 %v2786, %v2787
    %v2789 = vsub.s32 4294967266, %v2784
    %v2790 = vadd.s32 %v2789, 127
    %v2791 = vshll.u32 %v2790, 23
    %v2792 = vor.u32 4788187, %v2791
    %v2793 = vand.u32 2147483647, %v2792
    %v2795 = vcvt.s32.f32 %v2788
    %v2796 = vmul.f32 %v2795, %v2793
    %v2797 = vxor.u32 %v2796, 2147483648
    %v2798 = vsel %vm2715, %v2797, %v2796
    %v2799 = vsub.s32 4, %v2775
    %v2800 = vsel %vm2715, %v2799, %v2775
    %v2801 = vsel %vm2714, %v1647, %v2798
    %v2802 = vsel %vm2714, 0, %v2800
    %v2803 = vcosq.f32.pop %v2801
    %v2804 = vsinq.f32.pop %v2801
    %vm2805 = vweird.f32 %v1647
    %v2806 = vadd.s32 %v2802, 3
    %v2807 = vand.u32 %v2806, 3
    %vm2808 = vcmp.lt.s32.totalorder %v2807, 2
    %vm2809 = vcmp.eq.s32.totalorder %v2807, 0
    %v2810 = vxor.u32 %v2804, 2147483648
    %v2811 = vsel %vm2809, %v2803, %v2810
    %vm2812 = vcmp.eq.s32.totalorder %v2807, 2
    %v2813 = vxor.u32 %v2803, 2147483648
    %v2814 = vsel %vm2812, %v2813, %v2804
    %v2815 = vsel %vm2808, %v2811, %v2814
    %v2816 = vsel %vm2805, nan, %v2815
    %v2817 = vand.u32 2147483647, %v1648
    %vm2818 = vcmp.le.f32.partialorder %v2817, 0.7853982
    %vm2819 = vcmp.lt.s32.totalorder %v1648, 0
    %v2820 = vand.u32 %v1648, 2139095040
    %v2821 = vshrl.u32 %v2820, 23
    %v2822 = vsub.s32 %v2821, 127
    %v2823 = vand.u32 2147483647, %v1648
    %v2824 = vand.u32 %v2823, 8388607
    %v2825 = vor.u32 %v2824, 8388608
    %v2826 = vsub.s32 0, %v2825
    %v2827 = vadd.s32 %v2822, 1
    %vm2828 = vcmp.gt.s32.totalorder %v2827, 0
    %v2829 = vsel %vm2828, %v2827, 0
    %v2830 = vshrl.u32 %v2829, 5
    %v2831 = vand.u32 %v2829, 31
    %v2832 = vsub.s32 32, %v2831
    %v2833 = vshrl.u32 683565275, %v2832
    %v2834 = vshll.u32 683565275, %v2831
    %v2835 = vshrl.u32 2475754826, %v2832
    %v2836 = vor.u32 %v2834, %v2835
    %v2837 = vshll.u32 2475754826, %v2831
    %v2838 = vshrl.u32 2131351028, %v2832
    %v2839 = vor.u32 %v2837, %v2838
    %v2840 = vshll.u32 2131351028, %v2831
    %v2841 = vshrl.u32 2102212464, %v2832
    %v2842 = vor.u32 %v2840, %v2841
    %v2843 = vshll.u32 2102212464, %v2831
    %v2844 = vshrl.u32 920167782, %v2832
    %v2845 = vor.u32 %v2843, %v2844
    %v2846 = vshll.u32 920167782, %v2831
    %v2847 = vshrl.u32 1326507024, %v2832
    %v2848 = vor.u32 %v2846, %v2847
    %vm2849 = vcmp.lt.s32.totalorder %v2830, 1
    %vm2850 = vcmp.lt.s32.totalorder %v2830, 2
    %vm2851 = vcmp.lt.s32.totalorder %v2830, 3
    %vm2852 = vcmp.lt.s32.totalorder %v2830, 4
    %v2853 = vsel %vm2849, %v2833, %v2836
    %v2854 = vsel %vm2852, %v2842, 2102212464
    %v2855 = vsel %vm2851, %v2839, %v2854
    %v2856 = vsel %vm2850, %v2853, %v2855
    %v2857 = vsel %vm2849, %v2836, %v2839
    %v2858 = vsel %vm2852, %v2845, 920167782
    %v2859 = vsel %vm2851, %v2842, %v2858
    %v2860 = vsel %vm2850, %v2857, %v2859
    %v2861 = vsel %vm2849, %v2839, %v2842
    %v2862 = vsel %vm2852, %v2848, 1326507024
    %v2863 = vsel %vm2851, %v2845, %v2862
    %v2864 = vsel %vm2850, %v2861, %v2863
    %v2865 = vshll.u32 %v2825, 8
    %v2866 = vmul.u32.u64.compose %v2865, %v2864
    %v2867 = vextract.low.u32 %v2866
    %v2868 = vextract.high.u32 %v2866
    %v2869 = vmul.u32.u64.compose %v2865, %v2860
    %v2870 = vextract.low.u32 %v2869
    %v2871 = vextract.high.u32 %v2869
    %v2872 = vmul.u32 %v2865, %v2856
    %v2873 = vadd.s32 %v2868, %v2870
    %vm2874 = vc.u32 %v2868, %v2870
    %v2875 = vadd.s32 %v2871, 1
    %v2876 = vsel %vm2874, %v2875, %v2871
    %v2877 = vadd.s32 %v2872, %v2876
    %v2878 = vadd.s32 %v2877, 536870912
    %v2879 = vshrl.u32 %v2878, 30
    %v2880 = vshll.u32 %v2879, 30
    %v2881 = vsub.s32 %v2877, %v2880
    %vm2882 = vcmp.lt.s32.totalorder %v2881, 0
    %v2883 = vsub.s32 0, %v2881
    %v2884 = vsel %vm2882, %v2883, %v2881
    %v2885 = vclz %v2884
    %v2886 = vsub.s32 %v2885, 2
    %vm2887 = vcmp.gt.s32.totalorder 0, %v2886
    %v2888 = vsel %vm2887, 0, %v2886
    %v2889 = vsub.s32 32, %v2888
    %v2890 = vshll.u32 %v2881, %v2888
    %v2891 = vshrl.u32 %v2873, %v2889
    %v2892 = vor.u32 %v2890, %v2891
    %v2893 = vsub.s32 4294967266, %v2888
    %v2894 = vadd.s32 %v2893, 127
    %v2895 = vshll.u32 %v2894, 23
    %v2896 = vor.u32 4788187, %v2895
    %v2897 = vand.u32 2147483647, %v2896
    %v2899 = vcvt.s32.f32 %v2892
    %v2900 = vmul.f32 %v2899, %v2897
    %v2901 = vxor.u32 %v2900, 2147483648
    %v2902 = vsel %vm2819, %v2901, %v2900
    %v2903 = vsub.s32 4, %v2879
    %v2904 = vsel %vm2819, %v2903, %v2879
    %v2905 = vsel %vm2818, %v1648, %v2902
    %v2906 = vsel %vm2818, 0, %v2904
    %v2907 = vcosq.f32.pop %v2905
    %v2908 = vsinq.f32.pop %v2905
    %vm2909 = vweird.f32 %v1648
    %v2910 = vadd.s32 %v2906, 3
    %v2911 = vand.u32 %v2910, 3
    %vm2912 = vcmp.lt.s32.totalorder %v2911, 2
    %vm2913 = vcmp.eq.s32.totalorder %v2911, 0
    %v2914 = vxor.u32 %v2908, 2147483648
    %v2915 = vsel %vm2913, %v2907, %v2914
    %vm2916 = vcmp.eq.s32.totalorder %v2911, 2
    %v2917 = vxor.u32 %v2907, 2147483648
    %v2918 = vsel %vm2916, %v2917, %v2908
    %v2919 = vsel %vm2912, %v2915, %v2918
    %v2920 = vsel %vm2909, nan, %v2919
    %v2921 = vand.u32 2147483647, %v1649
    %vm2922 = vcmp.le.f32.partialorder %v2921, 0.7853982
    %vm2923 = vcmp.lt.s32.totalorder %v1649, 0
    %v2924 = vand.u32 %v1649, 2139095040
    %v2925 = vshrl.u32 %v2924, 23
    %v2926 = vsub.s32 %v2925, 127
    %v2927 = vand.u32 2147483647, %v1649
    %v2928 = vand.u32 %v2927, 8388607
    %v2929 = vor.u32 %v2928, 8388608
    %v2930 = vsub.s32 0, %v2929
    %v2931 = vadd.s32 %v2926, 1
    %vm2932 = vcmp.gt.s32.totalorder %v2931, 0
    %v2933 = vsel %vm2932, %v2931, 0
    %v2934 = vshrl.u32 %v2933, 5
    %v2935 = vand.u32 %v2933, 31
    %v2936 = vsub.s32 32, %v2935
    %v2937 = vshrl.u32 683565275, %v2936
    %v2938 = vshll.u32 683565275, %v2935
    %v2939 = vshrl.u32 2475754826, %v2936
    %v2940 = vor.u32 %v2938, %v2939
    %v2941 = vshll.u32 2475754826, %v2935
    %v2942 = vshrl.u32 2131351028, %v2936
    %v2943 = vor.u32 %v2941, %v2942
    %v2944 = vshll.u32 2131351028, %v2935
    %v2945 = vshrl.u32 2102212464, %v2936
    %v2946 = vor.u32 %v2944, %v2945
    %v2947 = vshll.u32 2102212464, %v2935
    %v2948 = vshrl.u32 920167782, %v2936
    %v2949 = vor.u32 %v2947, %v2948
    %v2950 = vshll.u32 920167782, %v2935
    %v2951 = vshrl.u32 1326507024, %v2936
    %v2952 = vor.u32 %v2950, %v2951
    %vm2953 = vcmp.lt.s32.totalorder %v2934, 1
    %vm2954 = vcmp.lt.s32.totalorder %v2934, 2
    %vm2955 = vcmp.lt.s32.totalorder %v2934, 3
    %vm2956 = vcmp.lt.s32.totalorder %v2934, 4
    %v2957 = vsel %vm2953, %v2937, %v2940
    %v2958 = vsel %vm2956, %v2946, 2102212464
    %v2959 = vsel %vm2955, %v2943, %v2958
    %v2960 = vsel %vm2954, %v2957, %v2959
    %v2961 = vsel %vm2953, %v2940, %v2943
    %v2962 = vsel %vm2956, %v2949, 920167782
    %v2963 = vsel %vm2955, %v2946, %v2962
    %v2964 = vsel %vm2954, %v2961, %v2963
    %v2965 = vsel %vm2953, %v2943, %v2946
    %v2966 = vsel %vm2956, %v2952, 1326507024
    %v2967 = vsel %vm2955, %v2949, %v2966
    %v2968 = vsel %vm2954, %v2965, %v2967
    %v2969 = vshll.u32 %v2929, 8
    %v2970 = vmul.u32.u64.compose %v2969, %v2968
    %v2971 = vextract.low.u32 %v2970
    %v2972 = vextract.high.u32 %v2970
    %v2973 = vmul.u32.u64.compose %v2969, %v2964
    %v2974 = vextract.low.u32 %v2973
    %v2975 = vextract.high.u32 %v2973
    %v2976 = vmul.u32 %v2969, %v2960
    %v2977 = vadd.s32 %v2972, %v2974
    %vm2978 = vc.u32 %v2972, %v2974
    %v2979 = vadd.s32 %v2975, 1
    %v2980 = vsel %vm2978, %v2979, %v2975
    %v2981 = vadd.s32 %v2976, %v2980
    %v2982 = vadd.s32 %v2981, 536870912
    %v2983 = vshrl.u32 %v2982, 30
    %v2984 = vshll.u32 %v2983, 30
    %v2985 = vsub.s32 %v2981, %v2984
    %vm2986 = vcmp.lt.s32.totalorder %v2985, 0
    %v2987 = vsub.s32 0, %v2985
    %v2988 = vsel %vm2986, %v2987, %v2985
    %v2989 = vclz %v2988
    %v2990 = vsub.s32 %v2989, 2
    %vm2991 = vcmp.gt.s32.totalorder 0, %v2990
    %v2992 = vsel %vm2991, 0, %v2990
    %v2993 = vsub.s32 32, %v2992
    %v2994 = vshll.u32 %v2985, %v2992
    %v2995 = vshrl.u32 %v2977, %v2993
    %v2996 = vor.u32 %v2994, %v2995
    %v2997 = vsub.s32 4294967266, %v2992
    %v2998 = vadd.s32 %v2997, 127
    %v2999 = vshll.u32 %v2998, 23
    %v3000 = vor.u32 4788187, %v2999
    %v3001 = vand.u32 2147483647, %v3000
    %v3003 = vcvt.s32.f32 %v2996
    %v3004 = vmul.f32 %v3003, %v3001
    %v3005 = vxor.u32 %v3004, 2147483648
    %v3006 = vsel %vm2923, %v3005, %v3004
    %v3007 = vsub.s32 4, %v2983
    %v3008 = vsel %vm2923, %v3007, %v2983
    %v3009 = vsel %vm2922, %v1649, %v3006
    %v3010 = vsel %vm2922, 0, %v3008
    %v3011 = vcosq.f32.pop %v3009
    %v3012 = vsinq.f32.pop %v3009
    %vm3013 = vweird.f32 %v1649
    %v3014 = vadd.s32 %v3010, 3
    %v3015 = vand.u32 %v3014, 3
    %vm3016 = vcmp.lt.s32.totalorder %v3015, 2
    %vm3017 = vcmp.eq.s32.totalorder %v3015, 0
    %v3018 = vxor.u32 %v3012, 2147483648
    %v3019 = vsel %vm3017, %v3011, %v3018
    %vm3020 = vcmp.eq.s32.totalorder %v3015, 2
    %v3021 = vxor.u32 %v3011, 2147483648
    %v3022 = vsel %vm3020, %v3021, %v3012
    %v3023 = vsel %vm3016, %v3019, %v3022
    %v3024 = vsel %vm3013, nan, %v3023
    %v3025 = vand.u32 2147483647, %v1650
    %vm3026 = vcmp.le.f32.partialorder %v3025, 0.7853982
    %vm3027 = vcmp.lt.s32.totalorder %v1650, 0
    %v3028 = vand.u32 %v1650, 2139095040
    %v3029 = vshrl.u32 %v3028, 23
    %v3030 = vsub.s32 %v3029, 127
    %v3031 = vand.u32 2147483647, %v1650
    %v3032 = vand.u32 %v3031, 8388607
    %v3033 = vor.u32 %v3032, 8388608
    %v3034 = vsub.s32 0, %v3033
    %v3035 = vadd.s32 %v3030, 1
    %vm3036 = vcmp.gt.s32.totalorder %v3035, 0
    %v3037 = vsel %vm3036, %v3035, 0
    %v3038 = vshrl.u32 %v3037, 5
    %v3039 = vand.u32 %v3037, 31
    %v3040 = vsub.s32 32, %v3039
    %v3041 = vshrl.u32 683565275, %v3040
    %v3042 = vshll.u32 683565275, %v3039
    %v3043 = vshrl.u32 2475754826, %v3040
    %v3044 = vor.u32 %v3042, %v3043
    %v3045 = vshll.u32 2475754826, %v3039
    %v3046 = vshrl.u32 2131351028, %v3040
    %v3047 = vor.u32 %v3045, %v3046
    %v3048 = vshll.u32 2131351028, %v3039
    %v3049 = vshrl.u32 2102212464, %v3040
    %v3050 = vor.u32 %v3048, %v3049
    %v3051 = vshll.u32 2102212464, %v3039
    %v3052 = vshrl.u32 920167782, %v3040
    %v3053 = vor.u32 %v3051, %v3052
    %v3054 = vshll.u32 920167782, %v3039
    %v3055 = vshrl.u32 1326507024, %v3040
    %v3056 = vor.u32 %v3054, %v3055
    %vm3057 = vcmp.lt.s32.totalorder %v3038, 1
    %vm3058 = vcmp.lt.s32.totalorder %v3038, 2
    %vm3059 = vcmp.lt.s32.totalorder %v3038, 3
    %vm3060 = vcmp.lt.s32.totalorder %v3038, 4
    %v3061 = vsel %vm3057, %v3041, %v3044
    %v3062 = vsel %vm3060, %v3050, 2102212464
    %v3063 = vsel %vm3059, %v3047, %v3062
    %v3064 = vsel %vm3058, %v3061, %v3063
    %v3065 = vsel %vm3057, %v3044, %v3047
    %v3066 = vsel %vm3060, %v3053, 920167782
    %v3067 = vsel %vm3059, %v3050, %v3066
    %v3068 = vsel %vm3058, %v3065, %v3067
    %v3069 = vsel %vm3057, %v3047, %v3050
    %v3070 = vsel %vm3060, %v3056, 1326507024
    %v3071 = vsel %vm3059, %v3053, %v3070
    %v3072 = vsel %vm3058, %v3069, %v3071
    %v3073 = vshll.u32 %v3033, 8
    %v3074 = vmul.u32.u64.compose %v3073, %v3072
    %v3075 = vextract.low.u32 %v3074
    %v3076 = vextract.high.u32 %v3074
    %v3077 = vmul.u32.u64.compose %v3073, %v3068
    %v3078 = vextract.low.u32 %v3077
    %v3079 = vextract.high.u32 %v3077
    %v3080 = vmul.u32 %v3073, %v3064
    %v3081 = vadd.s32 %v3076, %v3078
    %vm3082 = vc.u32 %v3076, %v3078
    %v3083 = vadd.s32 %v3079, 1
    %v3084 = vsel %vm3082, %v3083, %v3079
    %v3085 = vadd.s32 %v3080, %v3084
    %v3086 = vadd.s32 %v3085, 536870912
    %v3087 = vshrl.u32 %v3086, 30
    %v3088 = vshll.u32 %v3087, 30
    %v3089 = vsub.s32 %v3085, %v3088
    %vm3090 = vcmp.lt.s32.totalorder %v3089, 0
    %v3091 = vsub.s32 0, %v3089
    %v3092 = vsel %vm3090, %v3091, %v3089
    %v3093 = vclz %v3092
    %v3094 = vsub.s32 %v3093, 2
    %vm3095 = vcmp.gt.s32.totalorder 0, %v3094
    %v3096 = vsel %vm3095, 0, %v3094
    %v3097 = vsub.s32 32, %v3096
    %v3098 = vshll.u32 %v3089, %v3096
    %v3099 = vshrl.u32 %v3081, %v3097
    %v3100 = vor.u32 %v3098, %v3099
    %v3101 = vsub.s32 4294967266, %v3096
    %v3102 = vadd.s32 %v3101, 127
    %v3103 = vshll.u32 %v3102, 23
    %v3104 = vor.u32 4788187, %v3103
    %v3105 = vand.u32 2147483647, %v3104
    %v3107 = vcvt.s32.f32 %v3100
    %v3108 = vmul.f32 %v3107, %v3105
    %v3109 = vxor.u32 %v3108, 2147483648
    %v3110 = vsel %vm3027, %v3109, %v3108
    %v3111 = vsub.s32 4, %v3087
    %v3112 = vsel %vm3027, %v3111, %v3087
    %v3113 = vsel %vm3026, %v1650, %v3110
    %v3114 = vsel %vm3026, 0, %v3112
    %v3115 = vcosq.f32.pop %v3113
    %v3116 = vsinq.f32.pop %v3113
    %vm3117 = vweird.f32 %v1650
    %v3118 = vadd.s32 %v3114, 3
    %v3119 = vand.u32 %v3118, 3
    %vm3120 = vcmp.lt.s32.totalorder %v3119, 2
    %vm3121 = vcmp.eq.s32.totalorder %v3119, 0
    %v3122 = vxor.u32 %v3116, 2147483648
    %v3123 = vsel %vm3121, %v3115, %v3122
    %vm3124 = vcmp.eq.s32.totalorder %v3119, 2
    %v3125 = vxor.u32 %v3115, 2147483648
    %v3126 = vsel %vm3124, %v3125, %v3116
    %v3127 = vsel %vm3120, %v3123, %v3126
    %v3128 = vsel %vm3117, nan, %v3127
    %v3129 = vand.u32 2147483647, %v1651
    %vm3130 = vcmp.le.f32.partialorder %v3129, 0.7853982
    %vm3131 = vcmp.lt.s32.totalorder %v1651, 0
    %v3132 = vand.u32 %v1651, 2139095040
    %v3133 = vshrl.u32 %v3132, 23
    %v3134 = vsub.s32 %v3133, 127
    %v3135 = vand.u32 2147483647, %v1651
    %v3136 = vand.u32 %v3135, 8388607
    %v3137 = vor.u32 %v3136, 8388608
    %v3138 = vsub.s32 0, %v3137
    %v3139 = vadd.s32 %v3134, 1
    %vm3140 = vcmp.gt.s32.totalorder %v3139, 0
    %v3141 = vsel %vm3140, %v3139, 0
    %v3142 = vshrl.u32 %v3141, 5
    %v3143 = vand.u32 %v3141, 31
    %v3144 = vsub.s32 32, %v3143
    %v3145 = vshrl.u32 683565275, %v3144
    %v3146 = vshll.u32 683565275, %v3143
    %v3147 = vshrl.u32 2475754826, %v3144
    %v3148 = vor.u32 %v3146, %v3147
    %v3149 = vshll.u32 2475754826, %v3143
    %v3150 = vshrl.u32 2131351028, %v3144
    %v3151 = vor.u32 %v3149, %v3150
    %v3152 = vshll.u32 2131351028, %v3143
    %v3153 = vshrl.u32 2102212464, %v3144
    %v3154 = vor.u32 %v3152, %v3153
    %v3155 = vshll.u32 2102212464, %v3143
    %v3156 = vshrl.u32 920167782, %v3144
    %v3157 = vor.u32 %v3155, %v3156
    %v3158 = vshll.u32 920167782, %v3143
    %v3159 = vshrl.u32 1326507024, %v3144
    %v3160 = vor.u32 %v3158, %v3159
    %vm3161 = vcmp.lt.s32.totalorder %v3142, 1
    %vm3162 = vcmp.lt.s32.totalorder %v3142, 2
    %vm3163 = vcmp.lt.s32.totalorder %v3142, 3
    %vm3164 = vcmp.lt.s32.totalorder %v3142, 4
    %v3165 = vsel %vm3161, %v3145, %v3148
    %v3166 = vsel %vm3164, %v3154, 2102212464
    %v3167 = vsel %vm3163, %v3151, %v3166
    %v3168 = vsel %vm3162, %v3165, %v3167
    %v3169 = vsel %vm3161, %v3148, %v3151
    %v3170 = vsel %vm3164, %v3157, 920167782
    %v3171 = vsel %vm3163, %v3154, %v3170
    %v3172 = vsel %vm3162, %v3169, %v3171
    %v3173 = vsel %vm3161, %v3151, %v3154
    %v3174 = vsel %vm3164, %v3160, 1326507024
    %v3175 = vsel %vm3163, %v3157, %v3174
    %v3176 = vsel %vm3162, %v3173, %v3175
    %v3177 = vshll.u32 %v3137, 8
    %v3178 = vmul.u32.u64.compose %v3177, %v3176
    %v3179 = vextract.low.u32 %v3178
    %v3180 = vextract.high.u32 %v3178
    %v3181 = vmul.u32.u64.compose %v3177, %v3172
    %v3182 = vextract.low.u32 %v3181
    %v3183 = vextract.high.u32 %v3181
    %v3184 = vmul.u32 %v3177, %v3168
    %v3185 = vadd.s32 %v3180, %v3182
    %vm3186 = vc.u32 %v3180, %v3182
    %v3187 = vadd.s32 %v3183, 1
    %v3188 = vsel %vm3186, %v3187, %v3183
    %v3189 = vadd.s32 %v3184, %v3188
    %v3190 = vadd.s32 %v3189, 536870912
    %v3191 = vshrl.u32 %v3190, 30
    %v3192 = vshll.u32 %v3191, 30
    %v3193 = vsub.s32 %v3189, %v3192
    %vm3194 = vcmp.lt.s32.totalorder %v3193, 0
    %v3195 = vsub.s32 0, %v3193
    %v3196 = vsel %vm3194, %v3195, %v3193
    %v3197 = vclz %v3196
    %v3198 = vsub.s32 %v3197, 2
    %vm3199 = vcmp.gt.s32.totalorder 0, %v3198
    %v3200 = vsel %vm3199, 0, %v3198
    %v3201 = vsub.s32 32, %v3200
    %v3202 = vshll.u32 %v3193, %v3200
    %v3203 = vshrl.u32 %v3185, %v3201
    %v3204 = vor.u32 %v3202, %v3203
    %v3205 = vsub.s32 4294967266, %v3200
    %v3206 = vadd.s32 %v3205, 127
    %v3207 = vshll.u32 %v3206, 23
    %v3208 = vor.u32 4788187, %v3207
    %v3209 = vand.u32 2147483647, %v3208
    %v3211 = vcvt.s32.f32 %v3204
    %v3212 = vmul.f32 %v3211, %v3209
    %v3213 = vxor.u32 %v3212, 2147483648
    %v3214 = vsel %vm3131, %v3213, %v3212
    %v3215 = vsub.s32 4, %v3191
    %v3216 = vsel %vm3131, %v3215, %v3191
    %v3217 = vsel %vm3130, %v1651, %v3214
    %v3218 = vsel %vm3130, 0, %v3216
    %v3219 = vcosq.f32.pop %v3217
    %v3220 = vsinq.f32.pop %v3217
    %vm3221 = vweird.f32 %v1651
    %v3222 = vadd.s32 %v3218, 3
    %v3223 = vand.u32 %v3222, 3
    %vm3224 = vcmp.lt.s32.totalorder %v3223, 2
    %vm3225 = vcmp.eq.s32.totalorder %v3223, 0
    %v3226 = vxor.u32 %v3220, 2147483648
    %v3227 = vsel %vm3225, %v3219, %v3226
    %vm3228 = vcmp.eq.s32.totalorder %v3223, 2
    %v3229 = vxor.u32 %v3219, 2147483648
    %v3230 = vsel %vm3228, %v3229, %v3220
    %v3231 = vsel %vm3224, %v3227, %v3230
    %v3232 = vsel %vm3221, nan, %v3231
    %v3233 = vand.u32 2147483647, %v1652
    %vm3234 = vcmp.le.f32.partialorder %v3233, 0.7853982
    %vm3235 = vcmp.lt.s32.totalorder %v1652, 0
    %v3236 = vand.u32 %v1652, 2139095040
    %v3237 = vshrl.u32 %v3236, 23
    %v3238 = vsub.s32 %v3237, 127
    %v3239 = vand.u32 2147483647, %v1652
    %v3240 = vand.u32 %v3239, 8388607
    %v3241 = vor.u32 %v3240, 8388608
    %v3242 = vsub.s32 0, %v3241
    %v3243 = vadd.s32 %v3238, 1
    %vm3244 = vcmp.gt.s32.totalorder %v3243, 0
    %v3245 = vsel %vm3244, %v3243, 0
    %v3246 = vshrl.u32 %v3245, 5
    %v3247 = vand.u32 %v3245, 31
    %v3248 = vsub.s32 32, %v3247
    %v3249 = vshrl.u32 683565275, %v3248
    %v3250 = vshll.u32 683565275, %v3247
    %v3251 = vshrl.u32 2475754826, %v3248
    %v3252 = vor.u32 %v3250, %v3251
    %v3253 = vshll.u32 2475754826, %v3247
    %v3254 = vshrl.u32 2131351028, %v3248
    %v3255 = vor.u32 %v3253, %v3254
    %v3256 = vshll.u32 2131351028, %v3247
    %v3257 = vshrl.u32 2102212464, %v3248
    %v3258 = vor.u32 %v3256, %v3257
    %v3259 = vshll.u32 2102212464, %v3247
    %v3260 = vshrl.u32 920167782, %v3248
    %v3261 = vor.u32 %v3259, %v3260
    %v3262 = vshll.u32 920167782, %v3247
    %v3263 = vshrl.u32 1326507024, %v3248
    %v3264 = vor.u32 %v3262, %v3263
    %vm3265 = vcmp.lt.s32.totalorder %v3246, 1
    %vm3266 = vcmp.lt.s32.totalorder %v3246, 2
    %vm3267 = vcmp.lt.s32.totalorder %v3246, 3
    %vm3268 = vcmp.lt.s32.totalorder %v3246, 4
    %v3269 = vsel %vm3265, %v3249, %v3252
    %v3270 = vsel %vm3268, %v3258, 2102212464
    %v3271 = vsel %vm3267, %v3255, %v3270
    %v3272 = vsel %vm3266, %v3269, %v3271
    %v3273 = vsel %vm3265, %v3252, %v3255
    %v3274 = vsel %vm3268, %v3261, 920167782
    %v3275 = vsel %vm3267, %v3258, %v3274
    %v3276 = vsel %vm3266, %v3273, %v3275
    %v3277 = vsel %vm3265, %v3255, %v3258
    %v3278 = vsel %vm3268, %v3264, 1326507024
    %v3279 = vsel %vm3267, %v3261, %v3278
    %v3280 = vsel %vm3266, %v3277, %v3279
    %v3281 = vshll.u32 %v3241, 8
    %v3282 = vmul.u32.u64.compose %v3281, %v3280
    %v3283 = vextract.low.u32 %v3282
    %v3284 = vextract.high.u32 %v3282
    %v3285 = vmul.u32.u64.compose %v3281, %v3276
    %v3286 = vextract.low.u32 %v3285
    %v3287 = vextract.high.u32 %v3285
    %v3288 = vmul.u32 %v3281, %v3272
    %v3289 = vadd.s32 %v3284, %v3286
    %vm3290 = vc.u32 %v3284, %v3286
    %v3291 = vadd.s32 %v3287, 1
    %v3292 = vsel %vm3290, %v3291, %v3287
    %v3293 = vadd.s32 %v3288, %v3292
    %v3294 = vadd.s32 %v3293, 536870912
    %v3295 = vshrl.u32 %v3294, 30
    %v3296 = vshll.u32 %v3295, 30
    %v3297 = vsub.s32 %v3293, %v3296
    %vm3298 = vcmp.lt.s32.totalorder %v3297, 0
    %v3299 = vsub.s32 0, %v3297
    %v3300 = vsel %vm3298, %v3299, %v3297
    %v3301 = vclz %v3300
    %v3302 = vsub.s32 %v3301, 2
    %vm3303 = vcmp.gt.s32.totalorder 0, %v3302
    %v3304 = vsel %vm3303, 0, %v3302
    %v3305 = vsub.s32 32, %v3304
    %v3306 = vshll.u32 %v3297, %v3304
    %v3307 = vshrl.u32 %v3289, %v3305
    %v3308 = vor.u32 %v3306, %v3307
    %v3309 = vsub.s32 4294967266, %v3304
    %v3310 = vadd.s32 %v3309, 127
    %v3311 = vshll.u32 %v3310, 23
    %v3312 = vor.u32 4788187, %v3311
    %v3313 = vand.u32 2147483647, %v3312
    %v3315 = vcvt.s32.f32 %v3308
    %v3316 = vmul.f32 %v3315, %v3313
    %v3317 = vxor.u32 %v3316, 2147483648
    %v3318 = vsel %vm3235, %v3317, %v3316
    %v3319 = vsub.s32 4, %v3295
    %v3320 = vsel %vm3235, %v3319, %v3295
    %v3321 = vsel %vm3234, %v1652, %v3318
    %v3322 = vsel %vm3234, 0, %v3320
    %v3323 = vcosq.f32.pop %v3321
    %v3324 = vsinq.f32.pop %v3321
    %vm3325 = vweird.f32 %v1652
    %v3326 = vadd.s32 %v3322, 3
    %v3327 = vand.u32 %v3326, 3
    %vm3328 = vcmp.lt.s32.totalorder %v3327, 2
    %vm3329 = vcmp.eq.s32.totalorder %v3327, 0
    %v3330 = vxor.u32 %v3324, 2147483648
    %v3331 = vsel %vm3329, %v3323, %v3330
    %vm3332 = vcmp.eq.s32.totalorder %v3327, 2
    %v3333 = vxor.u32 %v3323, 2147483648
    %v3334 = vsel %vm3332, %v3333, %v3324
    %v3335 = vsel %vm3328, %v3331, %v3334
    %v3336 = vsel %vm3325, nan, %v3335
    %v3337 = vadd.f32 %v2608, %v3024
    %v3338 = vrot.slane %v3337, 4
    %v3339 = vadd.f32 %v3337, %v3338
    %v3340 = vrot.slane %v3339, 2
    %v3341 = vadd.f32 %v3339, %v3340
    %v3342 = vrot.slane %v3341, 1
    %v3343 = vadd.f32 %v3341, %v3342
    %v3344 = vadd.f32 %v2712, %v3128
    %v3345 = vrot.slane %v3344, 4
    %v3346 = vadd.f32 %v3344, %v3345
    %v3347 = vrot.slane %v3346, 2
    %v3348 = vadd.f32 %v3346, %v3347
    %v3349 = vrot.slane %v3348, 1
    %v3350 = vadd.f32 %v3348, %v3349
    %v3351 = vadd.f32 %v2816, %v3232
    %v3352 = vrot.slane %v3351, 4
    %v3353 = vadd.f32 %v3351, %v3352
    %v3354 = vrot.slane %v3353, 2
    %v3355 = vadd.f32 %v3353, %v3354
    %v3356 = vrot.slane %v3355, 1
    %v3357 = vadd.f32 %v3355, %v3356
    %v3358 = vadd.f32 %v2920, %v3336
    %v3359 = vrot.slane %v3358, 4
    %v3360 = vadd.f32 %v3358, %v3359
    %v3361 = vrot.slane %v3360, 2
    %v3362 = vadd.f32 %v3360, %v3361
    %v3363 = vrot.slane %v3362, 1
    %v3364 = vadd.f32 %v3362, %v3363
    %v3365 = vmul.f32 %v2483, %v2483
    %v3366 = vmul.f32 %v2490, %v2490
    %v3367 = vmul.f32 %v2497, %v2497
    %v3368 = vmul.f32 %v2504, %v2504
    %v3369 = vmul.f32 %v3343, %v3343
    %v3370 = vmul.f32 %v3350, %v3350
    %v3371 = vmul.f32 %v3357, %v3357
    %v3372 = vmul.f32 %v3364, %v3364
    %v3373 = vadd.f32 %v3365, %v3369
    %v3374 = vadd.f32 %v3366, %v3370
    %v3375 = vadd.f32 %v3367, %v3371
    %v3376 = vadd.f32 %v3368, %v3372
    %v3377 = vmul.f32 %v3373, 0.00390625
    %v3378 = vmul.f32 %v3374, 0.00390625
    %v3379 = vmul.f32 %v3375, 0.00390625
    %v3380 = vmul.f32 %v3376, 0.00390625
    %v3385 = vcombine.low %v3377, %v3378
    %v3386 = vcombine.low %v3379, %v3380
    %v3388 = vunpack.c.l.s4 1966171168
    %v3389 = vunpack.c.0.s8 %v3388
    %v3390 = vlaneseq
    %v3391 = vshrl.u32 %v3390, 7
    %v3392 = vsub.s32 %v3389, %v3391
    %v3393 = vrot.slane %v3385, %v3392
    %v3395 = vunpack.c.l.s4 1966171168
    %v3396 = vunpack.c.0.s8 %v3395
    %v3397 = vlaneseq
    %v3398 = vshrl.u32 %v3397, 7
    %v3399 = vsub.s32 %v3396, %v3398
    %v3400 = vrot.slane %v3386, %v3399
    %v3401 = vcombine.low %v3393, %v3400
    %v3403 = vunpack.c.l.s4 1966171168
    %v3404 = vunpack.c.0.s8 %v3403
    %v3405 = vlaneseq
    %v3406 = vshrl.u32 %v3405, 7
    %v3407 = vsub.s32 %v3404, %v3406
    %v3408 = vrot.slane %v3401, %v3407
    %v3410 = vlaneseq
    %vm3411 = vcmp.ge.s32.totalorder %v3410, 0
    %vm3412 = vcmp.lt.s32.totalorder %v3410, 512
    %vm3413 = vmand %vm3411, %vm3412
    %3414 = vst.msk [vmem:[#allocation2] sm:$0xf] %vm3413, %v3408
    // Predicated region
    $region42: #{tpu_custom_call.1} parent=1 // pred_check
      _
    $region43: #{tpu_custom_call.1} parent=1 // pred_check_branch
      %3416 = sbr.rel (0) target = $region45
    $region44: #{tpu_custom_call.1} parent=1 // pred_region
      %s3418 = ssub.s32 64, 64
      %3419 = vsyncadd [#allocation3], %s3418
      %s3421 = sshll.u32 [#allocation2], 4
      %s3422 = int_to_ptr.vmem [resolvable:$true] %s3421
      %3424 = dma.vmem_to_hbm [thread:$0]  %s3422, 64, %s10, [#allocation3]
    $region45: #{tpu_custom_call.1} parent=1 // pred_fallthru
      _
    // Predicated region
    $region46: #{tpu_custom_call.1} parent=1 // pred_check
      _
    $region47: #{tpu_custom_call.1} parent=1 // pred_check_branch
      %3426 = sbr.rel (0) target = $region49
    $region48: #{tpu_custom_call.1} parent=1 // pred_region
      %3427 = dma.done [#allocation3], 64
    $region49: #{tpu_custom_call.1} parent=1 // pred_fallthru
      _
    %3428 = vsyncpa [#allocation3], 1

</llo_original>
